<compile_context>
chip_gen: v7x
topology: tpu7x:2x2x1
jax: 0.10.0
libtpu: 0.0.40
codegen_flags: <defaults>
</compile_context>

<pallas_src>
import functools

import jax
import jax.numpy as jnp
from jax import lax
from jax.experimental import pallas as pl
from jax.experimental.pallas import tpu as pltpu

EPS = 1e-5
VMEM_LIMIT = 32 * 1024 * 1024  # safe on v5e/v6e/v7x (v7x physical VMEM is 64 MiB)
MATMUL_DTYPE = jnp.float32     # set to jnp.bfloat16 on v6e/v7x if numerics allow
VMEM_SPEC = pl.BlockSpec(memory_space=pltpu.MemorySpace.VMEM)


# ------------------- fused: rnln LayerNorm + stacked LSTM + relu -------------------
def _lstm_stack_kernel(x_ref, ga_ref, be_ref, wih_ref, whh_ref, bias_ref,
                       y_ref, hN_ref, cN_ref, xp_ref):
    # x: (T, B, H); wih/whh: (L, H, 4H); bias: (L, 1, 4H) (b_ih + b_hh, gate order i,f,g,o)
    T, B, H = x_ref.shape
    L = wih_ref.shape[0]
    N = T * B

    # rnln LayerNorm fused on the layer input.
    x = x_ref[...].astype(jnp.float32).reshape(N, H)
    mu = jnp.mean(x, axis=-1, keepdims=True)
    var = jnp.mean((x - mu) ** 2, axis=-1, keepdims=True)
    cur = (x - mu) * lax.rsqrt(var + EPS) * ga_ref[...] + be_ref[...]

    for l in range(L):  # static unroll over stacked LSTM layers (no HBM round trips)
        wih = wih_ref[l]      # hoisted loads: loop-invariant inside the recurrence
        whh = whh_ref[l]
        bias = bias_ref[l]
        # Hoisted input projection: one big matmul instead of T tiny ones.
        xp = jnp.dot(cur.astype(MATMUL_DTYPE), wih.astype(MATMUL_DTYPE),
                     preferred_element_type=jnp.float32) + bias
        xp_ref[...] = xp.reshape(T, B, 4 * H)

        def step(t, carry):
            h, c = carry
            gates = xp_ref[t] + jnp.dot(h.astype(MATMUL_DTYPE),
                                        whh.astype(MATMUL_DTYPE),
                                        preferred_element_type=jnp.float32)
            i = jax.nn.sigmoid(gates[:, 0 * H:1 * H])
            f = jax.nn.sigmoid(gates[:, 1 * H:2 * H])
            g = jnp.tanh(gates[:, 2 * H:3 * H])
            o = jax.nn.sigmoid(gates[:, 3 * H:4 * H])
            c_new = f * c + i * g
            h_new = o * jnp.tanh(c_new)
            y_ref[t] = h_new.astype(y_ref.dtype)
            return (h_new, c_new)

        hT, cT = lax.fori_loop(
            0, T, step,
            (jnp.zeros((B, H), jnp.float32), jnp.zeros((B, H), jnp.float32)))
        hN_ref[l] = hT.astype(hN_ref.dtype)
        cN_ref[l] = cT.astype(cN_ref.dtype)
        if l + 1 < L:
            cur = y_ref[...].astype(jnp.float32).reshape(N, H)

    # torch.relu applied to the LSTM sequence output only (h_n/c_n stay pre-relu).
    y_ref[...] = jnp.maximum(y_ref[...], 0.0)


def lstm_stack(x_tbh, rnln_g, rnln_b, wih, whh, bias):
    T, B, H = x_tbh.shape
    L = wih.shape[0]
    N = T * B
    flops = L * (4 * N * H * 4 * H + 12 * N * H)
    transcendentals = L * N * 5 * H
    bytes_accessed = 4 * (2 * T * B * H + 2 * L * H * 4 * H + L * 4 * H
                          + 2 * H + 2 * L * B * H)
    return pl.pallas_call(
        _lstm_stack_kernel,
        out_shape=(
            jax.ShapeDtypeStruct((T, B, H), x_tbh.dtype),   # relu(LSTM out), time-major
            jax.ShapeDtypeStruct((L, B, H), x_tbh.dtype),   # h_n
            jax.ShapeDtypeStruct((L, B, H), x_tbh.dtype),   # c_n
        ),
        in_specs=[VMEM_SPEC] * 6,
        out_specs=(VMEM_SPEC, VMEM_SPEC, VMEM_SPEC),
        scratch_shapes=[pltpu.VMEM((T, B, 4 * H), jnp.float32)],
        compiler_params=pltpu.CompilerParams(vmem_limit_bytes=VMEM_LIMIT),
        cost_estimate=pl.CostEstimate(flops=flops, transcendentals=transcendentals,
                                      bytes_accessed=bytes_accessed),
    )(x_tbh, rnln_g.reshape(1, H), rnln_b.reshape(1, H), wih, whh, bias)


# ---------- fused: add_transformer (LN + qkv proj + banded sum) + Boom ----------
def _att_boom_kernel(y_ref, wqkv_ref, bqkv_ref, w1_ref, b1_ref, w2_ref, b2_ref,
                     o_ref, *, cache_len):
    # Per-batch slice (grid over B): y: (T, H).  LN affine is pre-folded into
    # wqkv/bqkv, so one shared normalization + one (H,3H) matmul gives q,k,v.
    T, H = y_ref.shape
    x = y_ref[...].astype(jnp.float32)
    mu = jnp.mean(x, axis=-1, keepdims=True)
    var = jnp.mean((x - mu) ** 2, axis=-1, keepdims=True)
    xn = (x - mu) * lax.rsqrt(var + EPS)

    b_all = bqkv_ref[...]                                           # (1, 3H)
    proj = jnp.dot(xn.astype(MATMUL_DTYPE), wqkv_ref[...].astype(MATMUL_DTYPE),
                   preferred_element_type=jnp.float32) + b_all      # (T, 3H)
    qp = proj[:, 0 * H:1 * H]
    kp = proj[:, 1 * H:2 * H]
    vp = proj[:, 2 * H:3 * H]
    kv = jnp.maximum(kp, 0.0) * vp                                  # (T, H)

    # integrate3 band (in padded coords: q+1 <= j <= q+cache_len) maps on the
    # unpadded sequence to the window m in [q-cache_len+1, q] (current step incl.)
    ti = lax.broadcasted_iota(jnp.int32, (T, T), 0)
    tj = lax.broadcasted_iota(jnp.int32, (T, T), 1)
    d = ti - tj
    band = jnp.logical_and(d >= 0, d < cache_len).astype(jnp.float32)
    weighted = jnp.dot(band, kv, preferred_element_type=jnp.float32)  # (T, H)

    # Zero-left-pad rows of k/v: LN(0) = beta, so their projection equals the
    # folded bias -> each contributes the constant row relu(bk)*bv.
    kv_pad = jnp.maximum(b_all[:, 1 * H:2 * H], 0.0) * b_all[:, 2 * H:3 * H]  # (1, H)
    trow = lax.broadcasted_iota(jnp.int32, (T, H), 0)
    npad = jnp.maximum((cache_len - 1) - trow, 0).astype(jnp.float32)
    weighted = weighted + npad * kv_pad

    att = jnp.maximum(qp, 0.0) * weighted

    # Boom: Linear -> sigmoid-GELU (x*sigmoid(1.702x), per reference) -> Linear.
    h1 = jnp.dot(att.astype(MATMUL_DTYPE), w1_ref[...].astype(MATMUL_DTYPE),
                 preferred_element_type=jnp.float32) + b1_ref[...]
    h1 = h1 * jax.nn.sigmoid(1.702 * h1)
    out = jnp.dot(h1.astype(MATMUL_DTYPE), w2_ref[...].astype(MATMUL_DTYPE),
                  preferred_element_type=jnp.float32) + b2_ref[...]
    o_ref[...] = out.astype(o_ref.dtype)


def att_boom(y_bth, wqkv, bqkv, w1, b1, w2, b2, *, cache_len):
    B, T, H = y_bth.shape
    return pl.pallas_call(
        functools.partial(_att_boom_kernel, cache_len=cache_len),
        out_shape=jax.ShapeDtypeStruct((B, T, H), y_bth.dtype),
        grid=(B,),
        in_specs=[
            pl.BlockSpec((None, T, H), lambda b: (b, 0, 0)),
            pl.BlockSpec((H, 3 * H), lambda b: (0, 0)),
            pl.BlockSpec((1, 3 * H), lambda b: (0, 0)),
            pl.BlockSpec((H, 2 * H), lambda b: (0, 0)),
            pl.BlockSpec((1, 2 * H), lambda b: (0, 0)),
            pl.BlockSpec((2 * H, H), lambda b: (0, 0)),
            pl.BlockSpec((1, H), lambda b: (0, 0)),
        ],
        out_specs=pl.BlockSpec((None, T, H), lambda b: (b, 0, 0)),
        compiler_params=pltpu.CompilerParams(
            dimension_semantics=("parallel",),
            vmem_limit_bytes=VMEM_LIMIT),
    )(y_bth, wqkv, bqkv, w1, b1, w2, b2)


def _fold_qkv(att):
    # Fold LN affine into the projections: (xn*g + b_ln) @ W + b == xn @ (g*W) + (b_ln@W + b)
    def fold(g, b_ln, w, b_lin):
        return g[:, None] * w, b_ln @ w + b_lin
    wq, bq = fold(att["lnq_g"], att["lnq_b"], att["wq_w"], att["wq_b"])
    wk, bk = fold(att["lnk_g"], att["lnk_b"], att["wk_w"], att["wk_b"])
    wv, bv = fold(att["lnv_g"], att["lnv_b"], att["wv_w"], att["wv_b"])
    wqkv = jnp.concatenate([wq, wk, wv], axis=1)           # (H, 3H)
    bqkv = jnp.concatenate([bq, bk, bv], axis=0)[None, :]  # (1, 3H)
    return wqkv, bqkv


# ---------------------------------- Full model ----------------------------------
def mplstm_forward(x, params, nlayer, cache_len):
    B, T, H = x.shape
    q_tbh = jnp.transpose(x, (1, 0, 2))  # time-major once; kept across all layers
    extra = {"cache": [], "hstas": [], "cstas": []}
    out_bth = None
    for idx in range(nlayer):
        p = params[idx]
        y_tbh, hN, cN = lstm_stack(q_tbh, p["rnln_g"], p["rnln_b"],
                                   p["lstm_wih"], p["lstm_whh"], p["lstm_b"])
        extra["hstas"].append(hN)
        extra["cstas"].append(cN)
        y_bth = jnp.transpose(y_tbh, (1, 0, 2))  # batch-major view for att grid + cache
        if T >= cache_len:
            cache_k = y_bth[:, T - cache_len:, :]
        else:
            cache_k = jnp.concatenate(
                [jnp.zeros((B, cache_len - T, H), y_bth.dtype), y_bth], axis=1)
        extra["cache"].append(cache_k)

        wqkv, bqkv = _fold_qkv(p["att"])
        bm = p["boom"]
        out_bth = att_boom(y_bth, wqkv, bqkv,
                           bm["w1"], bm["b1"].reshape(1, -1),
                           bm["w2"], bm["b2"].reshape(1, -1),
                           cache_len=cache_len)
        # TODO(synk): nn.Dropout is identity in eval mode; omitted.
        if idx + 1 < nlayer:
            q_tbh = jnp.transpose(out_bth, (1, 0, 2))
    # TODO(synk): indicator/hyper_net (Conv1d stack) is constructed but never
    # called in add_transformer.forward -> intentionally not materialized.
    return out_bth, extra


# ---------------------------------- Param init ----------------------------------
def init_params(key, H, nlayer):
    def uniform(k, shape, bound):
        return jax.random.uniform(k, shape, jnp.float32, -bound, bound)

    bH = 1.0 / (H ** 0.5)
    b2H = 1.0 / ((2 * H) ** 0.5)
    layers = []
    for _ in range(nlayer):
        key, k_lstm, k_att, k_boom = jax.random.split(key, 4)
        lstm_keys = jax.random.split(k_lstm, 3 * nlayer)
        wih = jnp.stack([uniform(lstm_keys[3 * l + 0], (H, 4 * H), bH)
                         for l in range(nlayer)])
        whh = jnp.stack([uniform(lstm_keys[3 * l + 1], (H, 4 * H), bH)
                         for l in range(nlayer)])
        bls = jnp.stack([uniform(lstm_keys[3 * l + 2], (1, 4 * H), bH)
                         for l in range(nlayer)])  # b_ih + b_hh pre-summed
        ak = jax.random.split(k_att, 6)
        att = {
            "lnq_g": jnp.ones((H,), jnp.float32), "lnq_b": jnp.zeros((H,), jnp.float32),
            "lnk_g": jnp.ones((H,), jnp.float32), "lnk_b": jnp.zeros((H,), jnp.float32),
            "lnv_g": jnp.ones((H,), jnp.float32), "lnv_b": jnp.zeros((H,), jnp.float32),
            "wq_w": uniform(ak[0], (H, H), bH), "wq_b": uniform(ak[1], (H,), bH),
            "wk_w": uniform(ak[2], (H, H), bH), "wk_b": uniform(ak[3], (H,), bH),
            "wv_w": uniform(ak[4], (H, H), bH), "wv_b": uniform(ak[5], (H,), bH),
        }
        bk = jax.random.split(k_boom, 4)
        boom = {
            "w1": uniform(bk[0], (H, 2 * H), bH), "b1": uniform(bk[1], (2 * H,), bH),
            "w2": uniform(bk[2], (2 * H, H), b2H), "b2": uniform(bk[3], (H,), b2H),
        }
        layers.append({
            "rnln_g": jnp.ones((H,), jnp.float32),
            "rnln_b": jnp.zeros((H,), jnp.float32),
            "lstm_wih": wih, "lstm_whh": whh, "lstm_b": bls,
            "att": att, "boom": boom,
        })
    return layers


if __name__ == "__main__":
    B, T, H = 2, 8, 32
    NLAYER = 2
    CACHE_LEN = 20

    key = jax.random.PRNGKey(0)
    kx, kp = jax.random.split(key)
    x = jax.random.normal(kx, (B, T, H), jnp.float32)
    params = init_params(kp, H, NLAYER)

    fwd = jax.jit(functools.partial(mplstm_forward, nlayer=NLAYER, cache_len=CACHE_LEN))
    out, extra = fwd(x, params)
    jax.block_until_ready(out)

    assert out.shape == (B, T, H)
    assert bool(jnp.all(jnp.isfinite(out)))
    assert extra["cache"][0].shape == (B, CACHE_LEN, H)
    assert extra["hstas"][0].shape == (NLAYER, B, H)
    assert extra["cstas"][0].shape == (NLAYER, B, H)
    print("KERNEL_OK")
</pallas_src>

<mosaic_0001>
module attributes {stable_mosaic.version = 11 : i64} {
  func.func @_att_boom_kernel(%arg0: i32, %arg1: memref<1x8x32xf32, #tpu.memory_space<vmem>>, %arg2: memref<32x96xf32, #tpu.memory_space<vmem>>, %arg3: memref<1x96xf32, #tpu.memory_space<vmem>>, %arg4: memref<32x64xf32, #tpu.memory_space<vmem>>, %arg5: memref<1x64xf32, #tpu.memory_space<vmem>>, %arg6: memref<64x32xf32, #tpu.memory_space<vmem>>, %arg7: memref<1x32xf32, #tpu.memory_space<vmem>>, %arg8: memref<1x8x32xf32, #tpu.memory_space<vmem>>) attributes {dimension_semantics = [#tpu.dimension_semantics<parallel>], iteration_bounds = array<i64: 2>, scalar_prefetch = 0 : i64, scratch_operands = 0 : i64, tpu.core_type = #tpu.core_type<tc>, window_params = [{transform_indices = @transform_0, window_bounds = array<i64: 1, 8, 32>}, {pipeline_mode = #tpu.pipeline_mode<synchronous>, transform_indices = @transform_1, window_bounds = array<i64: 32, 96>}, {pipeline_mode = #tpu.pipeline_mode<synchronous>, transform_indices = @transform_2, window_bounds = array<i64: 1, 96>}, {pipeline_mode = #tpu.pipeline_mode<synchronous>, transform_indices = @transform_3, window_bounds = array<i64: 32, 64>}, {pipeline_mode = #tpu.pipeline_mode<synchronous>, transform_indices = @transform_4, window_bounds = array<i64: 1, 64>}, {pipeline_mode = #tpu.pipeline_mode<synchronous>, transform_indices = @transform_5, window_bounds = array<i64: 64, 32>}, {pipeline_mode = #tpu.pipeline_mode<synchronous>, transform_indices = @transform_6, window_bounds = array<i64: 1, 32>}, {transform_indices = @transform_7, window_bounds = array<i64: 1, 8, 32>}]} {
    %c0 = arith.constant 0 : index
    %c0_0 = arith.constant 0 : index
    %c0_1 = arith.constant 0 : index
    %0 = vector.load %arg1[%c0, %c0_0, %c0_1] : memref<1x8x32xf32, #tpu.memory_space<vmem>>, vector<1x8x32xf32>
    %1 = vector.shape_cast %0 : vector<1x8x32xf32> to vector<8x32xf32>
    %cst = arith.constant dense<0.000000e+00> : vector<8xf32>
    %2 = vector.multi_reduction <add>, %1, %cst [1] : vector<8x32xf32> to vector<8xf32>
    %3 = vector.shape_cast %2 : vector<8xf32> to vector<8x1xf32>
    %cst_2 = arith.constant 3.200000e+01 : f32
    %4 = vector.broadcast %cst_2 : f32 to vector<8x1xf32>
    %5 = arith.divf %3, %4 : vector<8x1xf32>
    %6 = vector.broadcast %5 : vector<8x1xf32> to vector<8x32xf32>
    %7 = arith.subf %1, %6 : vector<8x32xf32>
    %8 = arith.mulf %7, %7 : vector<8x32xf32>
    %cst_3 = arith.constant dense<0.000000e+00> : vector<8xf32>
    %9 = vector.multi_reduction <add>, %8, %cst_3 [1] : vector<8x32xf32> to vector<8xf32>
    %10 = vector.shape_cast %9 : vector<8xf32> to vector<8x1xf32>
    %cst_4 = arith.constant 3.200000e+01 : f32
    %11 = vector.broadcast %cst_4 : f32 to vector<8x1xf32>
    %12 = arith.divf %10, %11 : vector<8x1xf32>
    %13 = vector.broadcast %5 : vector<8x1xf32> to vector<8x32xf32>
    %14 = arith.subf %1, %13 : vector<8x32xf32>
    %cst_5 = arith.constant 9.99999974E-6 : f32
    %15 = vector.broadcast %cst_5 : f32 to vector<8x1xf32>
    %16 = arith.addf %12, %15 : vector<8x1xf32>
    %17 = math.rsqrt %16 : vector<8x1xf32>
    %18 = vector.broadcast %17 : vector<8x1xf32> to vector<8x32xf32>
    %19 = arith.mulf %14, %18 : vector<8x32xf32>
    %c0_6 = arith.constant 0 : index
    %c0_7 = arith.constant 0 : index
    %20 = vector.load %arg3[%c0_6, %c0_7] : memref<1x96xf32, #tpu.memory_space<vmem>>, vector<1x96xf32>
    %c0_8 = arith.constant 0 : index
    %c0_9 = arith.constant 0 : index
    %21 = vector.load %arg2[%c0_8, %c0_9] : memref<32x96xf32, #tpu.memory_space<vmem>>, vector<32x96xf32>
    %cst_10 = arith.constant dense<0.000000e+00> : vector<8x96xf32>
    %22 = tpu.matmul %19, %21, %cst_10 {dimension_numbers = #tpu.dot_dimension_numbers<[1], [0], [0], [1], [0, 0, 1, 1], [], []>} : vector<8x32xf32>, vector<32x96xf32>, vector<8x96xf32> -> vector<8x96xf32>
    %23 = vector.broadcast %20 : vector<1x96xf32> to vector<8x96xf32>
    %24 = arith.addf %22, %23 : vector<8x96xf32>
    %25 = vector.extract_strided_slice %24 {offsets = [0, 0], sizes = [8, 32], strides = [1, 1]} : vector<8x96xf32> to vector<8x32xf32>
    %26 = vector.extract_strided_slice %24 {offsets = [0, 32], sizes = [8, 32], strides = [1, 1]} : vector<8x96xf32> to vector<8x32xf32>
    %27 = vector.extract_strided_slice %24 {offsets = [0, 64], sizes = [8, 32], strides = [1, 1]} : vector<8x96xf32> to vector<8x32xf32>
    %cst_11 = arith.constant 0.000000e+00 : f32
    %28 = vector.broadcast %cst_11 : f32 to vector<8x32xf32>
    %29 = arith.maximumf %26, %28 : vector<8x32xf32>
    %30 = arith.mulf %29, %27 : vector<8x32xf32>
    %31 = tpu.iota {dimensions = array<i32: 0>} : vector<8x8xi32>
    %32 = tpu.iota {dimensions = array<i32: 1>} : vector<8x8xi32>
    %33 = arith.subi %31, %32 : vector<8x8xi32>
    %c0_i32 = arith.constant 0 : i32
    %34 = vector.broadcast %c0_i32 : i32 to vector<8x8xi32>
    %35 = arith.cmpi sge, %33, %34 : vector<8x8xi32>
    %c20_i32 = arith.constant 20 : i32
    %36 = vector.broadcast %c20_i32 : i32 to vector<8x8xi32>
    %37 = arith.cmpi slt, %33, %36 : vector<8x8xi32>
    %38 = arith.andi %35, %37 : vector<8x8xi1>
    %39 = arith.extui %38 : vector<8x8xi1> to vector<8x8xi32>
    %40 = arith.sitofp %39 : vector<8x8xi32> to vector<8x8xf32>
    %cst_12 = arith.constant dense<0.000000e+00> : vector<8x32xf32>
    %41 = tpu.matmul %40, %30, %cst_12 {dimension_numbers = #tpu.dot_dimension_numbers<[1], [0], [0], [1], [0, 0, 1, 1], [], []>} : vector<8x8xf32>, vector<8x32xf32>, vector<8x32xf32> -> vector<8x32xf32>
    %42 = vector.extract_strided_slice %20 {offsets = [0, 32], sizes = [1, 32], strides = [1, 1]} : vector<1x96xf32> to vector<1x32xf32>
    %cst_13 = arith.constant 0.000000e+00 : f32
    %43 = vector.broadcast %cst_13 : f32 to vector<1x32xf32>
    %44 = arith.maximumf %42, %43 : vector<1x32xf32>
    %45 = vector.extract_strided_slice %20 {offsets = [0, 64], sizes = [1, 32], strides = [1, 1]} : vector<1x96xf32> to vector<1x32xf32>
    %46 = arith.mulf %44, %45 : vector<1x32xf32>
    %47 = tpu.iota {dimensions = array<i32: 0>} : vector<8x32xi32>
    %c19_i32 = arith.constant 19 : i32
    %48 = vector.broadcast %c19_i32 : i32 to vector<8x32xi32>
    %49 = arith.subi %48, %47 : vector<8x32xi32>
    %c0_i32_14 = arith.constant 0 : i32
    %50 = vector.broadcast %c0_i32_14 : i32 to vector<8x32xi32>
    %51 = arith.maxsi %49, %50 : vector<8x32xi32>
    %52 = arith.sitofp %51 : vector<8x32xi32> to vector<8x32xf32>
    %53 = vector.broadcast %46 : vector<1x32xf32> to vector<8x32xf32>
    %54 = arith.mulf %52, %53 : vector<8x32xf32>
    %55 = arith.addf %41, %54 : vector<8x32xf32>
    %cst_15 = arith.constant 0.000000e+00 : f32
    %56 = vector.broadcast %cst_15 : f32 to vector<8x32xf32>
    %57 = arith.maximumf %25, %56 : vector<8x32xf32>
    %58 = arith.mulf %57, %55 : vector<8x32xf32>
    %c0_16 = arith.constant 0 : index
    %c0_17 = arith.constant 0 : index
    %59 = vector.load %arg4[%c0_16, %c0_17] : memref<32x64xf32, #tpu.memory_space<vmem>>, vector<32x64xf32>
    %cst_18 = arith.constant dense<0.000000e+00> : vector<8x64xf32>
    %60 = tpu.matmul %58, %59, %cst_18 {dimension_numbers = #tpu.dot_dimension_numbers<[1], [0], [0], [1], [0, 0, 1, 1], [], []>} : vector<8x32xf32>, vector<32x64xf32>, vector<8x64xf32> -> vector<8x64xf32>
    %c0_19 = arith.constant 0 : index
    %c0_20 = arith.constant 0 : index
    %61 = vector.load %arg5[%c0_19, %c0_20] : memref<1x64xf32, #tpu.memory_space<vmem>>, vector<1x64xf32>
    %62 = vector.broadcast %61 : vector<1x64xf32> to vector<8x64xf32>
    %63 = arith.addf %60, %62 : vector<8x64xf32>
    %cst_21 = arith.constant 1.702000e+00 : f32
    %64 = vector.broadcast %cst_21 : f32 to vector<8x64xf32>
    %65 = arith.mulf %64, %63 : vector<8x64xf32>
    %66 = arith.negf %65 : vector<8x64xf32>
    %67 = math.exp %66 : vector<8x64xf32>
    %cst_22 = arith.constant 1.000000e+00 : f32
    %68 = vector.broadcast %cst_22 : f32 to vector<8x64xf32>
    %69 = arith.addf %68, %67 : vector<8x64xf32>
    %70 = arith.divf %68, %69 : vector<8x64xf32>
    %71 = arith.mulf %63, %70 : vector<8x64xf32>
    %c0_23 = arith.constant 0 : index
    %c0_24 = arith.constant 0 : index
    %72 = vector.load %arg6[%c0_23, %c0_24] : memref<64x32xf32, #tpu.memory_space<vmem>>, vector<64x32xf32>
    %cst_25 = arith.constant dense<0.000000e+00> : vector<8x32xf32>
    %73 = tpu.matmul %71, %72, %cst_25 {dimension_numbers = #tpu.dot_dimension_numbers<[1], [0], [0], [1], [0, 0, 1, 1], [], []>} : vector<8x64xf32>, vector<64x32xf32>, vector<8x32xf32> -> vector<8x32xf32>
    %c0_26 = arith.constant 0 : index
    %c0_27 = arith.constant 0 : index
    %74 = vector.load %arg7[%c0_26, %c0_27] : memref<1x32xf32, #tpu.memory_space<vmem>>, vector<1x32xf32>
    %75 = vector.broadcast %74 : vector<1x32xf32> to vector<8x32xf32>
    %76 = arith.addf %73, %75 : vector<8x32xf32>
    %c0_28 = arith.constant 0 : index
    %c0_29 = arith.constant 0 : index
    %c0_30 = arith.constant 0 : index
    %77 = vector.load %arg8[%c0_28, %c0_29, %c0_30] : memref<1x8x32xf32, #tpu.memory_space<vmem>>, vector<1x8x32xf32>
    %78 = vector.shape_cast %77 : vector<1x8x32xf32> to vector<8x32xf32>
    %79 = vector.shape_cast %76 : vector<8x32xf32> to vector<1x8x32xf32>
    tpu.vector_store %arg8[%c0_28, %c0_29, %c0_30], %79 {strides = array<i32>} : memref<1x8x32xf32, #tpu.memory_space<vmem>>, vector<1x8x32xf32>,
    return
  }
  func.func @transform_0(%arg0: i32) -> (i32, i32, i32) {
    %c0_i32 = arith.constant 0 : i32
    %c0_i32_0 = arith.constant 0 : i32
    %c0_i32_1 = arith.constant 0 : i32
    return %arg0, %c0_i32, %c0_i32_0 : i32, i32, i32
  }
  func.func @transform_1(%arg0: i32) -> (i32, i32) {
    %c0_i32 = arith.constant 0 : i32
    %c0_i32_0 = arith.constant 0 : i32
    %c0_i32_1 = arith.constant 0 : i32
    return %c0_i32, %c0_i32_0 : i32, i32
  }
  func.func @transform_2(%arg0: i32) -> (i32, i32) {
    %c0_i32 = arith.constant 0 : i32
    %c0_i32_0 = arith.constant 0 : i32
    %c0_i32_1 = arith.constant 0 : i32
    return %c0_i32, %c0_i32_0 : i32, i32
  }
  func.func @transform_3(%arg0: i32) -> (i32, i32) {
    %c0_i32 = arith.constant 0 : i32
    %c0_i32_0 = arith.constant 0 : i32
    %c0_i32_1 = arith.constant 0 : i32
    return %c0_i32, %c0_i32_0 : i32, i32
  }
  func.func @transform_4(%arg0: i32) -> (i32, i32) {
    %c0_i32 = arith.constant 0 : i32
    %c0_i32_0 = arith.constant 0 : i32
    %c0_i32_1 = arith.constant 0 : i32
    return %c0_i32, %c0_i32_0 : i32, i32
  }
  func.func @transform_5(%arg0: i32) -> (i32, i32) {
    %c0_i32 = arith.constant 0 : i32
    %c0_i32_0 = arith.constant 0 : i32
    %c0_i32_1 = arith.constant 0 : i32
    return %c0_i32, %c0_i32_0 : i32, i32
  }
  func.func @transform_6(%arg0: i32) -> (i32, i32) {
    %c0_i32 = arith.constant 0 : i32
    %c0_i32_0 = arith.constant 0 : i32
    %c0_i32_1 = arith.constant 0 : i32
    return %c0_i32, %c0_i32_0 : i32, i32
  }
  func.func @transform_7(%arg0: i32) -> (i32, i32, i32) {
    %c0_i32 = arith.constant 0 : i32
    %c0_i32_0 = arith.constant 0 : i32
    %c0_i32_1 = arith.constant 0 : i32
    return %arg0, %c0_i32, %c0_i32_0 : i32, i32, i32
  }
}

module attributes {stable_mosaic.version = 11 : i64} {
  func.func @_lstm_stack_kernel(%arg0: memref<8x2x32xf32, #tpu.memory_space<vmem>>, %arg1: memref<1x32xf32, #tpu.memory_space<vmem>>, %arg2: memref<1x32xf32, #tpu.memory_space<vmem>>, %arg3: memref<2x32x128xf32, #tpu.memory_space<vmem>>, %arg4: memref<2x32x128xf32, #tpu.memory_space<vmem>>, %arg5: memref<2x1x128xf32, #tpu.memory_space<vmem>>, %arg6: memref<8x2x32xf32, #tpu.memory_space<vmem>>, %arg7: memref<2x2x32xf32, #tpu.memory_space<vmem>>, %arg8: memref<2x2x32xf32, #tpu.memory_space<vmem>>, %arg9: memref<8x2x128xf32, #tpu.memory_space<vmem>>) attributes {dimension_semantics = [], scalar_prefetch = 0 : i64, scratch_operands = 1 : i64, tpu.core_type = #tpu.core_type<tc>} {
    %c0 = arith.constant 0 : index
    %c0_0 = arith.constant 0 : index
    %c0_1 = arith.constant 0 : index
    %0 = vector.load %arg0[%c0, %c0_0, %c0_1] : memref<8x2x32xf32, #tpu.memory_space<vmem>>, vector<8x2x32xf32>
    %1 = vector.shape_cast %0 : vector<8x2x32xf32> to vector<16x32xf32>
    %cst = arith.constant dense<0.000000e+00> : vector<16xf32>
    %2 = vector.multi_reduction <add>, %1, %cst [1] : vector<16x32xf32> to vector<16xf32>
    %3 = vector.shape_cast %2 : vector<16xf32> to vector<16x1xf32>
    %cst_2 = arith.constant 3.200000e+01 : f32
    %4 = vector.broadcast %cst_2 : f32 to vector<16x1xf32>
    %5 = arith.divf %3, %4 : vector<16x1xf32>
    %6 = vector.broadcast %5 : vector<16x1xf32> to vector<16x32xf32>
    %7 = arith.subf %1, %6 : vector<16x32xf32>
    %8 = arith.mulf %7, %7 : vector<16x32xf32>
    %cst_3 = arith.constant dense<0.000000e+00> : vector<16xf32>
    %9 = vector.multi_reduction <add>, %8, %cst_3 [1] : vector<16x32xf32> to vector<16xf32>
    %10 = vector.shape_cast %9 : vector<16xf32> to vector<16x1xf32>
    %cst_4 = arith.constant 3.200000e+01 : f32
    %11 = vector.broadcast %cst_4 : f32 to vector<16x1xf32>
    %12 = arith.divf %10, %11 : vector<16x1xf32>
    %13 = vector.broadcast %5 : vector<16x1xf32> to vector<16x32xf32>
    %14 = arith.subf %1, %13 : vector<16x32xf32>
    %cst_5 = arith.constant 9.99999974E-6 : f32
    %15 = vector.broadcast %cst_5 : f32 to vector<16x1xf32>
    %16 = arith.addf %12, %15 : vector<16x1xf32>
    %17 = math.rsqrt %16 : vector<16x1xf32>
    %18 = vector.broadcast %17 : vector<16x1xf32> to vector<16x32xf32>
    %19 = arith.mulf %14, %18 : vector<16x32xf32>
    %c0_6 = arith.constant 0 : index
    %c0_7 = arith.constant 0 : index
    %20 = vector.load %arg1[%c0_6, %c0_7] : memref<1x32xf32, #tpu.memory_space<vmem>>, vector<1x32xf32>
    %21 = vector.broadcast %20 : vector<1x32xf32> to vector<16x32xf32>
    %22 = arith.mulf %19, %21 : vector<16x32xf32>
    %c0_8 = arith.constant 0 : index
    %c0_9 = arith.constant 0 : index
    %23 = vector.load %arg2[%c0_8, %c0_9] : memref<1x32xf32, #tpu.memory_space<vmem>>, vector<1x32xf32>
    %24 = vector.broadcast %23 : vector<1x32xf32> to vector<16x32xf32>
    %25 = arith.addf %22, %24 : vector<16x32xf32>
    %c0_10 = arith.constant 0 : index
    %c0_11 = arith.constant 0 : index
    %c0_12 = arith.constant 0 : index
    %26 = vector.load %arg3[%c0_10, %c0_11, %c0_12] : memref<2x32x128xf32, #tpu.memory_space<vmem>>, vector<1x32x128xf32>
    %27 = vector.shape_cast %26 : vector<1x32x128xf32> to vector<32x128xf32>
    %c0_13 = arith.constant 0 : index
    %c0_14 = arith.constant 0 : index
    %c0_15 = arith.constant 0 : index
    %28 = vector.load %arg4[%c0_13, %c0_14, %c0_15] : memref<2x32x128xf32, #tpu.memory_space<vmem>>, vector<1x32x128xf32>
    %29 = vector.shape_cast %28 : vector<1x32x128xf32> to vector<32x128xf32>
    %c0_16 = arith.constant 0 : index
    %c0_17 = arith.constant 0 : index
    %c0_18 = arith.constant 0 : index
    %30 = vector.load %arg5[%c0_16, %c0_17, %c0_18] : memref<2x1x128xf32, #tpu.memory_space<vmem>>, vector<1x1x128xf32>
    %31 = vector.shape_cast %30 : vector<1x1x128xf32> to vector<1x128xf32>
    %cst_19 = arith.constant dense<0.000000e+00> : vector<16x128xf32>
    %32 = tpu.matmul %25, %27, %cst_19 {dimension_numbers = #tpu.dot_dimension_numbers<[1], [0], [0], [1], [0, 0, 1, 1], [], []>} : vector<16x32xf32>, vector<32x128xf32>, vector<16x128xf32> -> vector<16x128xf32>
    %33 = vector.broadcast %31 : vector<1x128xf32> to vector<16x128xf32>
    %34 = arith.addf %32, %33 : vector<16x128xf32>
    %35 = vector.shape_cast %34 : vector<16x128xf32> to vector<8x2x128xf32>
    %c0_20 = arith.constant 0 : index
    %c0_21 = arith.constant 0 : index
    %c0_22 = arith.constant 0 : index
    %36 = vector.load %arg9[%c0_20, %c0_21, %c0_22] : memref<8x2x128xf32, #tpu.memory_space<vmem>>, vector<8x2x128xf32>
    tpu.vector_store %arg9[%c0_20, %c0_21, %c0_22], %35 {strides = array<i32>} : memref<8x2x128xf32, #tpu.memory_space<vmem>>, vector<8x2x128xf32>,
    %cst_23 = arith.constant 0.000000e+00 : f32
    %37 = vector.broadcast %cst_23 : f32 to vector<2x32xf32>
    %cst_24 = arith.constant 0.000000e+00 : f32
    %38 = vector.broadcast %cst_24 : f32 to vector<2x32xf32>
    %c0_i32 = arith.constant 0 : i32
    %c8_i32 = arith.constant 8 : i32
    %39 = arith.addi %c0_i32, %c8_i32 : i32
    %c1_i32 = arith.constant 1 : i32
    %40:2 = scf.for %arg10 = %c0_i32 to %39 step %c1_i32 iter_args(%arg11 = %37, %arg12 = %38) -> (vector<2x32xf32>, vector<2x32xf32>)  : i32 {
      %74 = arith.index_cast %arg10 : i32 to index
      %c0_66 = arith.constant 0 : index
      %c0_67 = arith.constant 0 : index
      %75 = vector.load %arg9[%74, %c0_66, %c0_67] : memref<8x2x128xf32, #tpu.memory_space<vmem>>, vector<1x2x128xf32>
      %76 = vector.shape_cast %75 : vector<1x2x128xf32> to vector<2x128xf32>
      %cst_68 = arith.constant dense<0.000000e+00> : vector<2x128xf32>
      %77 = tpu.matmul %arg11, %29, %cst_68 {dimension_numbers = #tpu.dot_dimension_numbers<[1], [0], [0], [1], [0, 0, 1, 1], [], []>} : vector<2x32xf32>, vector<32x128xf32>, vector<2x128xf32> -> vector<2x128xf32>
      %78 = arith.addf %76, %77 : vector<2x128xf32>
      %79 = vector.extract_strided_slice %78 {offsets = [0, 0], sizes = [2, 32], strides = [1, 1]} : vector<2x128xf32> to vector<2x32xf32>
      %80 = arith.negf %79 : vector<2x32xf32>
      %81 = math.exp %80 : vector<2x32xf32>
      %cst_69 = arith.constant 1.000000e+00 : f32
      %82 = vector.broadcast %cst_69 : f32 to vector<2x32xf32>
      %83 = arith.addf %82, %81 : vector<2x32xf32>
      %84 = arith.divf %82, %83 : vector<2x32xf32>
      %85 = vector.extract_strided_slice %78 {offsets = [0, 32], sizes = [2, 32], strides = [1, 1]} : vector<2x128xf32> to vector<2x32xf32>
      %86 = arith.negf %85 : vector<2x32xf32>
      %87 = math.exp %86 : vector<2x32xf32>
      %cst_70 = arith.constant 1.000000e+00 : f32
      %88 = vector.broadcast %cst_70 : f32 to vector<2x32xf32>
      %89 = arith.addf %88, %87 : vector<2x32xf32>
      %90 = arith.divf %88, %89 : vector<2x32xf32>
      %91 = vector.extract_strided_slice %78 {offsets = [0, 64], sizes = [2, 32], strides = [1, 1]} : vector<2x128xf32> to vector<2x32xf32>
      %92 = math.tanh %91 : vector<2x32xf32>
      %93 = vector.extract_strided_slice %78 {offsets = [0, 96], sizes = [2, 32], strides = [1, 1]} : vector<2x128xf32> to vector<2x32xf32>
      %94 = arith.negf %93 : vector<2x32xf32>
      %95 = math.exp %94 : vector<2x32xf32>
      %cst_71 = arith.constant 1.000000e+00 : f32
      %96 = vector.broadcast %cst_71 : f32 to vector<2x32xf32>
      %97 = arith.addf %96, %95 : vector<2x32xf32>
      %98 = arith.divf %96, %97 : vector<2x32xf32>
      %99 = arith.mulf %90, %arg12 : vector<2x32xf32>
      %100 = arith.mulf %84, %92 : vector<2x32xf32>
      %101 = arith.addf %99, %100 : vector<2x32xf32>
      %102 = math.tanh %101 : vector<2x32xf32>
      %103 = arith.mulf %98, %102 : vector<2x32xf32>
      %104 = arith.index_cast %arg10 : i32 to index
      %c0_72 = arith.constant 0 : index
      %c0_73 = arith.constant 0 : index
      %105 = vector.load %arg6[%104, %c0_72, %c0_73] : memref<8x2x32xf32, #tpu.memory_space<vmem>>, vector<1x2x32xf32>
      %106 = vector.shape_cast %105 : vector<1x2x32xf32> to vector<2x32xf32>
      %107 = vector.shape_cast %103 : vector<2x32xf32> to vector<1x2x32xf32>
      tpu.vector_store %arg6[%104, %c0_72, %c0_73], %107 {strides = array<i32>} : memref<8x2x32xf32, #tpu.memory_space<vmem>>, vector<1x2x32xf32>,
      scf.yield %103, %101 : vector<2x32xf32>, vector<2x32xf32>
    }
    %c8_i32_25 = arith.constant 8 : i32
    %c0_26 = arith.constant 0 : index
    %c0_27 = arith.constant 0 : index
    %c0_28 = arith.constant 0 : index
    %41 = vector.load %arg7[%c0_26, %c0_27, %c0_28] : memref<2x2x32xf32, #tpu.memory_space<vmem>>, vector<1x2x32xf32>
    %42 = vector.shape_cast %41 : vector<1x2x32xf32> to vector<2x32xf32>
    %43 = vector.shape_cast %40#0 : vector<2x32xf32> to vector<1x2x32xf32>
    tpu.vector_store %arg7[%c0_26, %c0_27, %c0_28], %43 {strides = array<i32>} : memref<2x2x32xf32, #tpu.memory_space<vmem>>, vector<1x2x32xf32>,
    %c0_29 = arith.constant 0 : index
    %c0_30 = arith.constant 0 : index
    %c0_31 = arith.constant 0 : index
    %44 = vector.load %arg8[%c0_29, %c0_30, %c0_31] : memref<2x2x32xf32, #tpu.memory_space<vmem>>, vector<1x2x32xf32>
    %45 = vector.shape_cast %44 : vector<1x2x32xf32> to vector<2x32xf32>
    %46 = vector.shape_cast %40#1 : vector<2x32xf32> to vector<1x2x32xf32>
    tpu.vector_store %arg8[%c0_29, %c0_30, %c0_31], %46 {strides = array<i32>} : memref<2x2x32xf32, #tpu.memory_space<vmem>>, vector<1x2x32xf32>,
    %c0_32 = arith.constant 0 : index
    %c0_33 = arith.constant 0 : index
    %c0_34 = arith.constant 0 : index
    %47 = vector.load %arg6[%c0_32, %c0_33, %c0_34] : memref<8x2x32xf32, #tpu.memory_space<vmem>>, vector<8x2x32xf32>
    %48 = vector.shape_cast %47 : vector<8x2x32xf32> to vector<16x32xf32>
    %c1 = arith.constant 1 : index
    %c0_35 = arith.constant 0 : index
    %c0_36 = arith.constant 0 : index
    %49 = vector.load %arg3[%c1, %c0_35, %c0_36] : memref<2x32x128xf32, #tpu.memory_space<vmem>>, vector<1x32x128xf32>
    %50 = vector.shape_cast %49 : vector<1x32x128xf32> to vector<32x128xf32>
    %c1_37 = arith.constant 1 : index
    %c0_38 = arith.constant 0 : index
    %c0_39 = arith.constant 0 : index
    %51 = vector.load %arg4[%c1_37, %c0_38, %c0_39] : memref<2x32x128xf32, #tpu.memory_space<vmem>>, vector<1x32x128xf32>
    %52 = vector.shape_cast %51 : vector<1x32x128xf32> to vector<32x128xf32>
    %c1_40 = arith.constant 1 : index
    %c0_41 = arith.constant 0 : index
    %c0_42 = arith.constant 0 : index
    %53 = vector.load %arg5[%c1_40, %c0_41, %c0_42] : memref<2x1x128xf32, #tpu.memory_space<vmem>>, vector<1x1x128xf32>
    %54 = vector.shape_cast %53 : vector<1x1x128xf32> to vector<1x128xf32>
    %cst_43 = arith.constant dense<0.000000e+00> : vector<16x128xf32>
    %55 = tpu.matmul %48, %50, %cst_43 {dimension_numbers = #tpu.dot_dimension_numbers<[1], [0], [0], [1], [0, 0, 1, 1], [], []>} : vector<16x32xf32>, vector<32x128xf32>, vector<16x128xf32> -> vector<16x128xf32>
    %56 = vector.broadcast %54 : vector<1x128xf32> to vector<16x128xf32>
    %57 = arith.addf %55, %56 : vector<16x128xf32>
    %58 = vector.shape_cast %57 : vector<16x128xf32> to vector<8x2x128xf32>
    %c0_44 = arith.constant 0 : index
    %c0_45 = arith.constant 0 : index
    %c0_46 = arith.constant 0 : index
    %59 = vector.load %arg9[%c0_44, %c0_45, %c0_46] : memref<8x2x128xf32, #tpu.memory_space<vmem>>, vector<8x2x128xf32>
    tpu.vector_store %arg9[%c0_44, %c0_45, %c0_46], %58 {strides = array<i32>} : memref<8x2x128xf32, #tpu.memory_space<vmem>>, vector<8x2x128xf32>,
    %cst_47 = arith.constant 0.000000e+00 : f32
    %60 = vector.broadcast %cst_47 : f32 to vector<2x32xf32>
    %cst_48 = arith.constant 0.000000e+00 : f32
    %61 = vector.broadcast %cst_48 : f32 to vector<2x32xf32>
    %c0_i32_49 = arith.constant 0 : i32
    %c8_i32_50 = arith.constant 8 : i32
    %62 = arith.addi %c0_i32_49, %c8_i32_50 : i32
    %c1_i32_51 = arith.constant 1 : i32
    %63:2 = scf.for %arg10 = %c0_i32_49 to %62 step %c1_i32_51 iter_args(%arg11 = %60, %arg12 = %61) -> (vector<2x32xf32>, vector<2x32xf32>)  : i32 {
      %74 = arith.index_cast %arg10 : i32 to index
      %c0_66 = arith.constant 0 : index
      %c0_67 = arith.constant 0 : index
      %75 = vector.load %arg9[%74, %c0_66, %c0_67] : memref<8x2x128xf32, #tpu.memory_space<vmem>>, vector<1x2x128xf32>
      %76 = vector.shape_cast %75 : vector<1x2x128xf32> to vector<2x128xf32>
      %cst_68 = arith.constant dense<0.000000e+00> : vector<2x128xf32>
      %77 = tpu.matmul %arg11, %52, %cst_68 {dimension_numbers = #tpu.dot_dimension_numbers<[1], [0], [0], [1], [0, 0, 1, 1], [], []>} : vector<2x32xf32>, vector<32x128xf32>, vector<2x128xf32> -> vector<2x128xf32>
      %78 = arith.addf %76, %77 : vector<2x128xf32>
      %79 = vector.extract_strided_slice %78 {offsets = [0, 0], sizes = [2, 32], strides = [1, 1]} : vector<2x128xf32> to vector<2x32xf32>
      %80 = arith.negf %79 : vector<2x32xf32>
      %81 = math.exp %80 : vector<2x32xf32>
      %cst_69 = arith.constant 1.000000e+00 : f32
      %82 = vector.broadcast %cst_69 : f32 to vector<2x32xf32>
      %83 = arith.addf %82, %81 : vector<2x32xf32>
      %84 = arith.divf %82, %83 : vector<2x32xf32>
      %85 = vector.extract_strided_slice %78 {offsets = [0, 32], sizes = [2, 32], strides = [1, 1]} : vector<2x128xf32> to vector<2x32xf32>
      %86 = arith.negf %85 : vector<2x32xf32>
      %87 = math.exp %86 : vector<2x32xf32>
      %cst_70 = arith.constant 1.000000e+00 : f32
      %88 = vector.broadcast %cst_70 : f32 to vector<2x32xf32>
      %89 = arith.addf %88, %87 : vector<2x32xf32>
      %90 = arith.divf %88, %89 : vector<2x32xf32>
      %91 = vector.extract_strided_slice %78 {offsets = [0, 64], sizes = [2, 32], strides = [1, 1]} : vector<2x128xf32> to vector<2x32xf32>
      %92 = math.tanh %91 : vector<2x32xf32>
      %93 = vector.extract_strided_slice %78 {offsets = [0, 96], sizes = [2, 32], strides = [1, 1]} : vector<2x128xf32> to vector<2x32xf32>
      %94 = arith.negf %93 : vector<2x32xf32>
      %95 = math.exp %94 : vector<2x32xf32>
      %cst_71 = arith.constant 1.000000e+00 : f32
      %96 = vector.broadcast %cst_71 : f32 to vector<2x32xf32>
      %97 = arith.addf %96, %95 : vector<2x32xf32>
      %98 = arith.divf %96, %97 : vector<2x32xf32>
      %99 = arith.mulf %90, %arg12 : vector<2x32xf32>
      %100 = arith.mulf %84, %92 : vector<2x32xf32>
      %101 = arith.addf %99, %100 : vector<2x32xf32>
      %102 = math.tanh %101 : vector<2x32xf32>
      %103 = arith.mulf %98, %102 : vector<2x32xf32>
      %104 = arith.index_cast %arg10 : i32 to index
      %c0_72 = arith.constant 0 : index
      %c0_73 = arith.constant 0 : index
      %105 = vector.load %arg6[%104, %c0_72, %c0_73] : memref<8x2x32xf32, #tpu.memory_space<vmem>>, vector<1x2x32xf32>
      %106 = vector.shape_cast %105 : vector<1x2x32xf32> to vector<2x32xf32>
      %107 = vector.shape_cast %103 : vector<2x32xf32> to vector<1x2x32xf32>
      tpu.vector_store %arg6[%104, %c0_72, %c0_73], %107 {strides = array<i32>} : memref<8x2x32xf32, #tpu.memory_space<vmem>>, vector<1x2x32xf32>,
      scf.yield %103, %101 : vector<2x32xf32>, vector<2x32xf32>
    }
    %c8_i32_52 = arith.constant 8 : i32
    %c1_53 = arith.constant 1 : index
    %c0_54 = arith.constant 0 : index
    %c0_55 = arith.constant 0 : index
    %64 = vector.load %arg7[%c1_53, %c0_54, %c0_55] : memref<2x2x32xf32, #tpu.memory_space<vmem>>, vector<1x2x32xf32>
    %65 = vector.shape_cast %64 : vector<1x2x32xf32> to vector<2x32xf32>
    %66 = vector.shape_cast %63#0 : vector<2x32xf32> to vector<1x2x32xf32>
    tpu.vector_store %arg7[%c1_53, %c0_54, %c0_55], %66 {strides = array<i32>} : memref<2x2x32xf32, #tpu.memory_space<vmem>>, vector<1x2x32xf32>,
    %c1_56 = arith.constant 1 : index
    %c0_57 = arith.constant 0 : index
    %c0_58 = arith.constant 0 : index
    %67 = vector.load %arg8[%c1_56, %c0_57, %c0_58] : memref<2x2x32xf32, #tpu.memory_space<vmem>>, vector<1x2x32xf32>
    %68 = vector.shape_cast %67 : vector<1x2x32xf32> to vector<2x32xf32>
    %69 = vector.shape_cast %63#1 : vector<2x32xf32> to vector<1x2x32xf32>
    tpu.vector_store %arg8[%c1_56, %c0_57, %c0_58], %69 {strides = array<i32>} : memref<2x2x32xf32, #tpu.memory_space<vmem>>, vector<1x2x32xf32>,
    %c0_59 = arith.constant 0 : index
    %c0_60 = arith.constant 0 : index
    %c0_61 = arith.constant 0 : index
    %70 = vector.load %arg6[%c0_59, %c0_60, %c0_61] : memref<8x2x32xf32, #tpu.memory_space<vmem>>, vector<8x2x32xf32>
    %cst_62 = arith.constant 0.000000e+00 : f32
    %71 = vector.broadcast %cst_62 : f32 to vector<8x2x32xf32>
    %72 = arith.maximumf %70, %71 : vector<8x2x32xf32>
    %c0_63 = arith.constant 0 : index
    %c0_64 = arith.constant 0 : index
    %c0_65 = arith.constant 0 : index
    %73 = vector.load %arg6[%c0_63, %c0_64, %c0_65] : memref<8x2x32xf32, #tpu.memory_space<vmem>>, vector<8x2x32xf32>
    tpu.vector_store %arg6[%c0_63, %c0_64, %c0_65], %72 {strides = array<i32>} : memref<8x2x32xf32, #tpu.memory_space<vmem>>, vector<8x2x32xf32>,
    return
  }
}

module attributes {stable_mosaic.version = 11 : i64} {
  func.func @_att_boom_kernel(%arg0: i32, %arg1: memref<1x8x32xf32, #tpu.memory_space<vmem>>, %arg2: memref<32x96xf32, #tpu.memory_space<vmem>>, %arg3: memref<1x96xf32, #tpu.memory_space<vmem>>, %arg4: memref<32x64xf32, #tpu.memory_space<vmem>>, %arg5: memref<1x64xf32, #tpu.memory_space<vmem>>, %arg6: memref<64x32xf32, #tpu.memory_space<vmem>>, %arg7: memref<1x32xf32, #tpu.memory_space<vmem>>, %arg8: memref<1x8x32xf32, #tpu.memory_space<vmem>>) attributes {dimension_semantics = [#tpu.dimension_semantics<parallel>], iteration_bounds = array<i64: 2>, scalar_prefetch = 0 : i64, scratch_operands = 0 : i64, tpu.core_type = #tpu.core_type<tc>, window_params = [{transform_indices = @transform_0, window_bounds = array<i64: 1, 8, 32>}, {pipeline_mode = #tpu.pipeline_mode<synchronous>, transform_indices = @transform_1, window_bounds = array<i64: 32, 96>}, {pipeline_mode = #tpu.pipeline_mode<synchronous>, transform_indices = @transform_2, window_bounds = array<i64: 1, 96>}, {pipeline_mode = #tpu.pipeline_mode<synchronous>, transform_indices = @transform_3, window_bounds = array<i64: 32, 64>}, {pipeline_mode = #tpu.pipeline_mode<synchronous>, transform_indices = @transform_4, window_bounds = array<i64: 1, 64>}, {pipeline_mode = #tpu.pipeline_mode<synchronous>, transform_indices = @transform_5, window_bounds = array<i64: 64, 32>}, {pipeline_mode = #tpu.pipeline_mode<synchronous>, transform_indices = @transform_6, window_bounds = array<i64: 1, 32>}, {transform_indices = @transform_7, window_bounds = array<i64: 1, 8, 32>}]} {
    %c0 = arith.constant 0 : index
    %c0_0 = arith.constant 0 : index
    %c0_1 = arith.constant 0 : index
    %0 = vector.load %arg1[%c0, %c0_0, %c0_1] : memref<1x8x32xf32, #tpu.memory_space<vmem>>, vector<1x8x32xf32>
    %1 = vector.shape_cast %0 : vector<1x8x32xf32> to vector<8x32xf32>
    %cst = arith.constant dense<0.000000e+00> : vector<8xf32>
    %2 = vector.multi_reduction <add>, %1, %cst [1] : vector<8x32xf32> to vector<8xf32>
    %3 = vector.shape_cast %2 : vector<8xf32> to vector<8x1xf32>
    %cst_2 = arith.constant 3.200000e+01 : f32
    %4 = vector.broadcast %cst_2 : f32 to vector<8x1xf32>
    %5 = arith.divf %3, %4 : vector<8x1xf32>
    %6 = vector.broadcast %5 : vector<8x1xf32> to vector<8x32xf32>
    %7 = arith.subf %1, %6 : vector<8x32xf32>
    %8 = arith.mulf %7, %7 : vector<8x32xf32>
    %cst_3 = arith.constant dense<0.000000e+00> : vector<8xf32>
    %9 = vector.multi_reduction <add>, %8, %cst_3 [1] : vector<8x32xf32> to vector<8xf32>
    %10 = vector.shape_cast %9 : vector<8xf32> to vector<8x1xf32>
    %cst_4 = arith.constant 3.200000e+01 : f32
    %11 = vector.broadcast %cst_4 : f32 to vector<8x1xf32>
    %12 = arith.divf %10, %11 : vector<8x1xf32>
    %13 = vector.broadcast %5 : vector<8x1xf32> to vector<8x32xf32>
    %14 = arith.subf %1, %13 : vector<8x32xf32>
    %cst_5 = arith.constant 9.99999974E-6 : f32
    %15 = vector.broadcast %cst_5 : f32 to vector<8x1xf32>
    %16 = arith.addf %12, %15 : vector<8x1xf32>
    %17 = math.rsqrt %16 : vector<8x1xf32>
    %18 = vector.broadcast %17 : vector<8x1xf32> to vector<8x32xf32>
    %19 = arith.mulf %14, %18 : vector<8x32xf32>
    %c0_6 = arith.constant 0 : index
    %c0_7 = arith.constant 0 : index
    %20 = vector.load %arg3[%c0_6, %c0_7] : memref<1x96xf32, #tpu.memory_space<vmem>>, vector<1x96xf32>
    %c0_8 = arith.constant 0 : index
    %c0_9 = arith.constant 0 : index
    %21 = vector.load %arg2[%c0_8, %c0_9] : memref<32x96xf32, #tpu.memory_space<vmem>>, vector<32x96xf32>
    %cst_10 = arith.constant dense<0.000000e+00> : vector<8x96xf32>
    %22 = tpu.matmul %19, %21, %cst_10 {dimension_numbers = #tpu.dot_dimension_numbers<[1], [0], [0], [1], [0, 0, 1, 1], [], []>} : vector<8x32xf32>, vector<32x96xf32>, vector<8x96xf32> -> vector<8x96xf32>
    %23 = vector.broadcast %20 : vector<1x96xf32> to vector<8x96xf32>
    %24 = arith.addf %22, %23 : vector<8x96xf32>
    %25 = vector.extract_strided_slice %24 {offsets = [0, 0], sizes = [8, 32], strides = [1, 1]} : vector<8x96xf32> to vector<8x32xf32>
    %26 = vector.extract_strided_slice %24 {offsets = [0, 32], sizes = [8, 32], strides = [1, 1]} : vector<8x96xf32> to vector<8x32xf32>
    %27 = vector.extract_strided_slice %24 {offsets = [0, 64], sizes = [8, 32], strides = [1, 1]} : vector<8x96xf32> to vector<8x32xf32>
    %cst_11 = arith.constant 0.000000e+00 : f32
    %28 = vector.broadcast %cst_11 : f32 to vector<8x32xf32>
    %29 = arith.maximumf %26, %28 : vector<8x32xf32>
    %30 = arith.mulf %29, %27 : vector<8x32xf32>
    %31 = tpu.iota {dimensions = array<i32: 0>} : vector<8x8xi32>
    %32 = tpu.iota {dimensions = array<i32: 1>} : vector<8x8xi32>
    %33 = arith.subi %31, %32 : vector<8x8xi32>
    %c0_i32 = arith.constant 0 : i32
    %34 = vector.broadcast %c0_i32 : i32 to vector<8x8xi32>
    %35 = arith.cmpi sge, %33, %34 : vector<8x8xi32>
    %c20_i32 = arith.constant 20 : i32
    %36 = vector.broadcast %c20_i32 : i32 to vector<8x8xi32>
    %37 = arith.cmpi slt, %33, %36 : vector<8x8xi32>
    %38 = arith.andi %35, %37 : vector<8x8xi1>
    %39 = arith.extui %38 : vector<8x8xi1> to vector<8x8xi32>
    %40 = arith.sitofp %39 : vector<8x8xi32> to vector<8x8xf32>
    %cst_12 = arith.constant dense<0.000000e+00> : vector<8x32xf32>
    %41 = tpu.matmul %40, %30, %cst_12 {dimension_numbers = #tpu.dot_dimension_numbers<[1], [0], [0], [1], [0, 0, 1, 1], [], []>} : vector<8x8xf32>, vector<8x32xf32>, vector<8x32xf32> -> vector<8x32xf32>
    %42 = vector.extract_strided_slice %20 {offsets = [0, 32], sizes = [1, 32], strides = [1, 1]} : vector<1x96xf32> to vector<1x32xf32>
    %cst_13 = arith.constant 0.000000e+00 : f32
    %43 = vector.broadcast %cst_13 : f32 to vector<1x32xf32>
    %44 = arith.maximumf %42, %43 : vector<1x32xf32>
    %45 = vector.extract_strided_slice %20 {offsets = [0, 64], sizes = [1, 32], strides = [1, 1]} : vector<1x96xf32> to vector<1x32xf32>
    %46 = arith.mulf %44, %45 : vector<1x32xf32>
    %47 = tpu.iota {dimensions = array<i32: 0>} : vector<8x32xi32>
    %c19_i32 = arith.constant 19 : i32
    %48 = vector.broadcast %c19_i32 : i32 to vector<8x32xi32>
    %49 = arith.subi %48, %47 : vector<8x32xi32>
    %c0_i32_14 = arith.constant 0 : i32
    %50 = vector.broadcast %c0_i32_14 : i32 to vector<8x32xi32>
    %51 = arith.maxsi %49, %50 : vector<8x32xi32>
    %52 = arith.sitofp %51 : vector<8x32xi32> to vector<8x32xf32>
    %53 = vector.broadcast %46 : vector<1x32xf32> to vector<8x32xf32>
    %54 = arith.mulf %52, %53 : vector<8x32xf32>
    %55 = arith.addf %41, %54 : vector<8x32xf32>
    %cst_15 = arith.constant 0.000000e+00 : f32
    %56 = vector.broadcast %cst_15 : f32 to vector<8x32xf32>
    %57 = arith.maximumf %25, %56 : vector<8x32xf32>
    %58 = arith.mulf %57, %55 : vector<8x32xf32>
    %c0_16 = arith.constant 0 : index
    %c0_17 = arith.constant 0 : index
    %59 = vector.load %arg4[%c0_16, %c0_17] : memref<32x64xf32, #tpu.memory_space<vmem>>, vector<32x64xf32>
    %cst_18 = arith.constant dense<0.000000e+00> : vector<8x64xf32>
    %60 = tpu.matmul %58, %59, %cst_18 {dimension_numbers = #tpu.dot_dimension_numbers<[1], [0], [0], [1], [0, 0, 1, 1], [], []>} : vector<8x32xf32>, vector<32x64xf32>, vector<8x64xf32> -> vector<8x64xf32>
    %c0_19 = arith.constant 0 : index
    %c0_20 = arith.constant 0 : index
    %61 = vector.load %arg5[%c0_19, %c0_20] : memref<1x64xf32, #tpu.memory_space<vmem>>, vector<1x64xf32>
    %62 = vector.broadcast %61 : vector<1x64xf32> to vector<8x64xf32>
    %63 = arith.addf %60, %62 : vector<8x64xf32>
    %cst_21 = arith.constant 1.702000e+00 : f32
    %64 = vector.broadcast %cst_21 : f32 to vector<8x64xf32>
    %65 = arith.mulf %64, %63 : vector<8x64xf32>
    %66 = arith.negf %65 : vector<8x64xf32>
    %67 = math.exp %66 : vector<8x64xf32>
    %cst_22 = arith.constant 1.000000e+00 : f32
    %68 = vector.broadcast %cst_22 : f32 to vector<8x64xf32>
    %69 = arith.addf %68, %67 : vector<8x64xf32>
    %70 = arith.divf %68, %69 : vector<8x64xf32>
    %71 = arith.mulf %63, %70 : vector<8x64xf32>
    %c0_23 = arith.constant 0 : index
    %c0_24 = arith.constant 0 : index
    %72 = vector.load %arg6[%c0_23, %c0_24] : memref<64x32xf32, #tpu.memory_space<vmem>>, vector<64x32xf32>
    %cst_25 = arith.constant dense<0.000000e+00> : vector<8x32xf32>
    %73 = tpu.matmul %71, %72, %cst_25 {dimension_numbers = #tpu.dot_dimension_numbers<[1], [0], [0], [1], [0, 0, 1, 1], [], []>} : vector<8x64xf32>, vector<64x32xf32>, vector<8x32xf32> -> vector<8x32xf32>
    %c0_26 = arith.constant 0 : index
    %c0_27 = arith.constant 0 : index
    %74 = vector.load %arg7[%c0_26, %c0_27] : memref<1x32xf32, #tpu.memory_space<vmem>>, vector<1x32xf32>
    %75 = vector.broadcast %74 : vector<1x32xf32> to vector<8x32xf32>
    %76 = arith.addf %73, %75 : vector<8x32xf32>
    %c0_28 = arith.constant 0 : index
    %c0_29 = arith.constant 0 : index
    %c0_30 = arith.constant 0 : index
    %77 = vector.load %arg8[%c0_28, %c0_29, %c0_30] : memref<1x8x32xf32, #tpu.memory_space<vmem>>, vector<1x8x32xf32>
    %78 = vector.shape_cast %77 : vector<1x8x32xf32> to vector<8x32xf32>
    %79 = vector.shape_cast %76 : vector<8x32xf32> to vector<1x8x32xf32>
    tpu.vector_store %arg8[%c0_28, %c0_29, %c0_30], %79 {strides = array<i32>} : memref<1x8x32xf32, #tpu.memory_space<vmem>>, vector<1x8x32xf32>,
    return
  }
  func.func @transform_0(%arg0: i32) -> (i32, i32, i32) {
    %c0_i32 = arith.constant 0 : i32
    %c0_i32_0 = arith.constant 0 : i32
    %c0_i32_1 = arith.constant 0 : i32
    return %arg0, %c0_i32, %c0_i32_0 : i32, i32, i32
  }
  func.func @transform_1(%arg0: i32) -> (i32, i32) {
    %c0_i32 = arith.constant 0 : i32
    %c0_i32_0 = arith.constant 0 : i32
    %c0_i32_1 = arith.constant 0 : i32
    return %c0_i32, %c0_i32_0 : i32, i32
  }
  func.func @transform_2(%arg0: i32) -> (i32, i32) {
    %c0_i32 = arith.constant 0 : i32
    %c0_i32_0 = arith.constant 0 : i32
    %c0_i32_1 = arith.constant 0 : i32
    return %c0_i32, %c0_i32_0 : i32, i32
  }
  func.func @transform_3(%arg0: i32) -> (i32, i32) {
    %c0_i32 = arith.constant 0 : i32
    %c0_i32_0 = arith.constant 0 : i32
    %c0_i32_1 = arith.constant 0 : i32
    return %c0_i32, %c0_i32_0 : i32, i32
  }
  func.func @transform_4(%arg0: i32) -> (i32, i32) {
    %c0_i32 = arith.constant 0 : i32
    %c0_i32_0 = arith.constant 0 : i32
    %c0_i32_1 = arith.constant 0 : i32
    return %c0_i32, %c0_i32_0 : i32, i32
  }
  func.func @transform_5(%arg0: i32) -> (i32, i32) {
    %c0_i32 = arith.constant 0 : i32
    %c0_i32_0 = arith.constant 0 : i32
    %c0_i32_1 = arith.constant 0 : i32
    return %c0_i32, %c0_i32_0 : i32, i32
  }
  func.func @transform_6(%arg0: i32) -> (i32, i32) {
    %c0_i32 = arith.constant 0 : i32
    %c0_i32_0 = arith.constant 0 : i32
    %c0_i32_1 = arith.constant 0 : i32
    return %c0_i32, %c0_i32_0 : i32, i32
  }
  func.func @transform_7(%arg0: i32) -> (i32, i32, i32) {
    %c0_i32 = arith.constant 0 : i32
    %c0_i32_0 = arith.constant 0 : i32
    %c0_i32_1 = arith.constant 0 : i32
    return %arg0, %c0_i32, %c0_i32_0 : i32, i32, i32
  }
}

</mosaic_0001>

<llo_original>
// kernel: mplstm_forward.5
$region0: #{mplstm_forward.5}
  #allocation0 [shape = 'u32[]', space=smem, size = 0x4, offset = 0x4, fixed_abs, tag = 'smem constant byte address 0x4 - core index']
  #allocation1 [shape = 'u32[144,128]{1,0:T(1,128)}', space=vmem, size = 0x12000, scoped, tag = 'internal scratch']
  %s0 = inlined_call_operand.vmem [shape: f32[2,8,32], index: 0, kind: input, shape index: {}]
  %s1 = inlined_call_operand.vmem [shape: f32[32,96], index: 1, kind: input, shape index: {}]
  %s2 = inlined_call_operand.vmem [shape: f32[1,96], index: 2, kind: input, shape index: {}]
  %s3 = inlined_call_operand.vmem [shape: f32[32,64], index: 3, kind: input, shape index: {}]
  %s4 = inlined_call_operand.vmem [shape: f32[1,64], index: 4, kind: input, shape index: {}]
  %s5 = inlined_call_operand.vmem [shape: f32[64,32], index: 5, kind: input, shape index: {}]
  %s6 = inlined_call_operand.vmem [shape: f32[1,32], index: 6, kind: input, shape index: {}]
  %s7 = inlined_call_operand.vmem [shape: f32[2,8,32], index: 7, kind: output, shape index: {}]
  %s8 = sld [smem:[#allocation0]]
  $region61: #{mplstm_forward.5} parent=0
    _
  %s10 = ssub.s32 1, %s8
  %s11 = scalar_select 0, %s10, %s8
  loop: start=0, step=1, limit=4
  $region2: #{mplstm_forward.5} parent=0 // loop_pre_header
    _
  $region3: #{mplstm_forward.5} parent=0 // loop_header
    %s13 = sphi 0, %s17
    %p14 = scmp.ge.s32.totalorder %s13, 4
    %s23 = sphi 0, %s25
    %s26 = sphi 0, %s23
    %s27 = sphi 0, %s26
    %s43 = sphi 0, %s27
    %s47 = sphi 0, %s47
    %s49 = sphi 0, %s47
    %s50 = sphi 0, %s49
    %s64 = sphi 0, %s50
    %s68 = sphi 0, %s68
    %s70 = sphi 0, %s68
    %s71 = sphi 0, %s70
    %s85 = sphi 0, %s71
    %s89 = sphi 0, %s89
    %s91 = sphi 0, %s89
    %s92 = sphi 0, %s91
    %s106 = sphi 0, %s92
    %s110 = sphi 0, %s110
    %s112 = sphi 0, %s110
    %s113 = sphi 0, %s112
    %s127 = sphi 0, %s113
    %s131 = sphi 0, %s131
    %s133 = sphi 0, %s131
    %s134 = sphi 0, %s133
    %s148 = sphi 0, %s134
    %s152 = sphi 0, %s152
    %s154 = sphi 0, %s152
    %s155 = sphi 0, %s154
    %s169 = sphi 0, %s155
    %s175 = sphi 0, %s177
    %s178 = sphi 0, %s175
    %s179 = sphi 0, %s178
    %s195 = sphi 0, %s179
  $region4: #{mplstm_forward.5} parent=0 // loop_header_branch
    %16 = sbr.rel (%p14) target = $region8
  $region5: #{mplstm_forward.5} parent=0 // loop_body
    %s18 = ssub.s32 %s13, 1
    %s19 = ssub.s32 %s13, 2
    %s20 = sadd.s32 %s13, 1
    %s21 = ssub.s32 %s13, %s20
    %p22 = scmp.eq.s32.totalorder %s21, 0
    %s24 = sadd.s32 %s23, 1
    %s25 = scalar_select %p22, %s23, %s24
    %p28 = pneg %p22
    %p29 = scmp.eq.s32.totalorder %s13, 1
    %p30 = por %p28, %p29
    %p31 = scmp.ne.s32.totalorder %s23, %s26
    %p32 = scmp.eq.s32.totalorder %s13, 0
    %p33 = por %p31, %p32
    %p34 = scmp.ne.s32.totalorder %s23, %s26
    %p35 = scmp.eq.s32.totalorder %s18, 1
    %p36 = por %p34, %p35
    %p37 = scmp.ne.s32.totalorder %s26, %s27
    %p38 = scmp.eq.s32.totalorder %s18, 0
    %p39 = por %p37, %p38
    %p40 = scmp.ne.s32.totalorder %s26, %s27
    %p41 = scmp.eq.s32.totalorder %s19, 1
    %p42 = por %p40, %p41
    %p44 = scmp.ne.s32.totalorder %s27, %s43
    %p45 = scmp.eq.s32.totalorder %s19, 0
    %p46 = por %p44, %p45
    %s48 = sadd.s32 %s47, 1
    %p51 = scmp.eq.s32.totalorder %s13, 1
    %p52 = scmp.ne.s32.totalorder %s47, %s49
    %p53 = scmp.eq.s32.totalorder %s13, 0
    %p54 = por %p52, %p53
    %p55 = scmp.ne.s32.totalorder %s47, %s49
    %p56 = scmp.eq.s32.totalorder %s18, 1
    %p57 = por %p55, %p56
    %p58 = scmp.ne.s32.totalorder %s49, %s50
    %p59 = scmp.eq.s32.totalorder %s18, 0
    %p60 = por %p58, %p59
    %p61 = scmp.ne.s32.totalorder %s49, %s50
    %p62 = scmp.eq.s32.totalorder %s19, 1
    %p63 = por %p61, %p62
    %p65 = scmp.ne.s32.totalorder %s50, %s64
    %p66 = scmp.eq.s32.totalorder %s19, 0
    %p67 = por %p65, %p66
    %s69 = sadd.s32 %s68, 1
    %p72 = scmp.eq.s32.totalorder %s13, 1
    %p73 = scmp.ne.s32.totalorder %s68, %s70
    %p74 = scmp.eq.s32.totalorder %s13, 0
    %p75 = por %p73, %p74
    %p76 = scmp.ne.s32.totalorder %s68, %s70
    %p77 = scmp.eq.s32.totalorder %s18, 1
    %p78 = por %p76, %p77
    %p79 = scmp.ne.s32.totalorder %s70, %s71
    %p80 = scmp.eq.s32.totalorder %s18, 0
    %p81 = por %p79, %p80
    %p82 = scmp.ne.s32.totalorder %s70, %s71
    %p83 = scmp.eq.s32.totalorder %s19, 1
    %p84 = por %p82, %p83
    %p86 = scmp.ne.s32.totalorder %s71, %s85
    %p87 = scmp.eq.s32.totalorder %s19, 0
    %p88 = por %p86, %p87
    %s90 = sadd.s32 %s89, 1
    %p93 = scmp.eq.s32.totalorder %s13, 1
    %p94 = scmp.ne.s32.totalorder %s89, %s91
    %p95 = scmp.eq.s32.totalorder %s13, 0
    %p96 = por %p94, %p95
    %p97 = scmp.ne.s32.totalorder %s89, %s91
    %p98 = scmp.eq.s32.totalorder %s18, 1
    %p99 = por %p97, %p98
    %p100 = scmp.ne.s32.totalorder %s91, %s92
    %p101 = scmp.eq.s32.totalorder %s18, 0
    %p102 = por %p100, %p101
    %p103 = scmp.ne.s32.totalorder %s91, %s92
    %p104 = scmp.eq.s32.totalorder %s19, 1
    %p105 = por %p103, %p104
    %p107 = scmp.ne.s32.totalorder %s92, %s106
    %p108 = scmp.eq.s32.totalorder %s19, 0
    %p109 = por %p107, %p108
    %s111 = sadd.s32 %s110, 1
    %p114 = scmp.eq.s32.totalorder %s13, 1
    %p115 = scmp.ne.s32.totalorder %s110, %s112
    %p116 = scmp.eq.s32.totalorder %s13, 0
    %p117 = por %p115, %p116
    %p118 = scmp.ne.s32.totalorder %s110, %s112
    %p119 = scmp.eq.s32.totalorder %s18, 1
    %p120 = por %p118, %p119
    %p121 = scmp.ne.s32.totalorder %s112, %s113
    %p122 = scmp.eq.s32.totalorder %s18, 0
    %p123 = por %p121, %p122
    %p124 = scmp.ne.s32.totalorder %s112, %s113
    %p125 = scmp.eq.s32.totalorder %s19, 1
    %p126 = por %p124, %p125
    %p128 = scmp.ne.s32.totalorder %s113, %s127
    %p129 = scmp.eq.s32.totalorder %s19, 0
    %p130 = por %p128, %p129
    %s132 = sadd.s32 %s131, 1
    %p135 = scmp.eq.s32.totalorder %s13, 1
    %p136 = scmp.ne.s32.totalorder %s131, %s133
    %p137 = scmp.eq.s32.totalorder %s13, 0
    %p138 = por %p136, %p137
    %p139 = scmp.ne.s32.totalorder %s131, %s133
    %p140 = scmp.eq.s32.totalorder %s18, 1
    %p141 = por %p139, %p140
    %p142 = scmp.ne.s32.totalorder %s133, %s134
    %p143 = scmp.eq.s32.totalorder %s18, 0
    %p144 = por %p142, %p143
    %p145 = scmp.ne.s32.totalorder %s133, %s134
    %p146 = scmp.eq.s32.totalorder %s19, 1
    %p147 = por %p145, %p146
    %p149 = scmp.ne.s32.totalorder %s134, %s148
    %p150 = scmp.eq.s32.totalorder %s19, 0
    %p151 = por %p149, %p150
    %s153 = sadd.s32 %s152, 1
    %p156 = scmp.eq.s32.totalorder %s13, 1
    %p157 = scmp.ne.s32.totalorder %s152, %s154
    %p158 = scmp.eq.s32.totalorder %s13, 0
    %p159 = por %p157, %p158
    %p160 = scmp.ne.s32.totalorder %s152, %s154
    %p161 = scmp.eq.s32.totalorder %s18, 1
    %p162 = por %p160, %p161
    %p163 = scmp.ne.s32.totalorder %s154, %s155
    %p164 = scmp.eq.s32.totalorder %s18, 0
    %p165 = por %p163, %p164
    %p166 = scmp.ne.s32.totalorder %s154, %s155
    %p167 = scmp.eq.s32.totalorder %s19, 1
    %p168 = por %p166, %p167
    %p170 = scmp.ne.s32.totalorder %s155, %s169
    %p171 = scmp.eq.s32.totalorder %s19, 0
    %p172 = por %p170, %p171
    %s173 = ssub.s32 %s13, %s20
    %p174 = scmp.eq.s32.totalorder %s173, 0
    %s176 = sadd.s32 %s175, 1
    %s177 = scalar_select %p174, %s175, %s176
    %p180 = pneg %p174
    %p181 = scmp.eq.s32.totalorder %s13, 1
    %p182 = por %p180, %p181
    %p183 = scmp.ne.s32.totalorder %s175, %s178
    %p184 = scmp.eq.s32.totalorder %s13, 0
    %p185 = por %p183, %p184
    %p186 = scmp.ne.s32.totalorder %s175, %s178
    %p187 = scmp.eq.s32.totalorder %s18, 1
    %p188 = por %p186, %p187
    %p189 = scmp.ne.s32.totalorder %s178, %s179
    %p190 = scmp.eq.s32.totalorder %s18, 0
    %p191 = por %p189, %p190
    %p192 = scmp.ne.s32.totalorder %s178, %s179
    %p193 = scmp.eq.s32.totalorder %s19, 1
    %p194 = por %p192, %p193
    %p196 = scmp.ne.s32.totalorder %s179, %s195
    %p197 = scmp.eq.s32.totalorder %s19, 0
    %p198 = por %p196, %p197
    %p199 = scmp.le.s32.totalorder 1, %s13
    %p200 = scmp.lt.s32.totalorder %s13, 3
    %p201 = pnand %p199, %p200
    %p202 = pneg %p201
    // Predicated region
    $region9: #{mplstm_forward.5} parent=5 // pred_check
      _
    $region10: #{mplstm_forward.5} parent=5 // pred_check_branch
      %204 = sbr.rel (%p201) target = $region12
    $region11: #{mplstm_forward.5} parent=5 // pred_region
      %s205 = ssub.s32 %s13, 1
      // Predicated region
      $region13: #{mplstm_forward.5} parent=11 // pred_check
        %p206 = pneg %p60
      $region14: #{mplstm_forward.5} parent=11 // pred_check_branch
        %208 = sbr.rel (%p206) target = $region16
      $region15: #{mplstm_forward.5} parent=11 // pred_region
        _
      $region16: #{mplstm_forward.5} parent=11 // pred_fallthru
        _
      // Predicated region
      $region17: #{mplstm_forward.5} parent=11 // pred_check
        %p209 = pneg %p81
      $region18: #{mplstm_forward.5} parent=11 // pred_check_branch
        %211 = sbr.rel (%p209) target = $region20
      $region19: #{mplstm_forward.5} parent=11 // pred_region
        _
      $region20: #{mplstm_forward.5} parent=11 // pred_fallthru
        _
      // Predicated region
      $region21: #{mplstm_forward.5} parent=11 // pred_check
        %p212 = pneg %p102
      $region22: #{mplstm_forward.5} parent=11 // pred_check_branch
        %214 = sbr.rel (%p212) target = $region24
      $region23: #{mplstm_forward.5} parent=11 // pred_region
        _
      $region24: #{mplstm_forward.5} parent=11 // pred_fallthru
        _
      // Predicated region
      $region25: #{mplstm_forward.5} parent=11 // pred_check
        %p215 = pneg %p123
      $region26: #{mplstm_forward.5} parent=11 // pred_check_branch
        %217 = sbr.rel (%p215) target = $region28
      $region27: #{mplstm_forward.5} parent=11 // pred_region
        _
      $region28: #{mplstm_forward.5} parent=11 // pred_fallthru
        _
      // Predicated region
      $region29: #{mplstm_forward.5} parent=11 // pred_check
        %p218 = pneg %p144
      $region30: #{mplstm_forward.5} parent=11 // pred_check_branch
        %220 = sbr.rel (%p218) target = $region32
      $region31: #{mplstm_forward.5} parent=11 // pred_region
        _
      $region32: #{mplstm_forward.5} parent=11 // pred_fallthru
        _
      // Predicated region
      $region33: #{mplstm_forward.5} parent=11 // pred_check
        %p221 = pneg %p165
      $region34: #{mplstm_forward.5} parent=11 // pred_check_branch
        %223 = sbr.rel (%p221) target = $region36
      $region35: #{mplstm_forward.5} parent=11 // pred_region
        _
      $region36: #{mplstm_forward.5} parent=11 // pred_fallthru
        _
    $region12: #{mplstm_forward.5} parent=5 // pred_fallthru
      _
    %p224 = scmp.lt.s32.totalorder %s13, 2
    // Predicated region
    $region37: #{mplstm_forward.5} parent=5 // pred_check
      %p225 = pneg %p224
    $region38: #{mplstm_forward.5} parent=5 // pred_check_branch
      %227 = sbr.rel (%p225) target = $region40
    $region39: #{mplstm_forward.5} parent=5 // pred_region
      // Predicated region
      $region41: #{mplstm_forward.5} parent=39 // pred_check
        %p228 = pneg %p33
      $region42: #{mplstm_forward.5} parent=39 // pred_check_branch
        %230 = sbr.rel (%p228) target = $region44
      $region43: #{mplstm_forward.5} parent=39 // pred_region
        %p231 = scmp.lt.s32.totalorder %s13, 1
        %s232 = scalar_select %p231, %s13, 1
        %s233 = smul.addr %s232, 8
        %s234 = scalar_lea.vmem %s0, %s233
      $region44: #{mplstm_forward.5} parent=39 // pred_fallthru
        _
    $region40: #{mplstm_forward.5} parent=5 // pred_fallthru
      _
    %p235 = scmp.le.s32.totalorder 1, %s13
    %p236 = scmp.lt.s32.totalorder %s13, 3
    %p237 = pnand %p235, %p236
    %p238 = pneg %p237
    // Predicated region
    $region45: #{mplstm_forward.5} parent=5 // pred_check
      _
    $region46: #{mplstm_forward.5} parent=5 // pred_check_branch
      %240 = sbr.rel (%p237) target = $region48
    $region47: #{mplstm_forward.5} parent=5 // pred_region
      %s241 = ssub.s32 %s13, 1
      %p242 = scmp.lt.s32.totalorder %s18, 1
      %s243 = scalar_select %p242, %s18, 1
      %s244 = smul.addr %s243, 8
      %s245 = scalar_lea.vmem %s0, %s244
      %p246 = pneg %p39
      %p247 = pneg %p36
      %p248 = pneg %p60
      %p249 = pneg %p57
      %p250 = pneg %p81
      %p251 = pneg %p78
      %p252 = pneg %p102
      %p253 = pneg %p99
      %p254 = pneg %p123
      %p255 = pneg %p120
      %p256 = pneg %p144
      %p257 = pneg %p141
      %p258 = pneg %p165
      %p259 = pneg %p162
      %p260 = pneg %p191
      %p261 = pneg %p188
      %p262 = scmp.lt.s32.totalorder %s18, 1
      %s263 = scalar_select %p262, %s18, 1
      %s264 = smul.addr %s263, 8
      %s265 = scalar_lea.vmem %s7, %s264
      %p266 = scmp.lt.s32.totalorder %s18, 1
      %s267 = scalar_select %p266, %s18, 1
      %s268 = smul.addr %s267, 8
      %s269 = scalar_lea.vmem %s0, %s268
      %p270 = scmp.lt.s32.totalorder %s18, 1
      %s271 = scalar_select %p270, %s18, 1
      %s272 = smul.addr %s271, 8
      %s273 = scalar_lea.vmem %s7, %s272
      %v274 = vld [vmem:[%s269] sm:$0xff]
      %vm275 = vcmask 261120
      %v276 = vsel %vm275, %v274, 0.0
      %277 = vadd.xlane.f32.xlu0 %v276
      %v278 = vpop.xlane.xlu0 %277
      %v279 = vrcp.pop 32.0
      %v280 = vmul.f32 %v278, %v279
      %v281 = vsub.f32 %v274, %v280
      %v282 = vmul.f32 %v281, %v281
      %v283 = vsel %vm275, %v282, 0.0
      %284 = vadd.xlane.f32.xlu0 %v283
      %v285 = vpop.xlane.xlu0 %284
      %v286 = vmul.f32 %v285, %v279
      %v287 = vadd.f32 %v286, 1e-05
      %v288 = vrsqrt.pop %v287
      %v289 = vmul.f32 %v281, %v288
      %v290 = vld [vmem:[%s2] sm:$0x1]
      %v291 = vld [vmem:[%s1] sm:$0xff]
      %v292 = vld [vmem:[%s1 + $0x8] sm:$0xff]
      %v293 = vld [vmem:[%s1 + $0x10] sm:$0xff]
      %v294 = vld [vmem:[%s1 + $0x18] sm:$0xff]
      %v296 = vlaneseq
      %v297 = vshrl.u32 %v296, 7
      %v298 = vsub.s32 0, %v297
      %v299 = vrot.slane %v290, %v298
      %v302 = vsel %vm275, %v289, 0
      %304 = vmatprep.subr.mxu0 0.0
      %305 = vmatpush1.msra.mxu0 %v291
      %306 = vmatprep.subr.mxu0 0.0
      %307 = vmatpush1.msra.mxu0 %v292
      %308 = vmatprep.subr.mxu0 0.0
      %309 = vmatpush1.msra.mxu0 %v293
      %310 = vmatprep.subr.mxu0 0.0
      %311 = vmatpush1.msra.mxu0 %v294
      %312 = vmatprep.subr.mxu0 0.0
      %313 = vmatpush1.msra.mxu0 0.0
      %314 = vmatprep.subr.mxu0 0.0
      %315 = vmatpush1.msra.mxu0 0.0
      %316 = vmatprep.subr.mxu0 0.0
      %317 = vmatpush1.msra.mxu0 0.0
      %318 = vmatprep.subr.mxu0 0.0
      %319 = vmatpush1.msra.mxu0 0.0
      %320 = vmatprep.subr.mxu0 0.0
      %321 = vmatpush1.msra.mxu0 0.0
      %322 = vmatprep.subr.mxu0 0.0
      %323 = vmatpush1.msra.mxu0 0.0
      %324 = vmatprep.subr.mxu0 0.0
      %325 = vmatpush1.msra.mxu0 0.0
      %326 = vmatprep.subr.mxu0 0.0
      %327 = vmatpush1.msra.mxu0 0.0
      %328 = vmatprep.subr.mxu0 0.0
      %329 = vmatpush1.msra.mxu0 0.0
      %330 = vmatprep.subr.mxu0 0.0
      %331 = vmatpush1.msra.mxu0 0.0
      %332 = vmatprep.subr.mxu0 0.0
      %333 = vmatpush1.msra.mxu0 0.0
      %334 = vmatprep.subr.mxu0 0.0
      %335 = vmatpush1.msra.mxu0 0.0
      %336 = vmatprep.subr.mxu0 0.0
      %337 = vmatpush1.msra.mxu0 0.0
      %338 = vmatprep.subr.mxu0 0.0
      %339 = vmatpush1.msra.mxu0 0.0
      %340 = vmatprep.subr.mxu0 0.0
      %341 = vmatpush1.msra.mxu0 0.0
      %342 = vmatprep.subr.mxu0 0.0
      %343 = vmatpush1.msra.mxu0 0.0
      %344 = vmatprep.subr.mxu0 0.0
      %345 = vmatpush1.msra.mxu0 0.0
      %346 = vmatprep.subr.mxu0 0.0
      %347 = vmatpush1.msra.mxu0 0.0
      %348 = vmatprep.subr.mxu0 0.0
      %349 = vmatpush1.msra.mxu0 0.0
      %350 = vmatprep.subr.mxu0 0.0
      %351 = vmatpush1.msra.mxu0 0.0
      %352 = vmatprep.subr.mxu0 0.0
      %353 = vmatpush1.msra.mxu0 0.0
      %354 = vmatprep.subr.mxu0 0.0
      %355 = vmatpush1.msra.mxu0 0.0
      %356 = vmatprep.subr.mxu0 0.0
      %357 = vmatpush1.msra.mxu0 0.0
      %358 = vmatprep.subr.mxu0 0.0
      %359 = vmatpush1.msra.mxu0 0.0
      %360 = vmatprep.subr.mxu0 0.0
      %361 = vmatpush1.msra.mxu0 0.0
      %362 = vmatprep.subr.mxu0 0.0
      %363 = vmatpush1.msra.mxu0 0.0
      %364 = vmatprep.subr.mxu0 0.0
      %365 = vmatpush1.msra.mxu0 0.0
      %366 = vmatprep.subr.mxu0 0.0
      %367 = vmatpush1.msra.mxu0 0.0
      %368 = vmatprep.mubr.f32.mxu0 0.0
      %369 = vmatmul.mubr.f32.gmra.mrb[0].mxu0 %v302
      %v370 = vpop.f32.mrb[0].mxu0
      %v371 = vadd.f32 %v299, %v370
      %v372 = vpop.f32.mrb[0].mxu0
      %373 = vdwg.mxu0
      %v374 = vmax.f32 %v371, 0.0
      %376 = vrot.lane.b32.xlu0 %v371, 96
      %v377 = vpop.permute.xlu0 %376
      %v379 = vmul.f32 %v374, %v377
      %v380 = vlaneseq
      %v381 = vshrl.u32 %v380, 7
      %v382 = vlaneseq
      %v383 = vand.u32 %v382, 127
      %v384 = vsub.s32 %v381, %v383
      %vm385 = vcmp.ge.s32.totalorder %v384, 0
      %vm386 = vcmp.lt.s32.totalorder %v384, 20
      %vm387 = vmand %vm385, %vm386
      %v388 = vsel %vm387, 1, 0
      %v389 = vcvt.s32.f32 %v388
      %v390 = vmax.f32 %v290, 0.0
      %391 = vrot.lane.b32.xlu0 %v290, 96
      %v392 = vpop.permute.xlu0 %391
      %v394 = vmul.f32 %v390, %v392
      %v395 = vsub.s32 19, %v381
      %vm396 = vcmp.gt.s32.totalorder %v395, 0
      %v397 = vsel %vm396, %v395, 0
      %v398 = vcvt.s32.f32 %v397
      %v400 = vlaneseq
      %v401 = vshrl.u32 %v400, 7
      %v402 = vsub.s32 0, %v401
      %v403 = vrot.slane %v394, %v402
      %v405 = vmul.f32 %v398, %v403
      %407 = vrot.lane.b32.xlu0 %v379, 96
      %v408 = vpop.permute.xlu0 %407
      %411 = vrot.lane.b32.xlu0 %v405, 96
      %v412 = vpop.permute.xlu0 %411
      %vm414 = vcmask 64512
      %v416 = vsel %vm414, %v389, 0
      %418 = vmatprep.subr.mxu0 0.0
      %419 = vmatpush1.msra.mxu0 %v408
      %420 = vmatprep.subr.mxu0 0.0
      %421 = vmatpush1.msra.mxu0 0.0
      %422 = vmatprep.subr.mxu0 0.0
      %423 = vmatpush1.msra.mxu0 0.0
      %424 = vmatprep.subr.mxu0 0.0
      %425 = vmatpush1.msra.mxu0 0.0
      %426 = vmatprep.subr.mxu0 0.0
      %427 = vmatpush1.msra.mxu0 0.0
      %428 = vmatprep.subr.mxu0 0.0
      %429 = vmatpush1.msra.mxu0 0.0
      %430 = vmatprep.subr.mxu0 0.0
      %431 = vmatpush1.msra.mxu0 0.0
      %432 = vmatprep.subr.mxu0 0.0
      %433 = vmatpush1.msra.mxu0 0.0
      %434 = vmatprep.subr.mxu0 0.0
      %435 = vmatpush1.msra.mxu0 0.0
      %436 = vmatprep.subr.mxu0 0.0
      %437 = vmatpush1.msra.mxu0 0.0
      %438 = vmatprep.subr.mxu0 0.0
      %439 = vmatpush1.msra.mxu0 0.0
      %440 = vmatprep.subr.mxu0 0.0
      %441 = vmatpush1.msra.mxu0 0.0
      %442 = vmatprep.subr.mxu0 0.0
      %443 = vmatpush1.msra.mxu0 0.0
      %444 = vmatprep.subr.mxu0 0.0
      %445 = vmatpush1.msra.mxu0 0.0
      %446 = vmatprep.subr.mxu0 0.0
      %447 = vmatpush1.msra.mxu0 0.0
      %448 = vmatprep.subr.mxu0 0.0
      %449 = vmatpush1.msra.mxu0 0.0
      %450 = vmatprep.subr.mxu0 0.0
      %451 = vmatpush1.msra.mxu0 0.0
      %452 = vmatprep.subr.mxu0 0.0
      %453 = vmatpush1.msra.mxu0 0.0
      %454 = vmatprep.subr.mxu0 0.0
      %455 = vmatpush1.msra.mxu0 0.0
      %456 = vmatprep.subr.mxu0 0.0
      %457 = vmatpush1.msra.mxu0 0.0
      %458 = vmatprep.subr.mxu0 0.0
      %459 = vmatpush1.msra.mxu0 0.0
      %460 = vmatprep.subr.mxu0 0.0
      %461 = vmatpush1.msra.mxu0 0.0
      %462 = vmatprep.subr.mxu0 0.0
      %463 = vmatpush1.msra.mxu0 0.0
      %464 = vmatprep.subr.mxu0 0.0
      %465 = vmatpush1.msra.mxu0 0.0
      %466 = vmatprep.subr.mxu0 0.0
      %467 = vmatpush1.msra.mxu0 0.0
      %468 = vmatprep.subr.mxu0 0.0
      %469 = vmatpush1.msra.mxu0 0.0
      %470 = vmatprep.subr.mxu0 0.0
      %471 = vmatpush1.msra.mxu0 0.0
      %472 = vmatprep.subr.mxu0 0.0
      %473 = vmatpush1.msra.mxu0 0.0
      %474 = vmatprep.subr.mxu0 0.0
      %475 = vmatpush1.msra.mxu0 0.0
      %476 = vmatprep.subr.mxu0 0.0
      %477 = vmatpush1.msra.mxu0 0.0
      %478 = vmatprep.subr.mxu0 0.0
      %479 = vmatpush1.msra.mxu0 0.0
      %480 = vmatprep.subr.mxu0 0.0
      %481 = vmatpush1.msra.mxu0 0.0
      %482 = vmatprep.mubr.f32.mxu0 0.0
      %483 = vmatmul.mubr.f32.gmra.mrb[0].mxu0 %v416
      %v484 = vpop.f32.mrb[0].mxu0
      %v485 = vadd.f32 %v412, %v484
      %v486 = vpop.f32.mrb[0].mxu0
      %487 = vdwg.mxu0
      %v488 = vmul.f32 %v374, %v485
      %v489 = vld [vmem:[%s3] sm:$0xff]
      %v490 = vld [vmem:[%s3 + $0x8] sm:$0xff]
      %v491 = vld [vmem:[%s3 + $0x10] sm:$0xff]
      %v492 = vld [vmem:[%s3 + $0x18] sm:$0xff]
      %v493 = vld [vmem:[%s4] sm:$0x1]
      %v495 = vlaneseq
      %v496 = vshrl.u32 %v495, 7
      %v497 = vsub.s32 0, %v496
      %v498 = vrot.slane %v493, %v497
      %v501 = vsel %vm275, %v488, 0
      %503 = vmatprep.subr.mxu0 0.0
      %504 = vmatpush1.msra.mxu0 %v489
      %505 = vmatprep.subr.mxu0 0.0
      %506 = vmatpush1.msra.mxu0 %v490
      %507 = vmatprep.subr.mxu0 0.0
      %508 = vmatpush1.msra.mxu0 %v491
      %509 = vmatprep.subr.mxu0 0.0
      %510 = vmatpush1.msra.mxu0 %v492
      %511 = vmatprep.subr.mxu0 0.0
      %512 = vmatpush1.msra.mxu0 0.0
      %513 = vmatprep.subr.mxu0 0.0
      %514 = vmatpush1.msra.mxu0 0.0
      %515 = vmatprep.subr.mxu0 0.0
      %516 = vmatpush1.msra.mxu0 0.0
      %517 = vmatprep.subr.mxu0 0.0
      %518 = vmatpush1.msra.mxu0 0.0
      %519 = vmatprep.subr.mxu0 0.0
      %520 = vmatpush1.msra.mxu0 0.0
      %521 = vmatprep.subr.mxu0 0.0
      %522 = vmatpush1.msra.mxu0 0.0
      %523 = vmatprep.subr.mxu0 0.0
      %524 = vmatpush1.msra.mxu0 0.0
      %525 = vmatprep.subr.mxu0 0.0
      %526 = vmatpush1.msra.mxu0 0.0
      %527 = vmatprep.subr.mxu0 0.0
      %528 = vmatpush1.msra.mxu0 0.0
      %529 = vmatprep.subr.mxu0 0.0
      %530 = vmatpush1.msra.mxu0 0.0
      %531 = vmatprep.subr.mxu0 0.0
      %532 = vmatpush1.msra.mxu0 0.0
      %533 = vmatprep.subr.mxu0 0.0
      %534 = vmatpush1.msra.mxu0 0.0
      %535 = vmatprep.subr.mxu0 0.0
      %536 = vmatpush1.msra.mxu0 0.0
      %537 = vmatprep.subr.mxu0 0.0
      %538 = vmatpush1.msra.mxu0 0.0
      %539 = vmatprep.subr.mxu0 0.0
      %540 = vmatpush1.msra.mxu0 0.0
      %541 = vmatprep.subr.mxu0 0.0
      %542 = vmatpush1.msra.mxu0 0.0
      %543 = vmatprep.subr.mxu0 0.0
      %544 = vmatpush1.msra.mxu0 0.0
      %545 = vmatprep.subr.mxu0 0.0
      %546 = vmatpush1.msra.mxu0 0.0
      %547 = vmatprep.subr.mxu0 0.0
      %548 = vmatpush1.msra.mxu0 0.0
      %549 = vmatprep.subr.mxu0 0.0
      %550 = vmatpush1.msra.mxu0 0.0
      %551 = vmatprep.subr.mxu0 0.0
      %552 = vmatpush1.msra.mxu0 0.0
      %553 = vmatprep.subr.mxu0 0.0
      %554 = vmatpush1.msra.mxu0 0.0
      %555 = vmatprep.subr.mxu0 0.0
      %556 = vmatpush1.msra.mxu0 0.0
      %557 = vmatprep.subr.mxu0 0.0
      %558 = vmatpush1.msra.mxu0 0.0
      %559 = vmatprep.subr.mxu0 0.0
      %560 = vmatpush1.msra.mxu0 0.0
      %561 = vmatprep.subr.mxu0 0.0
      %562 = vmatpush1.msra.mxu0 0.0
      %563 = vmatprep.subr.mxu0 0.0
      %564 = vmatpush1.msra.mxu0 0.0
      %565 = vmatprep.subr.mxu0 0.0
      %566 = vmatpush1.msra.mxu0 0.0
      %567 = vmatprep.mubr.f32.mxu0 0.0
      %568 = vmatmul.mubr.f32.gmra.mrb[0].mxu0 %v501
      %v569 = vpop.f32.mrb[0].mxu0
      %v570 = vadd.f32 %v498, %v569
      %v571 = vpop.f32.mrb[0].mxu0
      %572 = vdwg.mxu0
      %v573 = vmul.f32 %v570, 1.702
      %v574 = vxor.u32 %v573, 2147483648
      %v575 = vmul.f32 %v574, 1.442695
      %v576 = vpow.pop %v575
      %v577 = vadd.f32 %v576, 1.0
      %v578 = vrcp.pop %v577
      %v579 = vmul.f32 1.0, %v578
      %v580 = vmul.f32 %v570, %v579
      %v581 = vld [vmem:[%s5] sm:$0xff]
      %v582 = vld [vmem:[%s5 + $0x8] sm:$0xff]
      %v583 = vld [vmem:[%s5 + $0x10] sm:$0xff]
      %v584 = vld [vmem:[%s5 + $0x18] sm:$0xff]
      %v585 = vld [vmem:[%s5 + $0x20] sm:$0xff]
      %v586 = vld [vmem:[%s5 + $0x28] sm:$0xff]
      %v587 = vld [vmem:[%s5 + $0x30] sm:$0xff]
      %v588 = vld [vmem:[%s5 + $0x38] sm:$0xff]
      %v589 = vld [vmem:[%s6] sm:$0x1]
      %v591 = vlaneseq
      %v592 = vshrl.u32 %v591, 7
      %v593 = vsub.s32 0, %v592
      %v594 = vrot.slane %v589, %v593
      %vm596 = vcmask 523264
      %v598 = vsel %vm596, %v580, 0
      %600 = vmatprep.subr.mxu0 0.0
      %601 = vmatpush1.msra.mxu0 %v581
      %602 = vmatprep.subr.mxu0 0.0
      %603 = vmatpush1.msra.mxu0 %v582
      %604 = vmatprep.subr.mxu0 0.0
      %605 = vmatpush1.msra.mxu0 %v583
      %606 = vmatprep.subr.mxu0 0.0
      %607 = vmatpush1.msra.mxu0 %v584
      %608 = vmatprep.subr.mxu0 0.0
      %609 = vmatpush1.msra.mxu0 %v585
      %610 = vmatprep.subr.mxu0 0.0
      %611 = vmatpush1.msra.mxu0 %v586
      %612 = vmatprep.subr.mxu0 0.0
      %613 = vmatpush1.msra.mxu0 %v587
      %614 = vmatprep.subr.mxu0 0.0
      %615 = vmatpush1.msra.mxu0 %v588
      %616 = vmatprep.subr.mxu0 0.0
      %617 = vmatpush1.msra.mxu0 0.0
      %618 = vmatprep.subr.mxu0 0.0
      %619 = vmatpush1.msra.mxu0 0.0
      %620 = vmatprep.subr.mxu0 0.0
      %621 = vmatpush1.msra.mxu0 0.0
      %622 = vmatprep.subr.mxu0 0.0
      %623 = vmatpush1.msra.mxu0 0.0
      %624 = vmatprep.subr.mxu0 0.0
      %625 = vmatpush1.msra.mxu0 0.0
      %626 = vmatprep.subr.mxu0 0.0
      %627 = vmatpush1.msra.mxu0 0.0
      %628 = vmatprep.subr.mxu0 0.0
      %629 = vmatpush1.msra.mxu0 0.0
      %630 = vmatprep.subr.mxu0 0.0
      %631 = vmatpush1.msra.mxu0 0.0
      %632 = vmatprep.subr.mxu0 0.0
      %633 = vmatpush1.msra.mxu0 0.0
      %634 = vmatprep.subr.mxu0 0.0
      %635 = vmatpush1.msra.mxu0 0.0
      %636 = vmatprep.subr.mxu0 0.0
      %637 = vmatpush1.msra.mxu0 0.0
      %638 = vmatprep.subr.mxu0 0.0
      %639 = vmatpush1.msra.mxu0 0.0
      %640 = vmatprep.subr.mxu0 0.0
      %641 = vmatpush1.msra.mxu0 0.0
      %642 = vmatprep.subr.mxu0 0.0
      %643 = vmatpush1.msra.mxu0 0.0
      %644 = vmatprep.subr.mxu0 0.0
      %645 = vmatpush1.msra.mxu0 0.0
      %646 = vmatprep.subr.mxu0 0.0
      %647 = vmatpush1.msra.mxu0 0.0
      %648 = vmatprep.subr.mxu0 0.0
      %649 = vmatpush1.msra.mxu0 0.0
      %650 = vmatprep.subr.mxu0 0.0
      %651 = vmatpush1.msra.mxu0 0.0
      %652 = vmatprep.subr.mxu0 0.0
      %653 = vmatpush1.msra.mxu0 0.0
      %654 = vmatprep.subr.mxu0 0.0
      %655 = vmatpush1.msra.mxu0 0.0
      %656 = vmatprep.subr.mxu0 0.0
      %657 = vmatpush1.msra.mxu0 0.0
      %658 = vmatprep.subr.mxu0 0.0
      %659 = vmatpush1.msra.mxu0 0.0
      %660 = vmatprep.subr.mxu0 0.0
      %661 = vmatpush1.msra.mxu0 0.0
      %662 = vmatprep.subr.mxu0 0.0
      %663 = vmatpush1.msra.mxu0 0.0
      %664 = vmatprep.mubr.f32.mxu0 0.0
      %665 = vmatmul.mubr.f32.gmra.mrb[0].mxu0 %v598
      %v666 = vpop.f32.mrb[0].mxu0
      %v667 = vadd.f32 %v594, %v666
      %v668 = vpop.f32.mrb[0].mxu0
      %669 = vdwg.mxu0
      %670 = vst.msk [vmem:[%s273] sm:$0xff] %vm275, %v667
      %p671 = scmp.lt.s32.totalorder %s18, 1
      %s672 = scalar_select %p671, %s18, 1
      %s673 = smul.addr %s672, 8
      %s674 = scalar_lea.vmem %s7, %s673
      // Predicated region
      $region49: #{mplstm_forward.5} parent=47 // pred_check
        %p675 = pneg %p188
      $region50: #{mplstm_forward.5} parent=47 // pred_check_branch
        %677 = sbr.rel (%p675) target = $region52
      $region51: #{mplstm_forward.5} parent=47 // pred_region
        _
      $region52: #{mplstm_forward.5} parent=47 // pred_fallthru
        _
    $region48: #{mplstm_forward.5} parent=5 // pred_fallthru
      _
    %p678 = scmp.le.s32.totalorder 2, %s13
    // Predicated region
    $region53: #{mplstm_forward.5} parent=5 // pred_check
      %p679 = pneg %p678
    $region54: #{mplstm_forward.5} parent=5 // pred_check_branch
      %681 = sbr.rel (%p679) target = $region56
    $region55: #{mplstm_forward.5} parent=5 // pred_region
      %s682 = ssub.s32 %s13, 2
      // Predicated region
      $region57: #{mplstm_forward.5} parent=55 // pred_check
        %p683 = pneg %p194
      $region58: #{mplstm_forward.5} parent=55 // pred_check_branch
        %685 = sbr.rel (%p683) target = $region60
      $region59: #{mplstm_forward.5} parent=55 // pred_region
        %p686 = scmp.lt.s32.totalorder %s19, 1
        %s687 = scalar_select %p686, %s19, 1
        %s688 = smul.addr %s687, 8
        %s689 = scalar_lea.vmem %s7, %s688
      $region60: #{mplstm_forward.5} parent=55 // pred_fallthru
        _
    $region56: #{mplstm_forward.5} parent=5 // pred_fallthru
      _
  $region6: #{mplstm_forward.5} parent=0 // loop_footer
    %s17 = sadd.s32 1, %s13
  $region7: #{mplstm_forward.5} parent=0 // loop_footer_branch
    %12 = sbr.rel target = $region3
  $region8: #{mplstm_forward.5} parent=0 // loop_exit
    _

// kernel: mplstm_forward.7
$region0: #{mplstm_forward.7}
  #allocation0 [shape = 'u32[]', space=smem, size = 0x4, offset = 0x4, fixed_abs, tag = 'smem constant byte address 0x4 - core index']
  #allocation1 [shape = 'u32[144,128]{1,0:T(1,128)}', space=vmem, size = 0x12000, scoped, tag = 'internal scratch']
  %s0 = inlined_call_operand.vmem [shape: f32[2,8,32], index: 0, kind: input, shape index: {}]
  %s1 = inlined_call_operand.vmem [shape: f32[32,96], index: 1, kind: input, shape index: {}]
  %s2 = inlined_call_operand.vmem [shape: f32[1,96], index: 2, kind: input, shape index: {}]
  %s3 = inlined_call_operand.vmem [shape: f32[32,64], index: 3, kind: input, shape index: {}]
  %s4 = inlined_call_operand.vmem [shape: f32[1,64], index: 4, kind: input, shape index: {}]
  %s5 = inlined_call_operand.vmem [shape: f32[64,32], index: 5, kind: input, shape index: {}]
  %s6 = inlined_call_operand.vmem [shape: f32[1,32], index: 6, kind: input, shape index: {}]
  %s7 = inlined_call_operand.hbm [shape: f32[2,8,32], index: 7, kind: output, shape index: {}]
  %s8 = sld [smem:[#allocation0]]
  $region61: #{mplstm_forward.7} parent=0
    _
  %s10 = ssub.s32 1, %s8
  %s11 = scalar_select 0, %s10, %s8
  $region1: #{mplstm_forward.7} parent=0
    #allocation2 [shape = 'u8[8192]{0}', space=vmem, size = 0x2000, scoped, tag = 'output window, operand 0']
    #allocation3 [shape = 's32[2]{0}', space=sflag, size = 0x8, scoped, tag = 'scoped memory for mplstm_forward.7']
    %12 = vsyncpa [#allocation3], 0
    %s13 = scalar_lea.sflag [#allocation3], 1
    %14 = vsyncpa %s13, 0
    loop: start=0, step=1, limit=4
    $region2: #{mplstm_forward.7} parent=1 // loop_pre_header
      _
    $region3: #{mplstm_forward.7} parent=1 // loop_header
      %s16 = sphi 0, %s20
      %p17 = scmp.ge.s32.totalorder %s16, 4
      %s26 = sphi 0, %s28
      %s29 = sphi 0, %s26
      %s30 = sphi 0, %s29
      %s46 = sphi 0, %s30
      %s50 = sphi 0, %s50
      %s52 = sphi 0, %s50
      %s53 = sphi 0, %s52
      %s67 = sphi 0, %s53
      %s71 = sphi 0, %s71
      %s73 = sphi 0, %s71
      %s74 = sphi 0, %s73
      %s88 = sphi 0, %s74
      %s92 = sphi 0, %s92
      %s94 = sphi 0, %s92
      %s95 = sphi 0, %s94
      %s109 = sphi 0, %s95
      %s113 = sphi 0, %s113
      %s115 = sphi 0, %s113
      %s116 = sphi 0, %s115
      %s130 = sphi 0, %s116
      %s134 = sphi 0, %s134
      %s136 = sphi 0, %s134
      %s137 = sphi 0, %s136
      %s151 = sphi 0, %s137
      %s155 = sphi 0, %s155
      %s157 = sphi 0, %s155
      %s158 = sphi 0, %s157
      %s172 = sphi 0, %s158
      %s178 = sphi 0, %s180
      %s181 = sphi 0, %s178
      %s182 = sphi 0, %s181
      %s198 = sphi 0, %s182
    $region4: #{mplstm_forward.7} parent=1 // loop_header_branch
      %19 = sbr.rel (%p17) target = $region8
    $region5: #{mplstm_forward.7} parent=1 // loop_body
      %s21 = ssub.s32 %s16, 1
      %s22 = ssub.s32 %s16, 2
      %s23 = sadd.s32 %s16, 1
      %s24 = ssub.s32 %s16, %s23
      %p25 = scmp.eq.s32.totalorder %s24, 0
      %s27 = sadd.s32 %s26, 1
      %s28 = scalar_select %p25, %s26, %s27
      %p31 = pneg %p25
      %p32 = scmp.eq.s32.totalorder %s16, 1
      %p33 = por %p31, %p32
      %p34 = scmp.ne.s32.totalorder %s26, %s29
      %p35 = scmp.eq.s32.totalorder %s16, 0
      %p36 = por %p34, %p35
      %p37 = scmp.ne.s32.totalorder %s26, %s29
      %p38 = scmp.eq.s32.totalorder %s21, 1
      %p39 = por %p37, %p38
      %p40 = scmp.ne.s32.totalorder %s29, %s30
      %p41 = scmp.eq.s32.totalorder %s21, 0
      %p42 = por %p40, %p41
      %p43 = scmp.ne.s32.totalorder %s29, %s30
      %p44 = scmp.eq.s32.totalorder %s22, 1
      %p45 = por %p43, %p44
      %p47 = scmp.ne.s32.totalorder %s30, %s46
      %p48 = scmp.eq.s32.totalorder %s22, 0
      %p49 = por %p47, %p48
      %s51 = sadd.s32 %s50, 1
      %p54 = scmp.eq.s32.totalorder %s16, 1
      %p55 = scmp.ne.s32.totalorder %s50, %s52
      %p56 = scmp.eq.s32.totalorder %s16, 0
      %p57 = por %p55, %p56
      %p58 = scmp.ne.s32.totalorder %s50, %s52
      %p59 = scmp.eq.s32.totalorder %s21, 1
      %p60 = por %p58, %p59
      %p61 = scmp.ne.s32.totalorder %s52, %s53
      %p62 = scmp.eq.s32.totalorder %s21, 0
      %p63 = por %p61, %p62
      %p64 = scmp.ne.s32.totalorder %s52, %s53
      %p65 = scmp.eq.s32.totalorder %s22, 1
      %p66 = por %p64, %p65
      %p68 = scmp.ne.s32.totalorder %s53, %s67
      %p69 = scmp.eq.s32.totalorder %s22, 0
      %p70 = por %p68, %p69
      %s72 = sadd.s32 %s71, 1
      %p75 = scmp.eq.s32.totalorder %s16, 1
      %p76 = scmp.ne.s32.totalorder %s71, %s73
      %p77 = scmp.eq.s32.totalorder %s16, 0
      %p78 = por %p76, %p77
      %p79 = scmp.ne.s32.totalorder %s71, %s73
      %p80 = scmp.eq.s32.totalorder %s21, 1
      %p81 = por %p79, %p80
      %p82 = scmp.ne.s32.totalorder %s73, %s74
      %p83 = scmp.eq.s32.totalorder %s21, 0
      %p84 = por %p82, %p83
      %p85 = scmp.ne.s32.totalorder %s73, %s74
      %p86 = scmp.eq.s32.totalorder %s22, 1
      %p87 = por %p85, %p86
      %p89 = scmp.ne.s32.totalorder %s74, %s88
      %p90 = scmp.eq.s32.totalorder %s22, 0
      %p91 = por %p89, %p90
      %s93 = sadd.s32 %s92, 1
      %p96 = scmp.eq.s32.totalorder %s16, 1
      %p97 = scmp.ne.s32.totalorder %s92, %s94
      %p98 = scmp.eq.s32.totalorder %s16, 0
      %p99 = por %p97, %p98
      %p100 = scmp.ne.s32.totalorder %s92, %s94
      %p101 = scmp.eq.s32.totalorder %s21, 1
      %p102 = por %p100, %p101
      %p103 = scmp.ne.s32.totalorder %s94, %s95
      %p104 = scmp.eq.s32.totalorder %s21, 0
      %p105 = por %p103, %p104
      %p106 = scmp.ne.s32.totalorder %s94, %s95
      %p107 = scmp.eq.s32.totalorder %s22, 1
      %p108 = por %p106, %p107
      %p110 = scmp.ne.s32.totalorder %s95, %s109
      %p111 = scmp.eq.s32.totalorder %s22, 0
      %p112 = por %p110, %p111
      %s114 = sadd.s32 %s113, 1
      %p117 = scmp.eq.s32.totalorder %s16, 1
      %p118 = scmp.ne.s32.totalorder %s113, %s115
      %p119 = scmp.eq.s32.totalorder %s16, 0
      %p120 = por %p118, %p119
      %p121 = scmp.ne.s32.totalorder %s113, %s115
      %p122 = scmp.eq.s32.totalorder %s21, 1
      %p123 = por %p121, %p122
      %p124 = scmp.ne.s32.totalorder %s115, %s116
      %p125 = scmp.eq.s32.totalorder %s21, 0
      %p126 = por %p124, %p125
      %p127 = scmp.ne.s32.totalorder %s115, %s116
      %p128 = scmp.eq.s32.totalorder %s22, 1
      %p129 = por %p127, %p128
      %p131 = scmp.ne.s32.totalorder %s116, %s130
      %p132 = scmp.eq.s32.totalorder %s22, 0
      %p133 = por %p131, %p132
      %s135 = sadd.s32 %s134, 1
      %p138 = scmp.eq.s32.totalorder %s16, 1
      %p139 = scmp.ne.s32.totalorder %s134, %s136
      %p140 = scmp.eq.s32.totalorder %s16, 0
      %p141 = por %p139, %p140
      %p142 = scmp.ne.s32.totalorder %s134, %s136
      %p143 = scmp.eq.s32.totalorder %s21, 1
      %p144 = por %p142, %p143
      %p145 = scmp.ne.s32.totalorder %s136, %s137
      %p146 = scmp.eq.s32.totalorder %s21, 0
      %p147 = por %p145, %p146
      %p148 = scmp.ne.s32.totalorder %s136, %s137
      %p149 = scmp.eq.s32.totalorder %s22, 1
      %p150 = por %p148, %p149
      %p152 = scmp.ne.s32.totalorder %s137, %s151
      %p153 = scmp.eq.s32.totalorder %s22, 0
      %p154 = por %p152, %p153
      %s156 = sadd.s32 %s155, 1
      %p159 = scmp.eq.s32.totalorder %s16, 1
      %p160 = scmp.ne.s32.totalorder %s155, %s157
      %p161 = scmp.eq.s32.totalorder %s16, 0
      %p162 = por %p160, %p161
      %p163 = scmp.ne.s32.totalorder %s155, %s157
      %p164 = scmp.eq.s32.totalorder %s21, 1
      %p165 = por %p163, %p164
      %p166 = scmp.ne.s32.totalorder %s157, %s158
      %p167 = scmp.eq.s32.totalorder %s21, 0
      %p168 = por %p166, %p167
      %p169 = scmp.ne.s32.totalorder %s157, %s158
      %p170 = scmp.eq.s32.totalorder %s22, 1
      %p171 = por %p169, %p170
      %p173 = scmp.ne.s32.totalorder %s158, %s172
      %p174 = scmp.eq.s32.totalorder %s22, 0
      %p175 = por %p173, %p174
      %s176 = ssub.s32 %s16, %s23
      %p177 = scmp.eq.s32.totalorder %s176, 0
      %s179 = sadd.s32 %s178, 1
      %s180 = scalar_select %p177, %s178, %s179
      %p183 = pneg %p177
      %p184 = scmp.eq.s32.totalorder %s16, 1
      %p185 = por %p183, %p184
      %p186 = scmp.ne.s32.totalorder %s178, %s181
      %p187 = scmp.eq.s32.totalorder %s16, 0
      %p188 = por %p186, %p187
      %p189 = scmp.ne.s32.totalorder %s178, %s181
      %p190 = scmp.eq.s32.totalorder %s21, 1
      %p191 = por %p189, %p190
      %p192 = scmp.ne.s32.totalorder %s181, %s182
      %p193 = scmp.eq.s32.totalorder %s21, 0
      %p194 = por %p192, %p193
      %p195 = scmp.ne.s32.totalorder %s181, %s182
      %p196 = scmp.eq.s32.totalorder %s22, 1
      %p197 = por %p195, %p196
      %p199 = scmp.ne.s32.totalorder %s182, %s198
      %p200 = scmp.eq.s32.totalorder %s22, 0
      %p201 = por %p199, %p200
      %p202 = scmp.le.s32.totalorder 1, %s16
      %p203 = scmp.lt.s32.totalorder %s16, 3
      %p204 = pnand %p202, %p203
      %p205 = pneg %p204
      // Predicated region
      $region9: #{mplstm_forward.7} parent=5 // pred_check
        _
      $region10: #{mplstm_forward.7} parent=5 // pred_check_branch
        %207 = sbr.rel (%p204) target = $region12
      $region11: #{mplstm_forward.7} parent=5 // pred_region
        %s208 = ssub.s32 %s16, 1
        // Predicated region
        $region13: #{mplstm_forward.7} parent=11 // pred_check
          %p209 = pneg %p63
        $region14: #{mplstm_forward.7} parent=11 // pred_check_branch
          %211 = sbr.rel (%p209) target = $region16
        $region15: #{mplstm_forward.7} parent=11 // pred_region
          _
        $region16: #{mplstm_forward.7} parent=11 // pred_fallthru
          _
        // Predicated region
        $region17: #{mplstm_forward.7} parent=11 // pred_check
          %p212 = pneg %p84
        $region18: #{mplstm_forward.7} parent=11 // pred_check_branch
          %214 = sbr.rel (%p212) target = $region20
        $region19: #{mplstm_forward.7} parent=11 // pred_region
          _
        $region20: #{mplstm_forward.7} parent=11 // pred_fallthru
          _
        // Predicated region
        $region21: #{mplstm_forward.7} parent=11 // pred_check
          %p215 = pneg %p105
        $region22: #{mplstm_forward.7} parent=11 // pred_check_branch
          %217 = sbr.rel (%p215) target = $region24
        $region23: #{mplstm_forward.7} parent=11 // pred_region
          _
        $region24: #{mplstm_forward.7} parent=11 // pred_fallthru
          _
        // Predicated region
        $region25: #{mplstm_forward.7} parent=11 // pred_check
          %p218 = pneg %p126
        $region26: #{mplstm_forward.7} parent=11 // pred_check_branch
          %220 = sbr.rel (%p218) target = $region28
        $region27: #{mplstm_forward.7} parent=11 // pred_region
          _
        $region28: #{mplstm_forward.7} parent=11 // pred_fallthru
          _
        // Predicated region
        $region29: #{mplstm_forward.7} parent=11 // pred_check
          %p221 = pneg %p147
        $region30: #{mplstm_forward.7} parent=11 // pred_check_branch
          %223 = sbr.rel (%p221) target = $region32
        $region31: #{mplstm_forward.7} parent=11 // pred_region
          _
        $region32: #{mplstm_forward.7} parent=11 // pred_fallthru
          _
        // Predicated region
        $region33: #{mplstm_forward.7} parent=11 // pred_check
          %p224 = pneg %p168
        $region34: #{mplstm_forward.7} parent=11 // pred_check_branch
          %226 = sbr.rel (%p224) target = $region36
        $region35: #{mplstm_forward.7} parent=11 // pred_region
          _
        $region36: #{mplstm_forward.7} parent=11 // pred_fallthru
          _
      $region12: #{mplstm_forward.7} parent=5 // pred_fallthru
        _
      %p227 = scmp.lt.s32.totalorder %s16, 2
      // Predicated region
      $region37: #{mplstm_forward.7} parent=5 // pred_check
        %p228 = pneg %p227
      $region38: #{mplstm_forward.7} parent=5 // pred_check_branch
        %230 = sbr.rel (%p228) target = $region40
      $region39: #{mplstm_forward.7} parent=5 // pred_region
        // Predicated region
        $region41: #{mplstm_forward.7} parent=39 // pred_check
          %p231 = pneg %p36
        $region42: #{mplstm_forward.7} parent=39 // pred_check_branch
          %233 = sbr.rel (%p231) target = $region44
        $region43: #{mplstm_forward.7} parent=39 // pred_region
          %p234 = scmp.lt.s32.totalorder %s16, 1
          %s235 = scalar_select %p234, %s16, 1
          %s236 = smul.addr %s235, 8
          %s237 = scalar_lea.vmem %s0, %s236
        $region44: #{mplstm_forward.7} parent=39 // pred_fallthru
          _
      $region40: #{mplstm_forward.7} parent=5 // pred_fallthru
        _
      %p238 = scmp.le.s32.totalorder 1, %s16
      %p239 = scmp.lt.s32.totalorder %s16, 3
      %p240 = pnand %p238, %p239
      %p241 = pneg %p240
      // Predicated region
      $region45: #{mplstm_forward.7} parent=5 // pred_check
        _
      $region46: #{mplstm_forward.7} parent=5 // pred_check_branch
        %243 = sbr.rel (%p240) target = $region48
      $region47: #{mplstm_forward.7} parent=5 // pred_region
        %s244 = ssub.s32 %s16, 1
        %p245 = scmp.lt.s32.totalorder %s21, 1
        %s246 = scalar_select %p245, %s21, 1
        %s247 = smul.addr %s246, 8
        %s248 = scalar_lea.vmem %s0, %s247
        %p249 = pneg %p42
        %p250 = pneg %p39
        %p251 = pneg %p63
        %p252 = pneg %p60
        %p253 = pneg %p84
        %p254 = pneg %p81
        %p255 = pneg %p105
        %p256 = pneg %p102
        %p257 = pneg %p126
        %p258 = pneg %p123
        %p259 = pneg %p147
        %p260 = pneg %p144
        %p261 = pneg %p168
        %p262 = pneg %p165
        %p263 = pneg %p194
        %p264 = pneg %p191
        %s265 = sand.u32 %s181, 1
        %s266 = scalar_lea.sflag [#allocation3], %s265
        %s267 = sand.u32 %s181, 1
        %s268 = smul.addr %s267, 8
        %s269 = scalar_lea.vmem [#allocation2], %s268
        %p270 = scmp.lt.s32.totalorder %s21, 1
        %s271 = scalar_select %p270, %s21, 1
        %s272 = smul.addr %s271, 8
        %s273 = scalar_lea.vmem %s0, %s272
        %v274 = vld [vmem:[%s273] sm:$0xff]
        %vm275 = vcmask 261120
        %v276 = vsel %vm275, %v274, 0.0
        %277 = vadd.xlane.f32.xlu0 %v276
        %v278 = vpop.xlane.xlu0 %277
        %v279 = vrcp.pop 32.0
        %v280 = vmul.f32 %v278, %v279
        %v281 = vsub.f32 %v274, %v280
        %v282 = vmul.f32 %v281, %v281
        %v283 = vsel %vm275, %v282, 0.0
        %284 = vadd.xlane.f32.xlu0 %v283
        %v285 = vpop.xlane.xlu0 %284
        %v286 = vmul.f32 %v285, %v279
        %v287 = vadd.f32 %v286, 1e-05
        %v288 = vrsqrt.pop %v287
        %v289 = vmul.f32 %v281, %v288
        %v290 = vld [vmem:[%s2] sm:$0x1]
        %v291 = vld [vmem:[%s1] sm:$0xff]
        %v292 = vld [vmem:[%s1 + $0x8] sm:$0xff]
        %v293 = vld [vmem:[%s1 + $0x10] sm:$0xff]
        %v294 = vld [vmem:[%s1 + $0x18] sm:$0xff]
        %v296 = vlaneseq
        %v297 = vshrl.u32 %v296, 7
        %v298 = vsub.s32 0, %v297
        %v299 = vrot.slane %v290, %v298
        %v302 = vsel %vm275, %v289, 0
        %304 = vmatprep.subr.mxu0 0.0
        %305 = vmatpush1.msra.mxu0 %v291
        %306 = vmatprep.subr.mxu0 0.0
        %307 = vmatpush1.msra.mxu0 %v292
        %308 = vmatprep.subr.mxu0 0.0
        %309 = vmatpush1.msra.mxu0 %v293
        %310 = vmatprep.subr.mxu0 0.0
        %311 = vmatpush1.msra.mxu0 %v294
        %312 = vmatprep.subr.mxu0 0.0
        %313 = vmatpush1.msra.mxu0 0.0
        %314 = vmatprep.subr.mxu0 0.0
        %315 = vmatpush1.msra.mxu0 0.0
        %316 = vmatprep.subr.mxu0 0.0
        %317 = vmatpush1.msra.mxu0 0.0
        %318 = vmatprep.subr.mxu0 0.0
        %319 = vmatpush1.msra.mxu0 0.0
        %320 = vmatprep.subr.mxu0 0.0
        %321 = vmatpush1.msra.mxu0 0.0
        %322 = vmatprep.subr.mxu0 0.0
        %323 = vmatpush1.msra.mxu0 0.0
        %324 = vmatprep.subr.mxu0 0.0
        %325 = vmatpush1.msra.mxu0 0.0
        %326 = vmatprep.subr.mxu0 0.0
        %327 = vmatpush1.msra.mxu0 0.0
        %328 = vmatprep.subr.mxu0 0.0
        %329 = vmatpush1.msra.mxu0 0.0
        %330 = vmatprep.subr.mxu0 0.0
        %331 = vmatpush1.msra.mxu0 0.0
        %332 = vmatprep.subr.mxu0 0.0
        %333 = vmatpush1.msra.mxu0 0.0
        %334 = vmatprep.subr.mxu0 0.0
        %335 = vmatpush1.msra.mxu0 0.0
        %336 = vmatprep.subr.mxu0 0.0
        %337 = vmatpush1.msra.mxu0 0.0
        %338 = vmatprep.subr.mxu0 0.0
        %339 = vmatpush1.msra.mxu0 0.0
        %340 = vmatprep.subr.mxu0 0.0
        %341 = vmatpush1.msra.mxu0 0.0
        %342 = vmatprep.subr.mxu0 0.0
        %343 = vmatpush1.msra.mxu0 0.0
        %344 = vmatprep.subr.mxu0 0.0
        %345 = vmatpush1.msra.mxu0 0.0
        %346 = vmatprep.subr.mxu0 0.0
        %347 = vmatpush1.msra.mxu0 0.0
        %348 = vmatprep.subr.mxu0 0.0
        %349 = vmatpush1.msra.mxu0 0.0
        %350 = vmatprep.subr.mxu0 0.0
        %351 = vmatpush1.msra.mxu0 0.0
        %352 = vmatprep.subr.mxu0 0.0
        %353 = vmatpush1.msra.mxu0 0.0
        %354 = vmatprep.subr.mxu0 0.0
        %355 = vmatpush1.msra.mxu0 0.0
        %356 = vmatprep.subr.mxu0 0.0
        %357 = vmatpush1.msra.mxu0 0.0
        %358 = vmatprep.subr.mxu0 0.0
        %359 = vmatpush1.msra.mxu0 0.0
        %360 = vmatprep.subr.mxu0 0.0
        %361 = vmatpush1.msra.mxu0 0.0
        %362 = vmatprep.subr.mxu0 0.0
        %363 = vmatpush1.msra.mxu0 0.0
        %364 = vmatprep.subr.mxu0 0.0
        %365 = vmatpush1.msra.mxu0 0.0
        %366 = vmatprep.subr.mxu0 0.0
        %367 = vmatpush1.msra.mxu0 0.0
        %368 = vmatprep.mubr.f32.mxu0 0.0
        %369 = vmatmul.mubr.f32.gmra.mrb[0].mxu0 %v302
        %v370 = vpop.f32.mrb[0].mxu0
        %v371 = vadd.f32 %v299, %v370
        %v372 = vpop.f32.mrb[0].mxu0
        %373 = vdwg.mxu0
        %v374 = vmax.f32 %v371, 0.0
        %376 = vrot.lane.b32.xlu0 %v371, 96
        %v377 = vpop.permute.xlu0 %376
        %v379 = vmul.f32 %v374, %v377
        %v380 = vlaneseq
        %v381 = vshrl.u32 %v380, 7
        %v382 = vlaneseq
        %v383 = vand.u32 %v382, 127
        %v384 = vsub.s32 %v381, %v383
        %vm385 = vcmp.ge.s32.totalorder %v384, 0
        %vm386 = vcmp.lt.s32.totalorder %v384, 20
        %vm387 = vmand %vm385, %vm386
        %v388 = vsel %vm387, 1, 0
        %v389 = vcvt.s32.f32 %v388
        %v390 = vmax.f32 %v290, 0.0
        %391 = vrot.lane.b32.xlu0 %v290, 96
        %v392 = vpop.permute.xlu0 %391
        %v394 = vmul.f32 %v390, %v392
        %v395 = vsub.s32 19, %v381
        %vm396 = vcmp.gt.s32.totalorder %v395, 0
        %v397 = vsel %vm396, %v395, 0
        %v398 = vcvt.s32.f32 %v397
        %v400 = vlaneseq
        %v401 = vshrl.u32 %v400, 7
        %v402 = vsub.s32 0, %v401
        %v403 = vrot.slane %v394, %v402
        %v405 = vmul.f32 %v398, %v403
        %407 = vrot.lane.b32.xlu0 %v379, 96
        %v408 = vpop.permute.xlu0 %407
        %411 = vrot.lane.b32.xlu0 %v405, 96
        %v412 = vpop.permute.xlu0 %411
        %vm414 = vcmask 64512
        %v416 = vsel %vm414, %v389, 0
        %418 = vmatprep.subr.mxu0 0.0
        %419 = vmatpush1.msra.mxu0 %v408
        %420 = vmatprep.subr.mxu0 0.0
        %421 = vmatpush1.msra.mxu0 0.0
        %422 = vmatprep.subr.mxu0 0.0
        %423 = vmatpush1.msra.mxu0 0.0
        %424 = vmatprep.subr.mxu0 0.0
        %425 = vmatpush1.msra.mxu0 0.0
        %426 = vmatprep.subr.mxu0 0.0
        %427 = vmatpush1.msra.mxu0 0.0
        %428 = vmatprep.subr.mxu0 0.0
        %429 = vmatpush1.msra.mxu0 0.0
        %430 = vmatprep.subr.mxu0 0.0
        %431 = vmatpush1.msra.mxu0 0.0
        %432 = vmatprep.subr.mxu0 0.0
        %433 = vmatpush1.msra.mxu0 0.0
        %434 = vmatprep.subr.mxu0 0.0
        %435 = vmatpush1.msra.mxu0 0.0
        %436 = vmatprep.subr.mxu0 0.0
        %437 = vmatpush1.msra.mxu0 0.0
        %438 = vmatprep.subr.mxu0 0.0
        %439 = vmatpush1.msra.mxu0 0.0
        %440 = vmatprep.subr.mxu0 0.0
        %441 = vmatpush1.msra.mxu0 0.0
        %442 = vmatprep.subr.mxu0 0.0
        %443 = vmatpush1.msra.mxu0 0.0
        %444 = vmatprep.subr.mxu0 0.0
        %445 = vmatpush1.msra.mxu0 0.0
        %446 = vmatprep.subr.mxu0 0.0
        %447 = vmatpush1.msra.mxu0 0.0
        %448 = vmatprep.subr.mxu0 0.0
        %449 = vmatpush1.msra.mxu0 0.0
        %450 = vmatprep.subr.mxu0 0.0
        %451 = vmatpush1.msra.mxu0 0.0
        %452 = vmatprep.subr.mxu0 0.0
        %453 = vmatpush1.msra.mxu0 0.0
        %454 = vmatprep.subr.mxu0 0.0
        %455 = vmatpush1.msra.mxu0 0.0
        %456 = vmatprep.subr.mxu0 0.0
        %457 = vmatpush1.msra.mxu0 0.0
        %458 = vmatprep.subr.mxu0 0.0
        %459 = vmatpush1.msra.mxu0 0.0
        %460 = vmatprep.subr.mxu0 0.0
        %461 = vmatpush1.msra.mxu0 0.0
        %462 = vmatprep.subr.mxu0 0.0
        %463 = vmatpush1.msra.mxu0 0.0
        %464 = vmatprep.subr.mxu0 0.0
        %465 = vmatpush1.msra.mxu0 0.0
        %466 = vmatprep.subr.mxu0 0.0
        %467 = vmatpush1.msra.mxu0 0.0
        %468 = vmatprep.subr.mxu0 0.0
        %469 = vmatpush1.msra.mxu0 0.0
        %470 = vmatprep.subr.mxu0 0.0
        %471 = vmatpush1.msra.mxu0 0.0
        %472 = vmatprep.subr.mxu0 0.0
        %473 = vmatpush1.msra.mxu0 0.0
        %474 = vmatprep.subr.mxu0 0.0
        %475 = vmatpush1.msra.mxu0 0.0
        %476 = vmatprep.subr.mxu0 0.0
        %477 = vmatpush1.msra.mxu0 0.0
        %478 = vmatprep.subr.mxu0 0.0
        %479 = vmatpush1.msra.mxu0 0.0
        %480 = vmatprep.subr.mxu0 0.0
        %481 = vmatpush1.msra.mxu0 0.0
        %482 = vmatprep.mubr.f32.mxu0 0.0
        %483 = vmatmul.mubr.f32.gmra.mrb[0].mxu0 %v416
        %v484 = vpop.f32.mrb[0].mxu0
        %v485 = vadd.f32 %v412, %v484
        %v486 = vpop.f32.mrb[0].mxu0
        %487 = vdwg.mxu0
        %v488 = vmul.f32 %v374, %v485
        %v489 = vld [vmem:[%s3] sm:$0xff]
        %v490 = vld [vmem:[%s3 + $0x8] sm:$0xff]
        %v491 = vld [vmem:[%s3 + $0x10] sm:$0xff]
        %v492 = vld [vmem:[%s3 + $0x18] sm:$0xff]
        %v493 = vld [vmem:[%s4] sm:$0x1]
        %v495 = vlaneseq
        %v496 = vshrl.u32 %v495, 7
        %v497 = vsub.s32 0, %v496
        %v498 = vrot.slane %v493, %v497
        %v501 = vsel %vm275, %v488, 0
        %503 = vmatprep.subr.mxu0 0.0
        %504 = vmatpush1.msra.mxu0 %v489
        %505 = vmatprep.subr.mxu0 0.0
        %506 = vmatpush1.msra.mxu0 %v490
        %507 = vmatprep.subr.mxu0 0.0
        %508 = vmatpush1.msra.mxu0 %v491
        %509 = vmatprep.subr.mxu0 0.0
        %510 = vmatpush1.msra.mxu0 %v492
        %511 = vmatprep.subr.mxu0 0.0
        %512 = vmatpush1.msra.mxu0 0.0
        %513 = vmatprep.subr.mxu0 0.0
        %514 = vmatpush1.msra.mxu0 0.0
        %515 = vmatprep.subr.mxu0 0.0
        %516 = vmatpush1.msra.mxu0 0.0
        %517 = vmatprep.subr.mxu0 0.0
        %518 = vmatpush1.msra.mxu0 0.0
        %519 = vmatprep.subr.mxu0 0.0
        %520 = vmatpush1.msra.mxu0 0.0
        %521 = vmatprep.subr.mxu0 0.0
        %522 = vmatpush1.msra.mxu0 0.0
        %523 = vmatprep.subr.mxu0 0.0
        %524 = vmatpush1.msra.mxu0 0.0
        %525 = vmatprep.subr.mxu0 0.0
        %526 = vmatpush1.msra.mxu0 0.0
        %527 = vmatprep.subr.mxu0 0.0
        %528 = vmatpush1.msra.mxu0 0.0
        %529 = vmatprep.subr.mxu0 0.0
        %530 = vmatpush1.msra.mxu0 0.0
        %531 = vmatprep.subr.mxu0 0.0
        %532 = vmatpush1.msra.mxu0 0.0
        %533 = vmatprep.subr.mxu0 0.0
        %534 = vmatpush1.msra.mxu0 0.0
        %535 = vmatprep.subr.mxu0 0.0
        %536 = vmatpush1.msra.mxu0 0.0
        %537 = vmatprep.subr.mxu0 0.0
        %538 = vmatpush1.msra.mxu0 0.0
        %539 = vmatprep.subr.mxu0 0.0
        %540 = vmatpush1.msra.mxu0 0.0
        %541 = vmatprep.subr.mxu0 0.0
        %542 = vmatpush1.msra.mxu0 0.0
        %543 = vmatprep.subr.mxu0 0.0
        %544 = vmatpush1.msra.mxu0 0.0
        %545 = vmatprep.subr.mxu0 0.0
        %546 = vmatpush1.msra.mxu0 0.0
        %547 = vmatprep.subr.mxu0 0.0
        %548 = vmatpush1.msra.mxu0 0.0
        %549 = vmatprep.subr.mxu0 0.0
        %550 = vmatpush1.msra.mxu0 0.0
        %551 = vmatprep.subr.mxu0 0.0
        %552 = vmatpush1.msra.mxu0 0.0
        %553 = vmatprep.subr.mxu0 0.0
        %554 = vmatpush1.msra.mxu0 0.0
        %555 = vmatprep.subr.mxu0 0.0
        %556 = vmatpush1.msra.mxu0 0.0
        %557 = vmatprep.subr.mxu0 0.0
        %558 = vmatpush1.msra.mxu0 0.0
        %559 = vmatprep.subr.mxu0 0.0
        %560 = vmatpush1.msra.mxu0 0.0
        %561 = vmatprep.subr.mxu0 0.0
        %562 = vmatpush1.msra.mxu0 0.0
        %563 = vmatprep.subr.mxu0 0.0
        %564 = vmatpush1.msra.mxu0 0.0
        %565 = vmatprep.subr.mxu0 0.0
        %566 = vmatpush1.msra.mxu0 0.0
        %567 = vmatprep.mubr.f32.mxu0 0.0
        %568 = vmatmul.mubr.f32.gmra.mrb[0].mxu0 %v501
        %v569 = vpop.f32.mrb[0].mxu0
        %v570 = vadd.f32 %v498, %v569
        %v571 = vpop.f32.mrb[0].mxu0
        %572 = vdwg.mxu0
        %v573 = vmul.f32 %v570, 1.702
        %v574 = vxor.u32 %v573, 2147483648
        %v575 = vmul.f32 %v574, 1.442695
        %v576 = vpow.pop %v575
        %v577 = vadd.f32 %v576, 1.0
        %v578 = vrcp.pop %v577
        %v579 = vmul.f32 1.0, %v578
        %v580 = vmul.f32 %v570, %v579
        %v581 = vld [vmem:[%s5] sm:$0xff]
        %v582 = vld [vmem:[%s5 + $0x8] sm:$0xff]
        %v583 = vld [vmem:[%s5 + $0x10] sm:$0xff]
        %v584 = vld [vmem:[%s5 + $0x18] sm:$0xff]
        %v585 = vld [vmem:[%s5 + $0x20] sm:$0xff]
        %v586 = vld [vmem:[%s5 + $0x28] sm:$0xff]
        %v587 = vld [vmem:[%s5 + $0x30] sm:$0xff]
        %v588 = vld [vmem:[%s5 + $0x38] sm:$0xff]
        %v589 = vld [vmem:[%s6] sm:$0x1]
        %v591 = vlaneseq
        %v592 = vshrl.u32 %v591, 7
        %v593 = vsub.s32 0, %v592
        %v594 = vrot.slane %v589, %v593
        %vm596 = vcmask 523264
        %v598 = vsel %vm596, %v580, 0
        %600 = vmatprep.subr.mxu0 0.0
        %601 = vmatpush1.msra.mxu0 %v581
        %602 = vmatprep.subr.mxu0 0.0
        %603 = vmatpush1.msra.mxu0 %v582
        %604 = vmatprep.subr.mxu0 0.0
        %605 = vmatpush1.msra.mxu0 %v583
        %606 = vmatprep.subr.mxu0 0.0
        %607 = vmatpush1.msra.mxu0 %v584
        %608 = vmatprep.subr.mxu0 0.0
        %609 = vmatpush1.msra.mxu0 %v585
        %610 = vmatprep.subr.mxu0 0.0
        %611 = vmatpush1.msra.mxu0 %v586
        %612 = vmatprep.subr.mxu0 0.0
        %613 = vmatpush1.msra.mxu0 %v587
        %614 = vmatprep.subr.mxu0 0.0
        %615 = vmatpush1.msra.mxu0 %v588
        %616 = vmatprep.subr.mxu0 0.0
        %617 = vmatpush1.msra.mxu0 0.0
        %618 = vmatprep.subr.mxu0 0.0
        %619 = vmatpush1.msra.mxu0 0.0
        %620 = vmatprep.subr.mxu0 0.0
        %621 = vmatpush1.msra.mxu0 0.0
        %622 = vmatprep.subr.mxu0 0.0
        %623 = vmatpush1.msra.mxu0 0.0
        %624 = vmatprep.subr.mxu0 0.0
        %625 = vmatpush1.msra.mxu0 0.0
        %626 = vmatprep.subr.mxu0 0.0
        %627 = vmatpush1.msra.mxu0 0.0
        %628 = vmatprep.subr.mxu0 0.0
        %629 = vmatpush1.msra.mxu0 0.0
        %630 = vmatprep.subr.mxu0 0.0
        %631 = vmatpush1.msra.mxu0 0.0
        %632 = vmatprep.subr.mxu0 0.0
        %633 = vmatpush1.msra.mxu0 0.0
        %634 = vmatprep.subr.mxu0 0.0
        %635 = vmatpush1.msra.mxu0 0.0
        %636 = vmatprep.subr.mxu0 0.0
        %637 = vmatpush1.msra.mxu0 0.0
        %638 = vmatprep.subr.mxu0 0.0
        %639 = vmatpush1.msra.mxu0 0.0
        %640 = vmatprep.subr.mxu0 0.0
        %641 = vmatpush1.msra.mxu0 0.0
        %642 = vmatprep.subr.mxu0 0.0
        %643 = vmatpush1.msra.mxu0 0.0
        %644 = vmatprep.subr.mxu0 0.0
        %645 = vmatpush1.msra.mxu0 0.0
        %646 = vmatprep.subr.mxu0 0.0
        %647 = vmatpush1.msra.mxu0 0.0
        %648 = vmatprep.subr.mxu0 0.0
        %649 = vmatpush1.msra.mxu0 0.0
        %650 = vmatprep.subr.mxu0 0.0
        %651 = vmatpush1.msra.mxu0 0.0
        %652 = vmatprep.subr.mxu0 0.0
        %653 = vmatpush1.msra.mxu0 0.0
        %654 = vmatprep.subr.mxu0 0.0
        %655 = vmatpush1.msra.mxu0 0.0
        %656 = vmatprep.subr.mxu0 0.0
        %657 = vmatpush1.msra.mxu0 0.0
        %658 = vmatprep.subr.mxu0 0.0
        %659 = vmatpush1.msra.mxu0 0.0
        %660 = vmatprep.subr.mxu0 0.0
        %661 = vmatpush1.msra.mxu0 0.0
        %662 = vmatprep.subr.mxu0 0.0
        %663 = vmatpush1.msra.mxu0 0.0
        %664 = vmatprep.mubr.f32.mxu0 0.0
        %665 = vmatmul.mubr.f32.gmra.mrb[0].mxu0 %v598
        %v666 = vpop.f32.mrb[0].mxu0
        %v667 = vadd.f32 %v594, %v666
        %v668 = vpop.f32.mrb[0].mxu0
        %669 = vdwg.mxu0
        %670 = vst.msk [vmem:[%s269] sm:$0xff] %vm275, %v667
        %s671 = sand.u32 %s181, 1
        %s672 = scalar_lea.sflag [#allocation3], %s671
        %s673 = sand.u32 %s181, 1
        %s674 = smul.addr %s673, 8
        %s675 = scalar_lea.vmem [#allocation2], %s674
        // Predicated region
        $region49: #{mplstm_forward.7} parent=47 // pred_check
          %p676 = pneg %p191
        $region50: #{mplstm_forward.7} parent=47 // pred_check_branch
          %678 = sbr.rel (%p676) target = $region52
        $region51: #{mplstm_forward.7} parent=47 // pred_region
          %s680 = ssub.s32 128, 128
          %681 = vsyncadd %s672, %s680
          %s682 = smul.addr %s21, 128
          %s683 = scalar_lea.hbm %s7, %s682
          %s685 = sshll.u32 %s675, 4
          %s686 = int_to_ptr.vmem [resolvable:$true] %s685
          %688 = dma.vmem_to_hbm [thread:$0]  %s686, 128, %s683, %s672
        $region52: #{mplstm_forward.7} parent=47 // pred_fallthru
          _
      $region48: #{mplstm_forward.7} parent=5 // pred_fallthru
        _
      %p689 = scmp.le.s32.totalorder 2, %s16
      // Predicated region
      $region53: #{mplstm_forward.7} parent=5 // pred_check
        %p690 = pneg %p689
      $region54: #{mplstm_forward.7} parent=5 // pred_check_branch
        %692 = sbr.rel (%p690) target = $region56
      $region55: #{mplstm_forward.7} parent=5 // pred_region
        %s693 = ssub.s32 %s16, 2
        // Predicated region
        $region57: #{mplstm_forward.7} parent=55 // pred_check
          %p694 = pneg %p197
        $region58: #{mplstm_forward.7} parent=55 // pred_check_branch
          %696 = sbr.rel (%p694) target = $region60
        $region59: #{mplstm_forward.7} parent=55 // pred_region
          %s697 = sand.u32 %s182, 1
          %s698 = scalar_lea.sflag [#allocation3], %s697
          %s699 = sand.u32 %s182, 1
          %s700 = smul.addr %s699, 8
          %s701 = scalar_lea.vmem [#allocation2], %s700
          %702 = dma.done %s698, 128
        $region60: #{mplstm_forward.7} parent=55 // pred_fallthru
          _
      $region56: #{mplstm_forward.7} parent=5 // pred_fallthru
        _
    $region6: #{mplstm_forward.7} parent=1 // loop_footer
      %s20 = sadd.s32 1, %s16
    $region7: #{mplstm_forward.7} parent=1 // loop_footer_branch
      %15 = sbr.rel target = $region3
    $region8: #{mplstm_forward.7} parent=1 // loop_exit
      _
    %703 = vsyncpa [#allocation3], 1
    %s704 = scalar_lea.sflag [#allocation3], 1
    %705 = vsyncpa %s704, 1

// kernel: mplstm_forward.4
$region0: #{mplstm_forward.4}
  #allocation0 [shape = 'u32[]', space=smem, size = 0x4, offset = 0x4, fixed_abs, tag = 'smem constant byte address 0x4 - core index']
  #allocation1 [shape = 'u32[144,128]{1,0:T(1,128)}', space=vmem, size = 0x12000, scoped, tag = 'internal scratch']
  #allocation2 [shape = 'f32[8,2,128]{2,1,0:T(2,128)}', space=vmem, size = 0x2000, scoped, tag = 'scratch operand']
  %s0 = inlined_call_operand.vmem [shape: f32[8,2,32], index: 0, kind: input, shape index: {}]
  %s1 = inlined_call_operand.vmem [shape: f32[1,32], index: 1, kind: input, shape index: {}]
  %s2 = inlined_call_operand.vmem [shape: f32[1,32], index: 2, kind: input, shape index: {}]
  %s3 = inlined_call_operand.vmem [shape: f32[2,32,128], index: 3, kind: input, shape index: {}]
  %s4 = inlined_call_operand.vmem [shape: f32[2,32,128], index: 4, kind: input, shape index: {}]
  %s5 = inlined_call_operand.vmem [shape: f32[2,1,128], index: 5, kind: input, shape index: {}]
  %s6 = inlined_call_operand.vmem [shape: f32[8,2,32], index: 6, kind: output, shape index: {0}]
  %s7 = inlined_call_operand.hbm [shape: f32[2,2,32], index: 7, kind: output, shape index: {1}]
  %s8 = inlined_call_operand.hbm [shape: f32[2,2,32], index: 8, kind: output, shape index: {2}]
  %9 = xla_tuple %s6, %s7, %s8
  %s10 = sld [smem:[#allocation0]]
  $region64: #{mplstm_forward.4} parent=0
    _
  %s12 = ssub.s32 1, %s10
  %s13 = scalar_select 0, %s12, %s10
  $region1: #{mplstm_forward.4} parent=0
    #allocation3 [shape = 'u8[2048]{0}', space=vmem, size = 0x800, scoped, tag = 'output window, operand 1, single buffered']
    #allocation4 [shape = 's32[1]{0}', space=sflag, size = 0x4, scoped, tag = 'scoped memory for mplstm_forward.4']
    #allocation5 [shape = 'u8[2048]{0}', space=vmem, size = 0x800, scoped, tag = 'output window, operand 2, single buffered']
    #allocation6 [shape = 's32[1]{0}', space=sflag, size = 0x4, scoped, tag = 'scoped memory for mplstm_forward.4']
    %14 = vsyncpa [#allocation4], 0
    %15 = vsyncpa [#allocation6], 0
    // Predicated region
    $region2: #{mplstm_forward.4} parent=1 // pred_check
      _
    $region3: #{mplstm_forward.4} parent=1 // pred_check_branch
      %17 = sbr.rel (0) target = $region5
    $region4: #{mplstm_forward.4} parent=1 // pred_region
      _
    $region5: #{mplstm_forward.4} parent=1 // pred_fallthru
      _
    // Predicated region
    $region6: #{mplstm_forward.4} parent=1 // pred_check
      _
    $region7: #{mplstm_forward.4} parent=1 // pred_check_branch
      %19 = sbr.rel (0) target = $region9
    $region8: #{mplstm_forward.4} parent=1 // pred_region
      _
    $region9: #{mplstm_forward.4} parent=1 // pred_fallthru
      _
    // Predicated region
    $region10: #{mplstm_forward.4} parent=1 // pred_check
      _
    $region11: #{mplstm_forward.4} parent=1 // pred_check_branch
      %21 = sbr.rel (0) target = $region13
    $region12: #{mplstm_forward.4} parent=1 // pred_region
      _
    $region13: #{mplstm_forward.4} parent=1 // pred_fallthru
      _
    // Predicated region
    $region14: #{mplstm_forward.4} parent=1 // pred_check
      _
    $region15: #{mplstm_forward.4} parent=1 // pred_check_branch
      %23 = sbr.rel (0) target = $region17
    $region16: #{mplstm_forward.4} parent=1 // pred_region
      _
    $region17: #{mplstm_forward.4} parent=1 // pred_fallthru
      _
    // Predicated region
    $region18: #{mplstm_forward.4} parent=1 // pred_check
      _
    $region19: #{mplstm_forward.4} parent=1 // pred_check_branch
      %25 = sbr.rel (0) target = $region21
    $region20: #{mplstm_forward.4} parent=1 // pred_region
      _
    $region21: #{mplstm_forward.4} parent=1 // pred_fallthru
      _
    // Predicated region
    $region22: #{mplstm_forward.4} parent=1 // pred_check
      _
    $region23: #{mplstm_forward.4} parent=1 // pred_check_branch
      %27 = sbr.rel (0) target = $region25
    $region24: #{mplstm_forward.4} parent=1 // pred_region
      _
    $region25: #{mplstm_forward.4} parent=1 // pred_fallthru
      _
    %v28 = vld [vmem:[%s0] sm:$0x3]
    %v29 = vld [vmem:[%s0 + $0x2] sm:$0x3]
    %v30 = vld [vmem:[%s0 + $0x4] sm:$0x3]
    %v31 = vld [vmem:[%s0 + $0x6] sm:$0x3]
    %v32 = vld [vmem:[%s0 + $0x8] sm:$0x3]
    %v33 = vld [vmem:[%s0 + $0xa] sm:$0x3]
    %v34 = vld [vmem:[%s0 + $0xc] sm:$0x3]
    %v35 = vld [vmem:[%s0 + $0xe] sm:$0x3]
    %v44 = vcombine.low %v28, %v29
    %v45 = vcombine.low %v30, %v31
    %v47 = vunpack.c.l.s4 1983009808
    %v48 = vunpack.c.0.s8 %v47
    %v49 = vlaneseq
    %v50 = vshrl.u32 %v49, 7
    %v51 = vsub.s32 %v48, %v50
    %v52 = vrot.slane %v44, %v51
    %v54 = vunpack.c.l.s4 1983009808
    %v55 = vunpack.c.0.s8 %v54
    %v56 = vlaneseq
    %v57 = vshrl.u32 %v56, 7
    %v58 = vsub.s32 %v55, %v57
    %v59 = vrot.slane %v45, %v58
    %v60 = vcombine.low %v52, %v59
    %v61 = vcombine.low %v32, %v33
    %v62 = vcombine.low %v34, %v35
    %v64 = vunpack.c.l.s4 1983009808
    %v65 = vunpack.c.0.s8 %v64
    %v66 = vlaneseq
    %v67 = vshrl.u32 %v66, 7
    %v68 = vsub.s32 %v65, %v67
    %v69 = vrot.slane %v61, %v68
    %v71 = vunpack.c.l.s4 1983009808
    %v72 = vunpack.c.0.s8 %v71
    %v73 = vlaneseq
    %v74 = vshrl.u32 %v73, 7
    %v75 = vsub.s32 %v72, %v74
    %v76 = vrot.slane %v62, %v75
    %v77 = vcombine.low %v69, %v76
    %vm80 = vcmask 261120
    %v81 = vsel %vm80, %v60, 0.0
    %82 = vadd.xlane.f32.xlu0 %v81
    %v83 = vpop.xlane.xlu0 %82
    %v84 = vsel %vm80, %v77, 0.0
    %85 = vadd.xlane.f32.xlu0 %v84
    %v86 = vpop.xlane.xlu0 %85
    %v87 = vrcp.pop 32.0
    %v88 = vmul.f32 %v83, %v87
    %v89 = vmul.f32 %v86, %v87
    %v93 = vunpack.c.l.s4 269488144
    %v94 = vunpack.c.0.s8 %v93
    %v95 = vlaneseq
    %v96 = vshrl.u32 %v95, 7
    %v97 = vsub.s32 %v94, %v96
    %v98 = vrot.slane %v88, %v97
    %v100 = vunpack.c.l.s4 842150450
    %v101 = vunpack.c.0.s8 %v100
    %v102 = vlaneseq
    %v103 = vshrl.u32 %v102, 7
    %v104 = vsub.s32 %v101, %v103
    %v105 = vrot.slane %v88, %v104
    %v107 = vunpack.c.l.s4 1414812756
    %v108 = vunpack.c.0.s8 %v107
    %v109 = vlaneseq
    %v110 = vshrl.u32 %v109, 7
    %v111 = vsub.s32 %v108, %v110
    %v112 = vrot.slane %v88, %v111
    %v114 = vunpack.c.l.s4 1987475062
    %v115 = vunpack.c.0.s8 %v114
    %v116 = vlaneseq
    %v117 = vshrl.u32 %v116, 7
    %v118 = vsub.s32 %v115, %v117
    %v119 = vrot.slane %v88, %v118
    %v121 = vunpack.c.l.s4 269488144
    %v122 = vunpack.c.0.s8 %v121
    %v123 = vlaneseq
    %v124 = vshrl.u32 %v123, 7
    %v125 = vsub.s32 %v122, %v124
    %v126 = vrot.slane %v89, %v125
    %v128 = vunpack.c.l.s4 842150450
    %v129 = vunpack.c.0.s8 %v128
    %v130 = vlaneseq
    %v131 = vshrl.u32 %v130, 7
    %v132 = vsub.s32 %v129, %v131
    %v133 = vrot.slane %v89, %v132
    %v135 = vunpack.c.l.s4 1414812756
    %v136 = vunpack.c.0.s8 %v135
    %v137 = vlaneseq
    %v138 = vshrl.u32 %v137, 7
    %v139 = vsub.s32 %v136, %v138
    %v140 = vrot.slane %v89, %v139
    %v142 = vunpack.c.l.s4 1987475062
    %v143 = vunpack.c.0.s8 %v142
    %v144 = vlaneseq
    %v145 = vshrl.u32 %v144, 7
    %v146 = vsub.s32 %v143, %v145
    %v147 = vrot.slane %v89, %v146
    %v156 = vsub.f32 %v28, %v98
    %v157 = vsub.f32 %v29, %v105
    %v158 = vsub.f32 %v30, %v112
    %v159 = vsub.f32 %v31, %v119
    %v160 = vsub.f32 %v32, %v126
    %v161 = vsub.f32 %v33, %v133
    %v162 = vsub.f32 %v34, %v140
    %v163 = vsub.f32 %v35, %v147
    %v164 = vmul.f32 %v156, %v156
    %v165 = vmul.f32 %v157, %v157
    %v166 = vmul.f32 %v158, %v158
    %v167 = vmul.f32 %v159, %v159
    %v168 = vmul.f32 %v160, %v160
    %v169 = vmul.f32 %v161, %v161
    %v170 = vmul.f32 %v162, %v162
    %v171 = vmul.f32 %v163, %v163
    %v180 = vcombine.low %v164, %v165
    %v181 = vcombine.low %v166, %v167
    %v183 = vunpack.c.l.s4 1983009808
    %v184 = vunpack.c.0.s8 %v183
    %v185 = vlaneseq
    %v186 = vshrl.u32 %v185, 7
    %v187 = vsub.s32 %v184, %v186
    %v188 = vrot.slane %v180, %v187
    %v190 = vunpack.c.l.s4 1983009808
    %v191 = vunpack.c.0.s8 %v190
    %v192 = vlaneseq
    %v193 = vshrl.u32 %v192, 7
    %v194 = vsub.s32 %v191, %v193
    %v195 = vrot.slane %v181, %v194
    %v196 = vcombine.low %v188, %v195
    %v197 = vcombine.low %v168, %v169
    %v198 = vcombine.low %v170, %v171
    %v200 = vunpack.c.l.s4 1983009808
    %v201 = vunpack.c.0.s8 %v200
    %v202 = vlaneseq
    %v203 = vshrl.u32 %v202, 7
    %v204 = vsub.s32 %v201, %v203
    %v205 = vrot.slane %v197, %v204
    %v207 = vunpack.c.l.s4 1983009808
    %v208 = vunpack.c.0.s8 %v207
    %v209 = vlaneseq
    %v210 = vshrl.u32 %v209, 7
    %v211 = vsub.s32 %v208, %v210
    %v212 = vrot.slane %v198, %v211
    %v213 = vcombine.low %v205, %v212
    %v216 = vsel %vm80, %v196, 0.0
    %217 = vadd.xlane.f32.xlu0 %v216
    %v218 = vpop.xlane.xlu0 %217
    %v219 = vsel %vm80, %v213, 0.0
    %220 = vadd.xlane.f32.xlu0 %v219
    %v221 = vpop.xlane.xlu0 %220
    %v222 = vmul.f32 %v218, %v87
    %v223 = vmul.f32 %v221, %v87
    %v224 = vadd.f32 %v222, 1e-05
    %v225 = vadd.f32 %v223, 1e-05
    %v226 = vrsqrt.pop %v224
    %v227 = vrsqrt.pop %v225
    %v231 = vunpack.c.l.s4 269488144
    %v232 = vunpack.c.0.s8 %v231
    %v233 = vlaneseq
    %v234 = vshrl.u32 %v233, 7
    %v235 = vsub.s32 %v232, %v234
    %v236 = vrot.slane %v226, %v235
    %v238 = vunpack.c.l.s4 842150450
    %v239 = vunpack.c.0.s8 %v238
    %v240 = vlaneseq
    %v241 = vshrl.u32 %v240, 7
    %v242 = vsub.s32 %v239, %v241
    %v243 = vrot.slane %v226, %v242
    %v245 = vunpack.c.l.s4 1414812756
    %v246 = vunpack.c.0.s8 %v245
    %v247 = vlaneseq
    %v248 = vshrl.u32 %v247, 7
    %v249 = vsub.s32 %v246, %v248
    %v250 = vrot.slane %v226, %v249
    %v252 = vunpack.c.l.s4 1987475062
    %v253 = vunpack.c.0.s8 %v252
    %v254 = vlaneseq
    %v255 = vshrl.u32 %v254, 7
    %v256 = vsub.s32 %v253, %v255
    %v257 = vrot.slane %v226, %v256
    %v259 = vunpack.c.l.s4 269488144
    %v260 = vunpack.c.0.s8 %v259
    %v261 = vlaneseq
    %v262 = vshrl.u32 %v261, 7
    %v263 = vsub.s32 %v260, %v262
    %v264 = vrot.slane %v227, %v263
    %v266 = vunpack.c.l.s4 842150450
    %v267 = vunpack.c.0.s8 %v266
    %v268 = vlaneseq
    %v269 = vshrl.u32 %v268, 7
    %v270 = vsub.s32 %v267, %v269
    %v271 = vrot.slane %v227, %v270
    %v273 = vunpack.c.l.s4 1414812756
    %v274 = vunpack.c.0.s8 %v273
    %v275 = vlaneseq
    %v276 = vshrl.u32 %v275, 7
    %v277 = vsub.s32 %v274, %v276
    %v278 = vrot.slane %v227, %v277
    %v280 = vunpack.c.l.s4 1987475062
    %v281 = vunpack.c.0.s8 %v280
    %v282 = vlaneseq
    %v283 = vshrl.u32 %v282, 7
    %v284 = vsub.s32 %v281, %v283
    %v285 = vrot.slane %v227, %v284
    %v294 = vmul.f32 %v156, %v236
    %v295 = vmul.f32 %v157, %v243
    %v296 = vmul.f32 %v158, %v250
    %v297 = vmul.f32 %v159, %v257
    %v298 = vmul.f32 %v160, %v264
    %v299 = vmul.f32 %v161, %v271
    %v300 = vmul.f32 %v162, %v278
    %v301 = vmul.f32 %v163, %v285
    %v302 = vld [vmem:[%s1] sm:$0x1]
    %v304 = vlaneseq
    %v305 = vshrl.u32 %v304, 7
    %v306 = vsub.s32 0, %v305
    %v307 = vrot.slane %v302, %v306
    %v308 = vcombine.high %v307, %v307
    %v310 = vunpack.c.l.s4 1983009808
    %v311 = vunpack.c.0.s8 %v310
    %v312 = vlaneseq
    %v313 = vshrl.u32 %v312, 7
    %v314 = vsub.s32 %v311, %v313
    %v315 = vrot.slane %v307, %v314
    %v317 = vunpack.c.l.s4 1983009808
    %v318 = vunpack.c.0.s8 %v317
    %v319 = vlaneseq
    %v320 = vshrl.u32 %v319, 7
    %v321 = vsub.s32 %v318, %v320
    %v322 = vrot.slane %v308, %v321
    %v323 = vcombine.high %v315, %v315
    %v324 = vcombine.high %v322, %v322
    %v329 = vmul.f32 %v294, %v315
    %v330 = vmul.f32 %v295, %v323
    %v331 = vmul.f32 %v296, %v322
    %v332 = vmul.f32 %v297, %v324
    %v333 = vmul.f32 %v298, %v315
    %v334 = vmul.f32 %v299, %v323
    %v335 = vmul.f32 %v300, %v322
    %v336 = vmul.f32 %v301, %v324
    %v337 = vld [vmem:[%s2] sm:$0x1]
    %v339 = vlaneseq
    %v340 = vshrl.u32 %v339, 7
    %v341 = vsub.s32 0, %v340
    %v342 = vrot.slane %v337, %v341
    %v343 = vcombine.high %v342, %v342
    %v345 = vunpack.c.l.s4 1983009808
    %v346 = vunpack.c.0.s8 %v345
    %v347 = vlaneseq
    %v348 = vshrl.u32 %v347, 7
    %v349 = vsub.s32 %v346, %v348
    %v350 = vrot.slane %v342, %v349
    %v352 = vunpack.c.l.s4 1983009808
    %v353 = vunpack.c.0.s8 %v352
    %v354 = vlaneseq
    %v355 = vshrl.u32 %v354, 7
    %v356 = vsub.s32 %v353, %v355
    %v357 = vrot.slane %v343, %v356
    %v358 = vcombine.high %v350, %v350
    %v359 = vcombine.high %v357, %v357
    %v364 = vadd.f32 %v329, %v350
    %v365 = vadd.f32 %v330, %v358
    %v366 = vadd.f32 %v331, %v357
    %v367 = vadd.f32 %v332, %v359
    %v368 = vadd.f32 %v333, %v350
    %v369 = vadd.f32 %v334, %v358
    %v370 = vadd.f32 %v335, %v357
    %v371 = vadd.f32 %v336, %v359
    %v372 = vld [vmem:[%s3] sm:$0xff]
    %v373 = vld [vmem:[%s3 + $0x8] sm:$0xff]
    %v374 = vld [vmem:[%s3 + $0x10] sm:$0xff]
    %v375 = vld [vmem:[%s3 + $0x18] sm:$0xff]
    %v376 = vld [vmem:[%s4] sm:$0xff]
    %v377 = vld [vmem:[%s4 + $0x8] sm:$0xff]
    %v378 = vld [vmem:[%s4 + $0x10] sm:$0xff]
    %v379 = vld [vmem:[%s4 + $0x18] sm:$0xff]
    %v380 = vld [vmem:[%s5] sm:$0x1]
    %v382 = vlaneseq
    %v383 = vshrl.u32 %v382, 7
    %v384 = vsub.s32 0, %v383
    %v385 = vrot.slane %v380, %v384
    %v395 = vcombine.low %v364, %v365
    %v396 = vcombine.low %v366, %v367
    %v398 = vunpack.c.l.s4 1983009808
    %v399 = vunpack.c.0.s8 %v398
    %v400 = vlaneseq
    %v401 = vshrl.u32 %v400, 7
    %v402 = vsub.s32 %v399, %v401
    %v403 = vrot.slane %v395, %v402
    %v405 = vunpack.c.l.s4 1983009808
    %v406 = vunpack.c.0.s8 %v405
    %v407 = vlaneseq
    %v408 = vshrl.u32 %v407, 7
    %v409 = vsub.s32 %v406, %v408
    %v410 = vrot.slane %v396, %v409
    %v411 = vcombine.low %v403, %v410
    %v412 = vcombine.low %v368, %v369
    %v413 = vcombine.low %v370, %v371
    %v415 = vunpack.c.l.s4 1983009808
    %v416 = vunpack.c.0.s8 %v415
    %v417 = vlaneseq
    %v418 = vshrl.u32 %v417, 7
    %v419 = vsub.s32 %v416, %v418
    %v420 = vrot.slane %v412, %v419
    %v422 = vunpack.c.l.s4 1983009808
    %v423 = vunpack.c.0.s8 %v422
    %v424 = vlaneseq
    %v425 = vshrl.u32 %v424, 7
    %v426 = vsub.s32 %v423, %v425
    %v427 = vrot.slane %v413, %v426
    %v428 = vcombine.low %v420, %v427
    %v429 = vsel %vm80, %v411, 0
    %v431 = vsel %vm80, %v428, 0
    %433 = vmatprep.subr.mxu0 0.0
    %434 = vmatpush1.msra.mxu0 %v372
    %435 = vmatprep.subr.mxu0 0.0
    %436 = vmatpush1.msra.mxu0 %v373
    %437 = vmatprep.subr.mxu0 0.0
    %438 = vmatpush1.msra.mxu0 %v374
    %439 = vmatprep.subr.mxu0 0.0
    %440 = vmatpush1.msra.mxu0 %v375
    %441 = vmatprep.subr.mxu0 0.0
    %442 = vmatpush1.msra.mxu0 0.0
    %443 = vmatprep.subr.mxu0 0.0
    %444 = vmatpush1.msra.mxu0 0.0
    %445 = vmatprep.subr.mxu0 0.0
    %446 = vmatpush1.msra.mxu0 0.0
    %447 = vmatprep.subr.mxu0 0.0
    %448 = vmatpush1.msra.mxu0 0.0
    %449 = vmatprep.subr.mxu0 0.0
    %450 = vmatpush1.msra.mxu0 0.0
    %451 = vmatprep.subr.mxu0 0.0
    %452 = vmatpush1.msra.mxu0 0.0
    %453 = vmatprep.subr.mxu0 0.0
    %454 = vmatpush1.msra.mxu0 0.0
    %455 = vmatprep.subr.mxu0 0.0
    %456 = vmatpush1.msra.mxu0 0.0
    %457 = vmatprep.subr.mxu0 0.0
    %458 = vmatpush1.msra.mxu0 0.0
    %459 = vmatprep.subr.mxu0 0.0
    %460 = vmatpush1.msra.mxu0 0.0
    %461 = vmatprep.subr.mxu0 0.0
    %462 = vmatpush1.msra.mxu0 0.0
    %463 = vmatprep.subr.mxu0 0.0
    %464 = vmatpush1.msra.mxu0 0.0
    %465 = vmatprep.subr.mxu0 0.0
    %466 = vmatpush1.msra.mxu0 0.0
    %467 = vmatprep.subr.mxu0 0.0
    %468 = vmatpush1.msra.mxu0 0.0
    %469 = vmatprep.subr.mxu0 0.0
    %470 = vmatpush1.msra.mxu0 0.0
    %471 = vmatprep.subr.mxu0 0.0
    %472 = vmatpush1.msra.mxu0 0.0
    %473 = vmatprep.subr.mxu0 0.0
    %474 = vmatpush1.msra.mxu0 0.0
    %475 = vmatprep.subr.mxu0 0.0
    %476 = vmatpush1.msra.mxu0 0.0
    %477 = vmatprep.subr.mxu0 0.0
    %478 = vmatpush1.msra.mxu0 0.0
    %479 = vmatprep.subr.mxu0 0.0
    %480 = vmatpush1.msra.mxu0 0.0
    %481 = vmatprep.subr.mxu0 0.0
    %482 = vmatpush1.msra.mxu0 0.0
    %483 = vmatprep.subr.mxu0 0.0
    %484 = vmatpush1.msra.mxu0 0.0
    %485 = vmatprep.subr.mxu0 0.0
    %486 = vmatpush1.msra.mxu0 0.0
    %487 = vmatprep.subr.mxu0 0.0
    %488 = vmatpush1.msra.mxu0 0.0
    %489 = vmatprep.subr.mxu0 0.0
    %490 = vmatpush1.msra.mxu0 0.0
    %491 = vmatprep.subr.mxu0 0.0
    %492 = vmatpush1.msra.mxu0 0.0
    %493 = vmatprep.subr.mxu0 0.0
    %494 = vmatpush1.msra.mxu0 0.0
    %495 = vmatprep.subr.mxu0 0.0
    %496 = vmatpush1.msra.mxu0 0.0
    %497 = vmatprep.mubr.f32.mxu0 0.0
    %498 = vmatmul.mubr.f32.gmra.mrb[0].mxu0 %v429
    %v499 = vpop.f32.mrb[0].mxu0
    %v500 = vadd.f32 %v385, %v499
    %v501 = vpop.f32.mrb[0].mxu0
    %502 = vmatprep.mubr.f32.mxu0 0.0
    %503 = vmatmul.mubr.f32.gmra.mrb[0].mxu0 %v431
    %v504 = vpop.f32.mrb[0].mxu0
    %v505 = vadd.f32 %v385, %v504
    %v506 = vpop.f32.mrb[0].mxu0
    %507 = vdwg.mxu0
    %v510 = vcombine.high %v500, %v500
    %v512 = vunpack.c.l.s4 1983009808
    %v513 = vunpack.c.0.s8 %v512
    %v514 = vlaneseq
    %v515 = vshrl.u32 %v514, 7
    %v516 = vsub.s32 %v513, %v515
    %v517 = vrot.slane %v500, %v516
    %v519 = vunpack.c.l.s4 1983009808
    %v520 = vunpack.c.0.s8 %v519
    %v521 = vlaneseq
    %v522 = vshrl.u32 %v521, 7
    %v523 = vsub.s32 %v520, %v522
    %v524 = vrot.slane %v510, %v523
    %v525 = vcombine.high %v517, %v517
    %v526 = vcombine.high %v524, %v524
    %v527 = vcombine.high %v505, %v505
    %v529 = vunpack.c.l.s4 1983009808
    %v530 = vunpack.c.0.s8 %v529
    %v531 = vlaneseq
    %v532 = vshrl.u32 %v531, 7
    %v533 = vsub.s32 %v530, %v532
    %v534 = vrot.slane %v505, %v533
    %v536 = vunpack.c.l.s4 1983009808
    %v537 = vunpack.c.0.s8 %v536
    %v538 = vlaneseq
    %v539 = vshrl.u32 %v538, 7
    %v540 = vsub.s32 %v537, %v539
    %v541 = vrot.slane %v527, %v540
    %v542 = vcombine.high %v534, %v534
    %v543 = vcombine.high %v541, %v541
    %552 = vst [vmem:[#allocation2] sm:$0x3] %v517
    %553 = vst [vmem:[#allocation2 + $0x2] sm:$0x3] %v525
    %554 = vst [vmem:[#allocation2 + $0x4] sm:$0x3] %v524
    %555 = vst [vmem:[#allocation2 + $0x6] sm:$0x3] %v526
    %556 = vst [vmem:[#allocation2 + $0x8] sm:$0x3] %v534
    %557 = vst [vmem:[#allocation2 + $0xa] sm:$0x3] %v542
    %558 = vst [vmem:[#allocation2 + $0xc] sm:$0x3] %v541
    %559 = vst [vmem:[#allocation2 + $0xe] sm:$0x3] %v543
    loop: start=0, step=1, limit=8
    $region26: #{mplstm_forward.4} parent=1 // loop_pre_header
      _
    $region27: #{mplstm_forward.4} parent=1 // loop_header
      %s561 = sphi 0, %s565
      %p562 = scmp.ge.s32.totalorder %s561, 8
      %v566 = vphi 0.0, %v670
      %v567 = vphi 0.0, %v664
    $region28: #{mplstm_forward.4} parent=1 // loop_header_branch
      %564 = sbr.rel (%p562) target = $region32
    $region29: #{mplstm_forward.4} parent=1 // loop_body
      %s568 = smul.u32 %s561, 2
      %s569 = scalar_lea.vmem [#allocation2], %s568
      %v570 = vld [vmem:[%s569] sm:$0x3]
      %572 = vrot.lane.b32.xlu0 %v566, 32
      %v573 = vpop.permute.xlu0 %572
      %v574 = vsel %vm80, %v573, 0
      %576 = vmatprep.subr.mxu0 0.0
      %577 = vmatpush1.msra.mxu0 %v376
      %578 = vmatprep.subr.mxu0 0.0
      %579 = vmatpush1.msra.mxu0 %v377
      %580 = vmatprep.subr.mxu0 0.0
      %581 = vmatpush1.msra.mxu0 %v378
      %582 = vmatprep.subr.mxu0 0.0
      %583 = vmatpush1.msra.mxu0 %v379
      %584 = vmatprep.subr.mxu0 0.0
      %585 = vmatpush1.msra.mxu0 0.0
      %586 = vmatprep.subr.mxu0 0.0
      %587 = vmatpush1.msra.mxu0 0.0
      %588 = vmatprep.subr.mxu0 0.0
      %589 = vmatpush1.msra.mxu0 0.0
      %590 = vmatprep.subr.mxu0 0.0
      %591 = vmatpush1.msra.mxu0 0.0
      %592 = vmatprep.subr.mxu0 0.0
      %593 = vmatpush1.msra.mxu0 0.0
      %594 = vmatprep.subr.mxu0 0.0
      %595 = vmatpush1.msra.mxu0 0.0
      %596 = vmatprep.subr.mxu0 0.0
      %597 = vmatpush1.msra.mxu0 0.0
      %598 = vmatprep.subr.mxu0 0.0
      %599 = vmatpush1.msra.mxu0 0.0
      %600 = vmatprep.subr.mxu0 0.0
      %601 = vmatpush1.msra.mxu0 0.0
      %602 = vmatprep.subr.mxu0 0.0
      %603 = vmatpush1.msra.mxu0 0.0
      %604 = vmatprep.subr.mxu0 0.0
      %605 = vmatpush1.msra.mxu0 0.0
      %606 = vmatprep.subr.mxu0 0.0
      %607 = vmatpush1.msra.mxu0 0.0
      %608 = vmatprep.subr.mxu0 0.0
      %609 = vmatpush1.msra.mxu0 0.0
      %610 = vmatprep.subr.mxu0 0.0
      %611 = vmatpush1.msra.mxu0 0.0
      %612 = vmatprep.subr.mxu0 0.0
      %613 = vmatpush1.msra.mxu0 0.0
      %614 = vmatprep.subr.mxu0 0.0
      %615 = vmatpush1.msra.mxu0 0.0
      %616 = vmatprep.subr.mxu0 0.0
      %617 = vmatpush1.msra.mxu0 0.0
      %618 = vmatprep.subr.mxu0 0.0
      %619 = vmatpush1.msra.mxu0 0.0
      %620 = vmatprep.subr.mxu0 0.0
      %621 = vmatpush1.msra.mxu0 0.0
      %622 = vmatprep.subr.mxu0 0.0
      %623 = vmatpush1.msra.mxu0 0.0
      %624 = vmatprep.subr.mxu0 0.0
      %625 = vmatpush1.msra.mxu0 0.0
      %626 = vmatprep.subr.mxu0 0.0
      %627 = vmatpush1.msra.mxu0 0.0
      %628 = vmatprep.subr.mxu0 0.0
      %629 = vmatpush1.msra.mxu0 0.0
      %630 = vmatprep.subr.mxu0 0.0
      %631 = vmatpush1.msra.mxu0 0.0
      %632 = vmatprep.subr.mxu0 0.0
      %633 = vmatpush1.msra.mxu0 0.0
      %634 = vmatprep.subr.mxu0 0.0
      %635 = vmatpush1.msra.mxu0 0.0
      %636 = vmatprep.subr.mxu0 0.0
      %637 = vmatpush1.msra.mxu0 0.0
      %638 = vmatprep.subr.mxu0 0.0
      %639 = vmatpush1.msra.mxu0 0.0
      %640 = vmatprep.mubr.f32.mxu0 0.0
      %641 = vmatmul.mubr.f32.gmra.mrb[0].mxu0 %v574
      %v642 = vpop.f32.mrb[0].mxu0
      %v643 = vadd.f32 0.0, %v642
      %v644 = vpop.f32.mrb[0].mxu0
      %645 = vdwg.mxu0
      %v646 = vadd.f32 %v570, %v643
      %v647 = vxor.u32 %v646, 2147483648
      %v648 = vmul.f32 %v647, 1.442695
      %v649 = vpow.pop %v648
      %v650 = vadd.f32 %v649, 1.0
      %v651 = vrcp.pop %v650
      %v652 = vmul.f32 1.0, %v651
      %v653 = vtanh.pop %v646
      %v654 = vmul.f32 %v652, %v567
      %656 = vrot.lane.b32.xlu0 %v653, 64
      %v657 = vpop.permute.xlu0 %656
      %v659 = vmul.f32 %v652, %v657
      %661 = vrot.lane.b32.xlu0 %v659, 32
      %v662 = vpop.permute.xlu0 %661
      %v664 = vadd.f32 %v654, %v662
      %v665 = vtanh.pop %v664
      %667 = vrot.lane.b32.xlu0 %v665, 64
      %v668 = vpop.permute.xlu0 %667
      %v670 = vmul.f32 %v652, %v668
      %672 = vrot.lane.b32.xlu0 %v670, 32
      %v673 = vpop.permute.xlu0 %672
      %s675 = scalar_lea.vmem %s6, %s568
      %vm676 = vcmask 254976
      %677 = vst.msk [vmem:[%s675] sm:$0x3] %vm676, %v673
    $region30: #{mplstm_forward.4} parent=1 // loop_footer
      %s565 = sadd.s32 1, %s561
    $region31: #{mplstm_forward.4} parent=1 // loop_footer_branch
      %560 = sbr.rel target = $region27
    $region32: #{mplstm_forward.4} parent=1 // loop_exit
      _
    %679 = vrot.lane.b32.xlu0 %v566, 32
    %v680 = vpop.permute.xlu0 %679
    %vm682 = vcmask 254976
    %683 = vst.msk [vmem:[#allocation3] sm:$0x3] %vm682, %v680
    %685 = vrot.lane.b32.xlu0 %v567, 96
    %v686 = vpop.permute.xlu0 %685
    %688 = vst.msk [vmem:[#allocation5] sm:$0x3] %vm682, %v686
    %v689 = vld [vmem:[%s6] sm:$0x3]
    %v690 = vld [vmem:[%s6 + $0x2] sm:$0x3]
    %v691 = vld [vmem:[%s6 + $0x4] sm:$0x3]
    %v692 = vld [vmem:[%s6 + $0x6] sm:$0x3]
    %v693 = vld [vmem:[%s6 + $0x8] sm:$0x3]
    %v694 = vld [vmem:[%s6 + $0xa] sm:$0x3]
    %v695 = vld [vmem:[%s6 + $0xc] sm:$0x3]
    %v696 = vld [vmem:[%s6 + $0xe] sm:$0x3]
    %s697 = scalar_lea.vmem %s3, 32
    %v698 = vld [vmem:[%s697] sm:$0xff]
    %v699 = vld [vmem:[%s697 + $0x8] sm:$0xff]
    %v700 = vld [vmem:[%s697 + $0x10] sm:$0xff]
    %v701 = vld [vmem:[%s697 + $0x18] sm:$0xff]
    %s702 = scalar_lea.vmem %s4, 32
    %v703 = vld [vmem:[%s702] sm:$0xff]
    %v704 = vld [vmem:[%s702 + $0x8] sm:$0xff]
    %v705 = vld [vmem:[%s702 + $0x10] sm:$0xff]
    %v706 = vld [vmem:[%s702 + $0x18] sm:$0xff]
    %s707 = scalar_lea.vmem %s5, 1
    %v708 = vld [vmem:[%s707] sm:$0x1]
    %v710 = vlaneseq
    %v711 = vshrl.u32 %v710, 7
    %v712 = vsub.s32 0, %v711
    %v713 = vrot.slane %v708, %v712
    %v723 = vcombine.low %v689, %v690
    %v724 = vcombine.low %v691, %v692
    %v726 = vunpack.c.l.s4 1983009808
    %v727 = vunpack.c.0.s8 %v726
    %v728 = vlaneseq
    %v729 = vshrl.u32 %v728, 7
    %v730 = vsub.s32 %v727, %v729
    %v731 = vrot.slane %v723, %v730
    %v733 = vunpack.c.l.s4 1983009808
    %v734 = vunpack.c.0.s8 %v733
    %v735 = vlaneseq
    %v736 = vshrl.u32 %v735, 7
    %v737 = vsub.s32 %v734, %v736
    %v738 = vrot.slane %v724, %v737
    %v739 = vcombine.low %v731, %v738
    %v740 = vcombine.low %v693, %v694
    %v741 = vcombine.low %v695, %v696
    %v743 = vunpack.c.l.s4 1983009808
    %v744 = vunpack.c.0.s8 %v743
    %v745 = vlaneseq
    %v746 = vshrl.u32 %v745, 7
    %v747 = vsub.s32 %v744, %v746
    %v748 = vrot.slane %v740, %v747
    %v750 = vunpack.c.l.s4 1983009808
    %v751 = vunpack.c.0.s8 %v750
    %v752 = vlaneseq
    %v753 = vshrl.u32 %v752, 7
    %v754 = vsub.s32 %v751, %v753
    %v755 = vrot.slane %v741, %v754
    %v756 = vcombine.low %v748, %v755
    %v757 = vsel %vm80, %v739, 0
    %v759 = vsel %vm80, %v756, 0
    %761 = vmatprep.subr.mxu0 0.0
    %762 = vmatpush1.msra.mxu0 %v698
    %763 = vmatprep.subr.mxu0 0.0
    %764 = vmatpush1.msra.mxu0 %v699
    %765 = vmatprep.subr.mxu0 0.0
    %766 = vmatpush1.msra.mxu0 %v700
    %767 = vmatprep.subr.mxu0 0.0
    %768 = vmatpush1.msra.mxu0 %v701
    %769 = vmatprep.subr.mxu0 0.0
    %770 = vmatpush1.msra.mxu0 0.0
    %771 = vmatprep.subr.mxu0 0.0
    %772 = vmatpush1.msra.mxu0 0.0
    %773 = vmatprep.subr.mxu0 0.0
    %774 = vmatpush1.msra.mxu0 0.0
    %775 = vmatprep.subr.mxu0 0.0
    %776 = vmatpush1.msra.mxu0 0.0
    %777 = vmatprep.subr.mxu0 0.0
    %778 = vmatpush1.msra.mxu0 0.0
    %779 = vmatprep.subr.mxu0 0.0
    %780 = vmatpush1.msra.mxu0 0.0
    %781 = vmatprep.subr.mxu0 0.0
    %782 = vmatpush1.msra.mxu0 0.0
    %783 = vmatprep.subr.mxu0 0.0
    %784 = vmatpush1.msra.mxu0 0.0
    %785 = vmatprep.subr.mxu0 0.0
    %786 = vmatpush1.msra.mxu0 0.0
    %787 = vmatprep.subr.mxu0 0.0
    %788 = vmatpush1.msra.mxu0 0.0
    %789 = vmatprep.subr.mxu0 0.0
    %790 = vmatpush1.msra.mxu0 0.0
    %791 = vmatprep.subr.mxu0 0.0
    %792 = vmatpush1.msra.mxu0 0.0
    %793 = vmatprep.subr.mxu0 0.0
    %794 = vmatpush1.msra.mxu0 0.0
    %795 = vmatprep.subr.mxu0 0.0
    %796 = vmatpush1.msra.mxu0 0.0
    %797 = vmatprep.subr.mxu0 0.0
    %798 = vmatpush1.msra.mxu0 0.0
    %799 = vmatprep.subr.mxu0 0.0
    %800 = vmatpush1.msra.mxu0 0.0
    %801 = vmatprep.subr.mxu0 0.0
    %802 = vmatpush1.msra.mxu0 0.0
    %803 = vmatprep.subr.mxu0 0.0
    %804 = vmatpush1.msra.mxu0 0.0
    %805 = vmatprep.subr.mxu0 0.0
    %806 = vmatpush1.msra.mxu0 0.0
    %807 = vmatprep.subr.mxu0 0.0
    %808 = vmatpush1.msra.mxu0 0.0
    %809 = vmatprep.subr.mxu0 0.0
    %810 = vmatpush1.msra.mxu0 0.0
    %811 = vmatprep.subr.mxu0 0.0
    %812 = vmatpush1.msra.mxu0 0.0
    %813 = vmatprep.subr.mxu0 0.0
    %814 = vmatpush1.msra.mxu0 0.0
    %815 = vmatprep.subr.mxu0 0.0
    %816 = vmatpush1.msra.mxu0 0.0
    %817 = vmatprep.subr.mxu0 0.0
    %818 = vmatpush1.msra.mxu0 0.0
    %819 = vmatprep.subr.mxu0 0.0
    %820 = vmatpush1.msra.mxu0 0.0
    %821 = vmatprep.subr.mxu0 0.0
    %822 = vmatpush1.msra.mxu0 0.0
    %823 = vmatprep.subr.mxu0 0.0
    %824 = vmatpush1.msra.mxu0 0.0
    %825 = vmatprep.mubr.f32.mxu0 0.0
    %826 = vmatmul.mubr.f32.gmra.mrb[0].mxu0 %v757
    %v827 = vpop.f32.mrb[0].mxu0
    %v828 = vadd.f32 %v713, %v827
    %v829 = vpop.f32.mrb[0].mxu0
    %830 = vmatprep.mubr.f32.mxu0 0.0
    %831 = vmatmul.mubr.f32.gmra.mrb[0].mxu0 %v759
    %v832 = vpop.f32.mrb[0].mxu0
    %v833 = vadd.f32 %v713, %v832
    %v834 = vpop.f32.mrb[0].mxu0
    %835 = vdwg.mxu0
    %v838 = vcombine.high %v828, %v828
    %v840 = vunpack.c.l.s4 1983009808
    %v841 = vunpack.c.0.s8 %v840
    %v842 = vlaneseq
    %v843 = vshrl.u32 %v842, 7
    %v844 = vsub.s32 %v841, %v843
    %v845 = vrot.slane %v828, %v844
    %v847 = vunpack.c.l.s4 1983009808
    %v848 = vunpack.c.0.s8 %v847
    %v849 = vlaneseq
    %v850 = vshrl.u32 %v849, 7
    %v851 = vsub.s32 %v848, %v850
    %v852 = vrot.slane %v838, %v851
    %v853 = vcombine.high %v845, %v845
    %v854 = vcombine.high %v852, %v852
    %v855 = vcombine.high %v833, %v833
    %v857 = vunpack.c.l.s4 1983009808
    %v858 = vunpack.c.0.s8 %v857
    %v859 = vlaneseq
    %v860 = vshrl.u32 %v859, 7
    %v861 = vsub.s32 %v858, %v860
    %v862 = vrot.slane %v833, %v861
    %v864 = vunpack.c.l.s4 1983009808
    %v865 = vunpack.c.0.s8 %v864
    %v866 = vlaneseq
    %v867 = vshrl.u32 %v866, 7
    %v868 = vsub.s32 %v865, %v867
    %v869 = vrot.slane %v855, %v868
    %v870 = vcombine.high %v862, %v862
    %v871 = vcombine.high %v869, %v869
    %880 = vst [vmem:[#allocation2] sm:$0x3] %v845
    %881 = vst [vmem:[#allocation2 + $0x2] sm:$0x3] %v853
    %882 = vst [vmem:[#allocation2 + $0x4] sm:$0x3] %v852
    %883 = vst [vmem:[#allocation2 + $0x6] sm:$0x3] %v854
    %884 = vst [vmem:[#allocation2 + $0x8] sm:$0x3] %v862
    %885 = vst [vmem:[#allocation2 + $0xa] sm:$0x3] %v870
    %886 = vst [vmem:[#allocation2 + $0xc] sm:$0x3] %v869
    %887 = vst [vmem:[#allocation2 + $0xe] sm:$0x3] %v871
    loop: start=0, step=1, limit=8
    $region33: #{mplstm_forward.4} parent=1 // loop_pre_header
      _
    $region34: #{mplstm_forward.4} parent=1 // loop_header
      %s889 = sphi 0, %s893
      %p890 = scmp.ge.s32.totalorder %s889, 8
      %v894 = vphi 0.0, %v998
      %v895 = vphi 0.0, %v992
    $region35: #{mplstm_forward.4} parent=1 // loop_header_branch
      %892 = sbr.rel (%p890) target = $region39
    $region36: #{mplstm_forward.4} parent=1 // loop_body
      %s896 = smul.u32 %s889, 2
      %s897 = scalar_lea.vmem [#allocation2], %s896
      %v898 = vld [vmem:[%s897] sm:$0x3]
      %900 = vrot.lane.b32.xlu0 %v894, 32
      %v901 = vpop.permute.xlu0 %900
      %v902 = vsel %vm80, %v901, 0
      %904 = vmatprep.subr.mxu0 0.0
      %905 = vmatpush1.msra.mxu0 %v703
      %906 = vmatprep.subr.mxu0 0.0
      %907 = vmatpush1.msra.mxu0 %v704
      %908 = vmatprep.subr.mxu0 0.0
      %909 = vmatpush1.msra.mxu0 %v705
      %910 = vmatprep.subr.mxu0 0.0
      %911 = vmatpush1.msra.mxu0 %v706
      %912 = vmatprep.subr.mxu0 0.0
      %913 = vmatpush1.msra.mxu0 0.0
      %914 = vmatprep.subr.mxu0 0.0
      %915 = vmatpush1.msra.mxu0 0.0
      %916 = vmatprep.subr.mxu0 0.0
      %917 = vmatpush1.msra.mxu0 0.0
      %918 = vmatprep.subr.mxu0 0.0
      %919 = vmatpush1.msra.mxu0 0.0
      %920 = vmatprep.subr.mxu0 0.0
      %921 = vmatpush1.msra.mxu0 0.0
      %922 = vmatprep.subr.mxu0 0.0
      %923 = vmatpush1.msra.mxu0 0.0
      %924 = vmatprep.subr.mxu0 0.0
      %925 = vmatpush1.msra.mxu0 0.0
      %926 = vmatprep.subr.mxu0 0.0
      %927 = vmatpush1.msra.mxu0 0.0
      %928 = vmatprep.subr.mxu0 0.0
      %929 = vmatpush1.msra.mxu0 0.0
      %930 = vmatprep.subr.mxu0 0.0
      %931 = vmatpush1.msra.mxu0 0.0
      %932 = vmatprep.subr.mxu0 0.0
      %933 = vmatpush1.msra.mxu0 0.0
      %934 = vmatprep.subr.mxu0 0.0
      %935 = vmatpush1.msra.mxu0 0.0
      %936 = vmatprep.subr.mxu0 0.0
      %937 = vmatpush1.msra.mxu0 0.0
      %938 = vmatprep.subr.mxu0 0.0
      %939 = vmatpush1.msra.mxu0 0.0
      %940 = vmatprep.subr.mxu0 0.0
      %941 = vmatpush1.msra.mxu0 0.0
      %942 = vmatprep.subr.mxu0 0.0
      %943 = vmatpush1.msra.mxu0 0.0
      %944 = vmatprep.subr.mxu0 0.0
      %945 = vmatpush1.msra.mxu0 0.0
      %946 = vmatprep.subr.mxu0 0.0
      %947 = vmatpush1.msra.mxu0 0.0
      %948 = vmatprep.subr.mxu0 0.0
      %949 = vmatpush1.msra.mxu0 0.0
      %950 = vmatprep.subr.mxu0 0.0
      %951 = vmatpush1.msra.mxu0 0.0
      %952 = vmatprep.subr.mxu0 0.0
      %953 = vmatpush1.msra.mxu0 0.0
      %954 = vmatprep.subr.mxu0 0.0
      %955 = vmatpush1.msra.mxu0 0.0
      %956 = vmatprep.subr.mxu0 0.0
      %957 = vmatpush1.msra.mxu0 0.0
      %958 = vmatprep.subr.mxu0 0.0
      %959 = vmatpush1.msra.mxu0 0.0
      %960 = vmatprep.subr.mxu0 0.0
      %961 = vmatpush1.msra.mxu0 0.0
      %962 = vmatprep.subr.mxu0 0.0
      %963 = vmatpush1.msra.mxu0 0.0
      %964 = vmatprep.subr.mxu0 0.0
      %965 = vmatpush1.msra.mxu0 0.0
      %966 = vmatprep.subr.mxu0 0.0
      %967 = vmatpush1.msra.mxu0 0.0
      %968 = vmatprep.mubr.f32.mxu0 0.0
      %969 = vmatmul.mubr.f32.gmra.mrb[0].mxu0 %v902
      %v970 = vpop.f32.mrb[0].mxu0
      %v971 = vadd.f32 0.0, %v970
      %v972 = vpop.f32.mrb[0].mxu0
      %973 = vdwg.mxu0
      %v974 = vadd.f32 %v898, %v971
      %v975 = vxor.u32 %v974, 2147483648
      %v976 = vmul.f32 %v975, 1.442695
      %v977 = vpow.pop %v976
      %v978 = vadd.f32 %v977, 1.0
      %v979 = vrcp.pop %v978
      %v980 = vmul.f32 1.0, %v979
      %v981 = vtanh.pop %v974
      %v982 = vmul.f32 %v980, %v895
      %984 = vrot.lane.b32.xlu0 %v981, 64
      %v985 = vpop.permute.xlu0 %984
      %v987 = vmul.f32 %v980, %v985
      %989 = vrot.lane.b32.xlu0 %v987, 32
      %v990 = vpop.permute.xlu0 %989
      %v992 = vadd.f32 %v982, %v990
      %v993 = vtanh.pop %v992
      %995 = vrot.lane.b32.xlu0 %v993, 64
      %v996 = vpop.permute.xlu0 %995
      %v998 = vmul.f32 %v980, %v996
      %1000 = vrot.lane.b32.xlu0 %v998, 32
      %v1001 = vpop.permute.xlu0 %1000
      %s1003 = scalar_lea.vmem %s6, %s896
      %1004 = vst.msk [vmem:[%s1003] sm:$0x3] %vm682, %v1001
    $region37: #{mplstm_forward.4} parent=1 // loop_footer
      %s893 = sadd.s32 1, %s889
    $region38: #{mplstm_forward.4} parent=1 // loop_footer_branch
      %888 = sbr.rel target = $region34
    $region39: #{mplstm_forward.4} parent=1 // loop_exit
      _
    %1006 = vrot.lane.b32.xlu0 %v894, 32
    %v1007 = vpop.permute.xlu0 %1006
    %s1009 = scalar_lea.vmem [#allocation3], 2
    %1010 = vst.msk [vmem:[%s1009] sm:$0x3] %vm682, %v1007
    %1012 = vrot.lane.b32.xlu0 %v895, 96
    %v1013 = vpop.permute.xlu0 %1012
    %s1015 = scalar_lea.vmem [#allocation5], 2
    %1016 = vst.msk [vmem:[%s1015] sm:$0x3] %vm682, %v1013
    %v1017 = vld [vmem:[%s6] sm:$0x3]
    %v1018 = vld [vmem:[%s6 + $0x2] sm:$0x3]
    %v1019 = vld [vmem:[%s6 + $0x4] sm:$0x3]
    %v1020 = vld [vmem:[%s6 + $0x6] sm:$0x3]
    %v1021 = vld [vmem:[%s6 + $0x8] sm:$0x3]
    %v1022 = vld [vmem:[%s6 + $0xa] sm:$0x3]
    %v1023 = vld [vmem:[%s6 + $0xc] sm:$0x3]
    %v1024 = vld [vmem:[%s6 + $0xe] sm:$0x3]
    %v1025 = vmax.f32 %v1017, 0.0
    %v1026 = vmax.f32 %v1018, 0.0
    %v1027 = vmax.f32 %v1019, 0.0
    %v1028 = vmax.f32 %v1020, 0.0
    %v1029 = vmax.f32 %v1021, 0.0
    %v1030 = vmax.f32 %v1022, 0.0
    %v1031 = vmax.f32 %v1023, 0.0
    %v1032 = vmax.f32 %v1024, 0.0
    %1033 = vst.msk [vmem:[%s6] sm:$0x3] %vm682, %v1025
    %1034 = vst.msk [vmem:[%s6 + $0x2] sm:$0x3] %vm682, %v1026
    %1035 = vst.msk [vmem:[%s6 + $0x4] sm:$0x3] %vm682, %v1027
    %1036 = vst.msk [vmem:[%s6 + $0x6] sm:$0x3] %vm682, %v1028
    %1037 = vst.msk [vmem:[%s6 + $0x8] sm:$0x3] %vm682, %v1029
    %1038 = vst.msk [vmem:[%s6 + $0xa] sm:$0x3] %vm682, %v1030
    %1039 = vst.msk [vmem:[%s6 + $0xc] sm:$0x3] %vm682, %v1031
    %1040 = vst.msk [vmem:[%s6 + $0xe] sm:$0x3] %vm682, %v1032
    // Predicated region
    $region40: #{mplstm_forward.4} parent=1 // pred_check
      _
    $region41: #{mplstm_forward.4} parent=1 // pred_check_branch
      %1042 = sbr.rel (0) target = $region43
    $region42: #{mplstm_forward.4} parent=1 // pred_region
      _
    $region43: #{mplstm_forward.4} parent=1 // pred_fallthru
      _
    // Predicated region
    $region44: #{mplstm_forward.4} parent=1 // pred_check
      _
    $region45: #{mplstm_forward.4} parent=1 // pred_check_branch
      %1044 = sbr.rel (0) target = $region47
    $region46: #{mplstm_forward.4} parent=1 // pred_region
      %s1046 = ssub.s32 64, 64
      %1047 = vsyncadd [#allocation4], %s1046
      %s1048 = sshll.u32 [#allocation3], 4
      %s1049 = int_to_ptr.vmem [resolvable:$true] %s1048
      %1054 = dma.vmem_to_hbm [thread:$0]  %s1049, 64, %s7, [#allocation4], 32, 32, 2
    $region47: #{mplstm_forward.4} parent=1 // pred_fallthru
      _
    // Predicated region
    $region48: #{mplstm_forward.4} parent=1 // pred_check
      _
    $region49: #{mplstm_forward.4} parent=1 // pred_check_branch
      %1056 = sbr.rel (0) target = $region51
    $region50: #{mplstm_forward.4} parent=1 // pred_region
      %s1058 = ssub.s32 64, 64
      %1059 = vsyncadd [#allocation6], %s1058
      %s1060 = sshll.u32 [#allocation5], 4
      %s1061 = int_to_ptr.vmem [resolvable:$true] %s1060
      %1066 = dma.vmem_to_hbm [thread:$0]  %s1061, 64, %s8, [#allocation6], 32, 32, 2
    $region51: #{mplstm_forward.4} parent=1 // pred_fallthru
      _
    // Predicated region
    $region52: #{mplstm_forward.4} parent=1 // pred_check
      _
    $region53: #{mplstm_forward.4} parent=1 // pred_check_branch
      %1068 = sbr.rel (0) target = $region55
    $region54: #{mplstm_forward.4} parent=1 // pred_region
      _
    $region55: #{mplstm_forward.4} parent=1 // pred_fallthru
      _
    // Predicated region
    $region56: #{mplstm_forward.4} parent=1 // pred_check
      _
    $region57: #{mplstm_forward.4} parent=1 // pred_check_branch
      %1070 = sbr.rel (0) target = $region59
    $region58: #{mplstm_forward.4} parent=1 // pred_region
      %1071 = dma.done [#allocation4], 64
    $region59: #{mplstm_forward.4} parent=1 // pred_fallthru
      _
    // Predicated region
    $region60: #{mplstm_forward.4} parent=1 // pred_check
      _
    $region61: #{mplstm_forward.4} parent=1 // pred_check_branch
      %1073 = sbr.rel (0) target = $region63
    $region62: #{mplstm_forward.4} parent=1 // pred_region
      %1074 = dma.done [#allocation6], 64
    $region63: #{mplstm_forward.4} parent=1 // pred_fallthru
      _
    %1075 = vsyncpa [#allocation4], 1
    %1076 = vsyncpa [#allocation6], 1

</llo_original>
